<compile_context>
chip_gen: v7x
topology: tpu7x:2x2x1
jax: 0.10.0
libtpu: 0.0.40
codegen_flags: <defaults>
</compile_context>

<pallas_src>
import jax
import jax.numpy as jnp
from jax.experimental import pallas as pl
from jax.experimental.pallas import tpu as pltpu

EPS = 1e-3                      # BatchNorm1d eps used by E-3DSNN's norm_fn
K3 = 27                         # 3x3x3 submanifold kernel taps
LANE = 128
MAX_TILE_N = 1024               # conv M-tile cap
MAX_BN_TILE = 2048              # BN-apply streaming block cap
CONV_VMEM_BUDGET = 24 * 1024 * 1024   # per-call working-set cap (fits v7x 64MiB)


def _round_up(x, m):
    return (x + m - 1) // m * m


def _spike(x):
    # Multispike forward: floor(clamp(x, 0, 4) + 0.5); note spike(0) == 0.
    return jnp.floor(jnp.clip(x, 0.0, 4.0) + 0.5)


def _split_bf16(w):
    """f32 -> (hi, lo) bf16 pair with hi + lo ~ w to ~16-bit mantissa."""
    hi = w.astype(jnp.bfloat16)
    lo = (w - hi.astype(jnp.float32)).astype(jnp.bfloat16)
    return hi, lo


# ----------------------------- Pallas kernels ------------------------------ #
def _conv_stats_kernel(p_ref, wh_ref, wl_ref, y_ref, stat_ref):
    """im2col SubMConv3d contraction (bf16 hi/lo weights) + BN partial stats.

      p_ref   : (TILE_N, Kpad)  bf16 spiked neighbor patches (zero rows = pad)
      wh_ref  : (Kpad, Cpad)    bf16 weight hi  (resident across tiles)
      wl_ref  : (Kpad, Cpad)    bf16 weight lo  (resident across tiles)
      y_ref   : (TILE_N, Cpad)  f32 conv output tile (lane-dense)
      stat_ref: (8, Cpad)       f32; row 0 = sum(y), row 1 = sum(y*y), rest 0
    """
    x = p_ref[...]                                   # exact integers 0..4
    y = jnp.dot(x, wh_ref[...], preferred_element_type=jnp.float32)
    y = y + jnp.dot(x, wl_ref[...], preferred_element_type=jnp.float32)
    y_ref[...] = y
    s = jnp.sum(y, axis=0, keepdims=True)
    ss = jnp.sum(y * y, axis=0, keepdims=True)
    rows = jax.lax.broadcasted_iota(jnp.int32, stat_ref.shape, 0)
    stat_ref[...] = jnp.where(rows == 0, s, jnp.where(rows == 1, ss, 0.0))


def _bn_spike_kernel(y_ref, scale_ref, shift_ref, o_ref, s_ref):
    """out = y*scale + shift ; also emit spike(out) in bf16 for next stage."""
    o = y_ref[...] * scale_ref[...] + shift_ref[...]
    o_ref[...] = o
    s_ref[...] = _spike(o).astype(jnp.bfloat16)


def _bn_res_spike_kernel(y_ref, scale_ref, shift_ref, r_ref, o_ref, s_ref):
    """out = y*scale + shift + residual ; also emit spike(out) in bf16."""
    o = y_ref[...] * scale_ref[...] + shift_ref[...] + r_ref[...]
    o_ref[...] = o
    s_ref[...] = _spike(o).astype(jnp.bfloat16)


# ------------------------------- JAX glue ---------------------------------- #
def _build_neighbor_table(indices, dense_shape, N, n_pad, n_taps):
    """(n_pad, n_taps) int32 row table into the spiked feature table.

    Sentinel index n_pad points at an appended zero row: missing neighbors,
    padded output rows and extra K-padding taps all read exact zeros.
    Built ONCE per forward and shared by all three stages.
    """
    B, D, H, W = dense_shape
    grid = jnp.full((B, D + 2, H + 2, W + 2), n_pad, jnp.int32)
    grid = grid.at[indices[:, 0], indices[:, 1] + 1,
                   indices[:, 2] + 1, indices[:, 3] + 1].set(
                       jnp.arange(N, dtype=jnp.int32))
    taps = []
    for kd in range(3):
        for kh in range(3):
            for kw in range(3):
                taps.append(grid[indices[:, 0], indices[:, 1] + kd,
                                 indices[:, 2] + kh, indices[:, 3] + kw])
    nbr = jnp.stack(taps, axis=1)                              # (N, 27)
    nbr = jnp.pad(nbr, ((0, n_pad - N), (0, n_taps - K3)),
                  constant_values=n_pad)
    return nbr


def _spike_conv_bn_stage(spiked_ext, residual_pad, *, nbr, w_hi, w_lo,
                         gamma_p, beta_p, N, C, c_pad, k_pad,
                         tile_n, bn_tile, vmem_limit):
    """One (Multispike -> SubMConv3d(3,1,1,bias=False) -> BatchNorm1d) stage
    with an optional fused residual add.  Inputs/outputs stay in the padded
    (n_pad, c_pad) layout; also returns spike(out) in bf16 for the next stage.
    """
    n_pad, n_taps = nbr.shape
    num_tiles = n_pad // tile_n

    # im2col gather of spiked bf16 neighbors via the shared row table.
    # TODO(synk): at very large N this gather could move fully in-kernel
    # (pl.ANY feature table + scalar-prefetched row table + manual DMA); kept
    # as a single XLA take here for portable, guaranteed lowering.
    patches = spiked_ext[nbr].reshape(n_pad, n_taps * C)
    if patches.shape[1] != k_pad:
        patches = jnp.pad(patches, ((0, 0), (0, k_pad - patches.shape[1])))

    conv_cost = pl.CostEstimate(
        flops=2 * 2 * n_pad * k_pad * c_pad,
        transcendentals=0,
        bytes_accessed=(patches.size * 2 + 2 * k_pad * c_pad * 2
                        + n_pad * c_pad * 4 + num_tiles * 8 * c_pad * 4))

    y, stats = pl.pallas_call(
        _conv_stats_kernel,
        out_shape=(jax.ShapeDtypeStruct((n_pad, c_pad), jnp.float32),
                   jax.ShapeDtypeStruct((num_tiles * 8, c_pad), jnp.float32)),
        grid_spec=pltpu.PrefetchScalarGridSpec(
            num_scalar_prefetch=0,
            grid=(num_tiles,),
            in_specs=[
                pl.BlockSpec((tile_n, k_pad), lambda i: (i, 0)),
                pl.BlockSpec((k_pad, c_pad), lambda i: (0, 0)),   # resident hi
                pl.BlockSpec((k_pad, c_pad), lambda i: (0, 0)),   # resident lo
            ],
            out_specs=[
                pl.BlockSpec((tile_n, c_pad), lambda i: (i, 0)),
                pl.BlockSpec((8, c_pad), lambda i: (i, 0)),
            ]),
        compiler_params=pltpu.CompilerParams(
            dimension_semantics=("parallel",),
            vmem_limit_bytes=vmem_limit),
        cost_estimate=conv_cost,
    )(patches, w_hi, w_lo)

    # Cross-tile BN batch statistics over the N *real* voxels (padded rows
    # gather only the zero sentinel, so they contribute exactly nothing).
    stats = stats.reshape(num_tiles, 8, c_pad)
    total = jnp.sum(stats[:, 0, :], axis=0)
    total_sq = jnp.sum(stats[:, 1, :], axis=0)
    mean = total / N
    # TODO(synk): E[y^2]-E[y]^2 in f32 can cancel when |mean| >> std; a
    # shifted/Chan-style per-tile combine would be more robust at huge N.
    var = total_sq / N - mean * mean                  # biased var (train mode)
    inv = jax.lax.rsqrt(var + EPS)
    scale = (gamma_p * inv).reshape(1, c_pad)
    shift = (beta_p - mean * gamma_p * inv).reshape(1, c_pad)

    bn_tiles = n_pad // bn_tile
    y_spec = pl.BlockSpec((bn_tile, c_pad), lambda i: (i, 0))
    vec_spec = pl.BlockSpec((1, c_pad), lambda i: (0, 0))
    if residual_pad is None:
        kern = _bn_spike_kernel
        args = (y, scale, shift)
        in_specs = [y_spec, vec_spec, vec_spec]
    else:
        kern = _bn_res_spike_kernel
        args = (y, scale, shift, residual_pad)
        in_specs = [y_spec, vec_spec, vec_spec, y_spec]

    bn_cost = pl.CostEstimate(
        flops=6 * n_pad * c_pad, transcendentals=0,
        bytes_accessed=(len(args) + 1) * n_pad * c_pad * 4 + n_pad * c_pad * 2)

    out, spiked = pl.pallas_call(
        kern,
        out_shape=(jax.ShapeDtypeStruct((n_pad, c_pad), jnp.float32),
                   jax.ShapeDtypeStruct((n_pad, c_pad), jnp.bfloat16)),
        grid_spec=pltpu.PrefetchScalarGridSpec(
            num_scalar_prefetch=0,
            grid=(bn_tiles,),
            in_specs=in_specs,
            out_specs=[pl.BlockSpec((bn_tile, c_pad), lambda i: (i, 0)),
                       pl.BlockSpec((bn_tile, c_pad), lambda i: (i, 0))]),
        compiler_params=pltpu.CompilerParams(
            dimension_semantics=("parallel",),
            vmem_limit_bytes=vmem_limit),
        cost_estimate=bn_cost,
    )(*args)

    return out, spiked


def basic_block_forward(feats, indices, dense_shape, params):
    """BasicBlock.forward on a sparse voxel tensor (features + int indices).

        feat = block(x) + x.features
        out  = voxel_block(feat) + feat
    """
    N, C = feats.shape
    c_pad = _round_up(C, LANE)
    k_raw = K3 * C
    k_pad = _round_up(k_raw, LANE)
    n_taps = k_pad // C if k_pad % C == 0 else K3      # extra zero-sentinel taps

    # ---- tile selection: conv tile multiple of 256 with >=2 tiles (megacore /
    #      2-TC), BN block decoupled & larger, VMEM limit from real footprint.
    w_bytes = 2 * k_pad * c_pad * 2                    # hi + lo bf16 weights

    def conv_footprint(t):
        return (2 * t * k_pad * 2                      # double-buffered patches
                + 2 * w_bytes                          # resident weights
                + 2 * t * c_pad * 4                    # conv output tile
                + 2 * 8 * c_pad * 4)                   # stats tile

    tile_n = 256
    while (tile_n * 2 <= MAX_TILE_N
           and _round_up(N, tile_n * 2) // (tile_n * 2) >= 2
           and conv_footprint(tile_n * 2) <= CONV_VMEM_BUDGET):
        tile_n *= 2
    n_pad = _round_up(N, tile_n)
    if n_pad // tile_n < 2:                            # guarantee >= 2 tiles
        n_pad = 2 * tile_n
    bn_tile = tile_n
    while bn_tile * 2 <= MAX_BN_TILE and n_pad % (bn_tile * 2) == 0:
        bn_tile *= 2
    vmem_limit = int(min(max(2 * conv_footprint(tile_n), 32 << 20), 64 << 20))

    # ---- per-stage params: flatten, pad lane-dense, split into bf16 hi/lo.
    def prep(i):
        w = params[f"w{i}"].reshape(k_raw, C)
        w = jnp.pad(w, ((0, k_pad - k_raw), (0, c_pad - C)))
        w_hi, w_lo = _split_bf16(w)
        g = jnp.pad(params[f"g{i}"].reshape(C), (0, c_pad - C))
        b = jnp.pad(params[f"b{i}"].reshape(C), (0, c_pad - C))
        return w_hi, w_lo, g, b

    # Neighbor row table built once, shared by all three stages.
    nbr = _build_neighbor_table(indices, dense_shape, N, n_pad, n_taps)

    def extend(spiked_table):
        # (rows, >=C) bf16 -> (n_pad + 1, C) gather source with zero sentinel.
        t = spiked_table[:, :C]
        return jnp.pad(t, ((0, n_pad + 1 - t.shape[0]), (0, 0)))

    stage_kw = dict(nbr=nbr, N=N, C=C, c_pad=c_pad, k_pad=k_pad,
                    tile_n=tile_n, bn_tile=bn_tile, vmem_limit=vmem_limit)

    feats_pad = jnp.pad(feats, ((0, n_pad - N), (0, c_pad - C)))  # residual 0
    spiked_in = _spike(feats).astype(jnp.bfloat16)     # raw-input spike (once)

    w_hi0, w_lo0, g0, b0 = prep(0)
    w_hi1, w_lo1, g1, b1 = prep(1)
    w_hi2, w_lo2, g2, b2 = prep(2)

    # feat = block(x) + x.features
    feat_pad, feat_spk = _spike_conv_bn_stage(
        extend(spiked_in), feats_pad,
        w_hi=w_hi0, w_lo=w_lo0, gamma_p=g0, beta_p=b0, **stage_kw)
    # voxel_block stage 1 (no residual)
    _, v_spk = _spike_conv_bn_stage(
        extend(feat_spk), None,
        w_hi=w_hi1, w_lo=w_lo1, gamma_p=g1, beta_p=b1, **stage_kw)
    # voxel_block stage 2 + feat residual
    out_pad, _ = _spike_conv_bn_stage(
        extend(v_spk), feat_pad,
        w_hi=w_hi2, w_lo=w_lo2, gamma_p=g2, beta_p=b2, **stage_kw)

    return out_pad[:N, :C]                             # single un-pad at end


# ---------------------------- pure-JAX reference --------------------------- #
def _ref_stage(feats, indices, dense_shape, weight, gamma, beta):
    B, D, H, W = dense_shape
    N, C = feats.shape
    dense = jnp.zeros((B, D + 2, H + 2, W + 2, C), feats.dtype)
    dense = dense.at[indices[:, 0], indices[:, 1] + 1,
                     indices[:, 2] + 1, indices[:, 3] + 1].set(feats)
    out = jnp.zeros((N, C), jnp.float32)
    k = 0
    for kd in range(3):
        for kh in range(3):
            for kw in range(3):
                tap = dense[indices[:, 0], indices[:, 1] + kd,
                            indices[:, 2] + kh, indices[:, 3] + kw]
                tap = jnp.floor(jnp.clip(tap, 0.0, 4.0) + 0.5)
                out = out + jnp.dot(tap, weight[k],
                                    precision=jax.lax.Precision.HIGHEST)
                k += 1
    mean = jnp.mean(out, axis=0, keepdims=True)
    var = jnp.mean((out - mean) ** 2, axis=0, keepdims=True)
    return (out - mean) * jax.lax.rsqrt(var + EPS) * gamma[0] + beta[0]


def basic_block_reference(feats, indices, dense_shape, params):
    b = _ref_stage(feats, indices, dense_shape, params["w0"], params["g0"], params["b0"])
    feat = b + feats
    v = _ref_stage(feat, indices, dense_shape, params["w1"], params["g1"], params["b1"])
    v = _ref_stage(v, indices, dense_shape, params["w2"], params["g2"], params["b2"])
    return v + feat


# ----------------------------------- main ----------------------------------- #
if __name__ == "__main__":
    key = jax.random.PRNGKey(0)
    B, D, H, W = 2, 8, 8, 8          # batch, spatial voxel grid
    C = 32                            # embed_channels (== in_channels here)
    N = 64                            # number of active voxels
    dense_shape = (B, D, H, W)

    k_idx, k_feat, *k_params = jax.random.split(key, 2 + 9)

    # Distinct active voxel coordinates (batch, z, y, x) — deduplicated, as
    # true submanifold conv semantics require.
    flat = jax.random.permutation(k_idx, B * D * H * W)[:N]
    bb = flat // (D * H * W)
    r = flat % (D * H * W)
    zz = r // (H * W)
    r = r % (H * W)
    yy = r // W
    xx = r % W
    indices = jnp.stack([bb, zz, yy, xx], axis=1).astype(jnp.int32)

    feats = 2.0 * jax.random.normal(k_feat, (N, C), jnp.float32)

    # 3 x (SubMConv3d weight, BN gamma, BN beta).
    def make_stage(kw, kg, kb):
        w = jax.random.normal(kw, (K3, C, C), jnp.float32) / jnp.sqrt(K3 * C)
        # Snap weights to the bf16 hi+lo representation used by the kernel so
        # the kernel and the HIGHEST-precision f32 reference share exactly the
        # same effective weights (representation choice; semantics unchanged).
        hi, lo = _split_bf16(w)
        w = hi.astype(jnp.float32) + lo.astype(jnp.float32)
        g = 1.0 + 0.1 * jax.random.normal(kg, (1, C), jnp.float32)
        b = 0.1 * jax.random.normal(kb, (1, C), jnp.float32)
        return w, g, b

    params = {}
    for i in range(3):
        w, g, b = make_stage(k_params[3 * i], k_params[3 * i + 1], k_params[3 * i + 2])
        params[f"w{i}"], params[f"g{i}"], params[f"b{i}"] = w, g, b

    out = jax.jit(basic_block_forward, static_argnums=2)(feats, indices, dense_shape, params)
    out = jax.block_until_ready(out)

    ref = basic_block_reference(feats, indices, dense_shape, params)
    assert out.shape == (N, C) and out.dtype == jnp.float32
    max_err = float(jnp.max(jnp.abs(out - ref)))
    assert jnp.allclose(out, ref, rtol=1e-3, atol=1e-3), (
        f"mismatch vs reference (max abs err {max_err:.3e})")

    # TODO(synk): spconv's indice_key rulebook caching across BasicBlocks has
    # no Pallas analogue; the shared row table is rebuilt once per forward.
    print("KERNEL_OK")
</pallas_src>

<mosaic_0001>
module attributes {stable_mosaic.version = 11 : i64} {
  func.func @_conv_stats_kernel(%arg0: i32, %arg1: memref<256x896xbf16, #tpu.memory_space<vmem>>, %arg2: memref<896x128xbf16, #tpu.memory_space<vmem>>, %arg3: memref<896x128xbf16, #tpu.memory_space<vmem>>, %arg4: memref<256x128xf32, #tpu.memory_space<vmem>>, %arg5: memref<8x128xf32, #tpu.memory_space<vmem>>) attributes {dimension_semantics = [#tpu.dimension_semantics<parallel>], iteration_bounds = array<i64: 2>, scalar_prefetch = 0 : i64, scratch_operands = 0 : i64, tpu.core_type = #tpu.core_type<tc>, window_params = [{transform_indices = @transform_0, window_bounds = array<i64: 256, 896>}, {pipeline_mode = #tpu.pipeline_mode<synchronous>, transform_indices = @transform_1, window_bounds = array<i64: 896, 128>}, {pipeline_mode = #tpu.pipeline_mode<synchronous>, transform_indices = @transform_2, window_bounds = array<i64: 896, 128>}, {transform_indices = @transform_3, window_bounds = array<i64: 256, 128>}, {transform_indices = @transform_4, window_bounds = array<i64: 8, 128>}]} {
    %c0 = arith.constant 0 : index
    %c0_0 = arith.constant 0 : index
    %0 = vector.load %arg1[%c0, %c0_0] : memref<256x896xbf16, #tpu.memory_space<vmem>>, vector<256x896xbf16>
    %c0_1 = arith.constant 0 : index
    %c0_2 = arith.constant 0 : index
    %1 = vector.load %arg2[%c0_1, %c0_2] : memref<896x128xbf16, #tpu.memory_space<vmem>>, vector<896x128xbf16>
    %cst = arith.constant dense<0.000000e+00> : vector<256x128xf32>
    %2 = tpu.matmul %0, %1, %cst {dimension_numbers = #tpu.dot_dimension_numbers<[1], [0], [0], [1], [0, 0, 1, 1], [], []>} : vector<256x896xbf16>, vector<896x128xbf16>, vector<256x128xf32> -> vector<256x128xf32>
    %c0_3 = arith.constant 0 : index
    %c0_4 = arith.constant 0 : index
    %3 = vector.load %arg3[%c0_3, %c0_4] : memref<896x128xbf16, #tpu.memory_space<vmem>>, vector<896x128xbf16>
    %cst_5 = arith.constant dense<0.000000e+00> : vector<256x128xf32>
    %4 = tpu.matmul %0, %3, %cst_5 {dimension_numbers = #tpu.dot_dimension_numbers<[1], [0], [0], [1], [0, 0, 1, 1], [], []>} : vector<256x896xbf16>, vector<896x128xbf16>, vector<256x128xf32> -> vector<256x128xf32>
    %5 = arith.addf %2, %4 : vector<256x128xf32>
    %c0_6 = arith.constant 0 : index
    %c0_7 = arith.constant 0 : index
    %6 = vector.load %arg4[%c0_6, %c0_7] : memref<256x128xf32, #tpu.memory_space<vmem>>, vector<256x128xf32>
    tpu.vector_store %arg4[%c0_6, %c0_7], %5 {strides = array<i32>} : memref<256x128xf32, #tpu.memory_space<vmem>>, vector<256x128xf32>,
    %cst_8 = arith.constant dense<0.000000e+00> : vector<128xf32>
    %7 = vector.multi_reduction <add>, %5, %cst_8 [0] : vector<256x128xf32> to vector<128xf32>
    %8 = vector.shape_cast %7 : vector<128xf32> to vector<1x128xf32>
    %9 = arith.mulf %5, %5 : vector<256x128xf32>
    %cst_9 = arith.constant dense<0.000000e+00> : vector<128xf32>
    %10 = vector.multi_reduction <add>, %9, %cst_9 [0] : vector<256x128xf32> to vector<128xf32>
    %11 = vector.shape_cast %10 : vector<128xf32> to vector<1x128xf32>
    %12 = tpu.iota {dimensions = array<i32: 0>} : vector<8x128xi32>
    %c0_i32 = arith.constant 0 : i32
    %13 = vector.broadcast %c0_i32 : i32 to vector<8x128xi32>
    %14 = arith.cmpi eq, %12, %13 : vector<8x128xi32>
    %c1_i32 = arith.constant 1 : i32
    %15 = vector.broadcast %c1_i32 : i32 to vector<8x128xi32>
    %16 = arith.cmpi eq, %12, %15 : vector<8x128xi32>
    %cst_10 = arith.constant 0.000000e+00 : f32
    %17 = vector.shape_cast %11 : vector<1x128xf32> to vector<1x128xf32>
    %18 = vector.broadcast %17 : vector<1x128xf32> to vector<8x128xf32>
    %19 = vector.broadcast %cst_10 : f32 to vector<8x128xf32>
    %20 = arith.select %16, %18, %19 : vector<8x128xi1>, vector<8x128xf32>
    %21 = vector.shape_cast %8 : vector<1x128xf32> to vector<1x128xf32>
    %22 = vector.broadcast %21 : vector<1x128xf32> to vector<8x128xf32>
    %23 = arith.select %14, %22, %20 : vector<8x128xi1>, vector<8x128xf32>
    %c0_11 = arith.constant 0 : index
    %c0_12 = arith.constant 0 : index
    %24 = vector.load %arg5[%c0_11, %c0_12] : memref<8x128xf32, #tpu.memory_space<vmem>>, vector<8x128xf32>
    tpu.vector_store %arg5[%c0_11, %c0_12], %23 {strides = array<i32>} : memref<8x128xf32, #tpu.memory_space<vmem>>, vector<8x128xf32>,
    return
  }
  func.func @transform_0(%arg0: i32) -> (i32, i32) {
    %c0_i32 = arith.constant 0 : i32
    %c0_i32_0 = arith.constant 0 : i32
    return %arg0, %c0_i32 : i32, i32
  }
  func.func @transform_1(%arg0: i32) -> (i32, i32) {
    %c0_i32 = arith.constant 0 : i32
    %c0_i32_0 = arith.constant 0 : i32
    %c0_i32_1 = arith.constant 0 : i32
    return %c0_i32, %c0_i32_0 : i32, i32
  }
  func.func @transform_2(%arg0: i32) -> (i32, i32) {
    %c0_i32 = arith.constant 0 : i32
    %c0_i32_0 = arith.constant 0 : i32
    %c0_i32_1 = arith.constant 0 : i32
    return %c0_i32, %c0_i32_0 : i32, i32
  }
  func.func @transform_3(%arg0: i32) -> (i32, i32) {
    %c0_i32 = arith.constant 0 : i32
    %c0_i32_0 = arith.constant 0 : i32
    return %arg0, %c0_i32 : i32, i32
  }
  func.func @transform_4(%arg0: i32) -> (i32, i32) {
    %c0_i32 = arith.constant 0 : i32
    %c0_i32_0 = arith.constant 0 : i32
    return %arg0, %c0_i32 : i32, i32
  }
}

module attributes {stable_mosaic.version = 11 : i64} {
  func.func @_bn_res_spike_kernel(%arg0: i32, %arg1: memref<512x128xf32, #tpu.memory_space<vmem>>, %arg2: memref<1x128xf32, #tpu.memory_space<vmem>>, %arg3: memref<1x128xf32, #tpu.memory_space<vmem>>, %arg4: memref<512x128xf32, #tpu.memory_space<vmem>>, %arg5: memref<512x128xf32, #tpu.memory_space<vmem>>, %arg6: memref<512x128xbf16, #tpu.memory_space<vmem>>) attributes {dimension_semantics = [#tpu.dimension_semantics<parallel>], iteration_bounds = array<i64: 1>, scalar_prefetch = 0 : i64, scratch_operands = 0 : i64, tpu.core_type = #tpu.core_type<tc>, window_params = [{transform_indices = @transform_0, window_bounds = array<i64: 512, 128>}, {pipeline_mode = #tpu.pipeline_mode<synchronous>, transform_indices = @transform_1, window_bounds = array<i64: 1, 128>}, {pipeline_mode = #tpu.pipeline_mode<synchronous>, transform_indices = @transform_2, window_bounds = array<i64: 1, 128>}, {transform_indices = @transform_3, window_bounds = array<i64: 512, 128>}, {transform_indices = @transform_4, window_bounds = array<i64: 512, 128>}, {transform_indices = @transform_5, window_bounds = array<i64: 512, 128>}]} {
    %c0 = arith.constant 0 : index
    %c0_0 = arith.constant 0 : index
    %0 = vector.load %arg1[%c0, %c0_0] : memref<512x128xf32, #tpu.memory_space<vmem>>, vector<512x128xf32>
    %c0_1 = arith.constant 0 : index
    %c0_2 = arith.constant 0 : index
    %1 = vector.load %arg2[%c0_1, %c0_2] : memref<1x128xf32, #tpu.memory_space<vmem>>, vector<1x128xf32>
    %2 = vector.broadcast %1 : vector<1x128xf32> to vector<512x128xf32>
    %3 = arith.mulf %0, %2 : vector<512x128xf32>
    %c0_3 = arith.constant 0 : index
    %c0_4 = arith.constant 0 : index
    %4 = vector.load %arg3[%c0_3, %c0_4] : memref<1x128xf32, #tpu.memory_space<vmem>>, vector<1x128xf32>
    %5 = vector.broadcast %4 : vector<1x128xf32> to vector<512x128xf32>
    %6 = arith.addf %3, %5 : vector<512x128xf32>
    %c0_5 = arith.constant 0 : index
    %c0_6 = arith.constant 0 : index
    %7 = vector.load %arg4[%c0_5, %c0_6] : memref<512x128xf32, #tpu.memory_space<vmem>>, vector<512x128xf32>
    %8 = arith.addf %6, %7 : vector<512x128xf32>
    %c0_7 = arith.constant 0 : index
    %c0_8 = arith.constant 0 : index
    %9 = vector.load %arg5[%c0_7, %c0_8] : memref<512x128xf32, #tpu.memory_space<vmem>>, vector<512x128xf32>
    tpu.vector_store %arg5[%c0_7, %c0_8], %8 {strides = array<i32>} : memref<512x128xf32, #tpu.memory_space<vmem>>, vector<512x128xf32>,
    %cst = arith.constant 0.000000e+00 : f32
    %cst_9 = arith.constant 4.000000e+00 : f32
    %10 = vector.broadcast %cst : f32 to vector<512x128xf32>
    %11 = arith.maximumf %10, %8 : vector<512x128xf32>
    %12 = vector.broadcast %cst_9 : f32 to vector<512x128xf32>
    %13 = arith.minimumf %12, %11 : vector<512x128xf32>
    %cst_10 = arith.constant 5.000000e-01 : f32
    %14 = vector.broadcast %cst_10 : f32 to vector<512x128xf32>
    %15 = arith.addf %13, %14 : vector<512x128xf32>
    %16 = math.floor %15 : vector<512x128xf32>
    %17 = arith.truncf %16 : vector<512x128xf32> to vector<512x128xbf16>
    %c0_11 = arith.constant 0 : index
    %c0_12 = arith.constant 0 : index
    %18 = vector.load %arg6[%c0_11, %c0_12] : memref<512x128xbf16, #tpu.memory_space<vmem>>, vector<512x128xbf16>
    tpu.vector_store %arg6[%c0_11, %c0_12], %17 {strides = array<i32>} : memref<512x128xbf16, #tpu.memory_space<vmem>>, vector<512x128xbf16>,
    return
  }
  func.func @transform_0(%arg0: i32) -> (i32, i32) {
    %c0_i32 = arith.constant 0 : i32
    %c0_i32_0 = arith.constant 0 : i32
    return %arg0, %c0_i32 : i32, i32
  }
  func.func @transform_1(%arg0: i32) -> (i32, i32) {
    %c0_i32 = arith.constant 0 : i32
    %c0_i32_0 = arith.constant 0 : i32
    %c0_i32_1 = arith.constant 0 : i32
    return %c0_i32, %c0_i32_0 : i32, i32
  }
  func.func @transform_2(%arg0: i32) -> (i32, i32) {
    %c0_i32 = arith.constant 0 : i32
    %c0_i32_0 = arith.constant 0 : i32
    %c0_i32_1 = arith.constant 0 : i32
    return %c0_i32, %c0_i32_0 : i32, i32
  }
  func.func @transform_3(%arg0: i32) -> (i32, i32) {
    %c0_i32 = arith.constant 0 : i32
    %c0_i32_0 = arith.constant 0 : i32
    return %arg0, %c0_i32 : i32, i32
  }
  func.func @transform_4(%arg0: i32) -> (i32, i32) {
    %c0_i32 = arith.constant 0 : i32
    %c0_i32_0 = arith.constant 0 : i32
    return %arg0, %c0_i32 : i32, i32
  }
  func.func @transform_5(%arg0: i32) -> (i32, i32) {
    %c0_i32 = arith.constant 0 : i32
    %c0_i32_0 = arith.constant 0 : i32
    return %arg0, %c0_i32 : i32, i32
  }
}

module attributes {stable_mosaic.version = 11 : i64} {
  func.func @_bn_spike_kernel(%arg0: i32, %arg1: memref<512x128xf32, #tpu.memory_space<vmem>>, %arg2: memref<1x128xf32, #tpu.memory_space<vmem>>, %arg3: memref<1x128xf32, #tpu.memory_space<vmem>>, %arg4: memref<512x128xf32, #tpu.memory_space<vmem>>, %arg5: memref<512x128xbf16, #tpu.memory_space<vmem>>) attributes {dimension_semantics = [#tpu.dimension_semantics<parallel>], iteration_bounds = array<i64: 1>, scalar_prefetch = 0 : i64, scratch_operands = 0 : i64, tpu.core_type = #tpu.core_type<tc>, window_params = [{transform_indices = @transform_0, window_bounds = array<i64: 512, 128>}, {pipeline_mode = #tpu.pipeline_mode<synchronous>, transform_indices = @transform_1, window_bounds = array<i64: 1, 128>}, {pipeline_mode = #tpu.pipeline_mode<synchronous>, transform_indices = @transform_2, window_bounds = array<i64: 1, 128>}, {transform_indices = @transform_3, window_bounds = array<i64: 512, 128>}, {transform_indices = @transform_4, window_bounds = array<i64: 512, 128>}]} {
    %c0 = arith.constant 0 : index
    %c0_0 = arith.constant 0 : index
    %0 = vector.load %arg1[%c0, %c0_0] : memref<512x128xf32, #tpu.memory_space<vmem>>, vector<512x128xf32>
    %c0_1 = arith.constant 0 : index
    %c0_2 = arith.constant 0 : index
    %1 = vector.load %arg2[%c0_1, %c0_2] : memref<1x128xf32, #tpu.memory_space<vmem>>, vector<1x128xf32>
    %2 = vector.broadcast %1 : vector<1x128xf32> to vector<512x128xf32>
    %3 = arith.mulf %0, %2 : vector<512x128xf32>
    %c0_3 = arith.constant 0 : index
    %c0_4 = arith.constant 0 : index
    %4 = vector.load %arg3[%c0_3, %c0_4] : memref<1x128xf32, #tpu.memory_space<vmem>>, vector<1x128xf32>
    %5 = vector.broadcast %4 : vector<1x128xf32> to vector<512x128xf32>
    %6 = arith.addf %3, %5 : vector<512x128xf32>
    %c0_5 = arith.constant 0 : index
    %c0_6 = arith.constant 0 : index
    %7 = vector.load %arg4[%c0_5, %c0_6] : memref<512x128xf32, #tpu.memory_space<vmem>>, vector<512x128xf32>
    tpu.vector_store %arg4[%c0_5, %c0_6], %6 {strides = array<i32>} : memref<512x128xf32, #tpu.memory_space<vmem>>, vector<512x128xf32>,
    %cst = arith.constant 0.000000e+00 : f32
    %cst_7 = arith.constant 4.000000e+00 : f32
    %8 = vector.broadcast %cst : f32 to vector<512x128xf32>
    %9 = arith.maximumf %8, %6 : vector<512x128xf32>
    %10 = vector.broadcast %cst_7 : f32 to vector<512x128xf32>
    %11 = arith.minimumf %10, %9 : vector<512x128xf32>
    %cst_8 = arith.constant 5.000000e-01 : f32
    %12 = vector.broadcast %cst_8 : f32 to vector<512x128xf32>
    %13 = arith.addf %11, %12 : vector<512x128xf32>
    %14 = math.floor %13 : vector<512x128xf32>
    %15 = arith.truncf %14 : vector<512x128xf32> to vector<512x128xbf16>
    %c0_9 = arith.constant 0 : index
    %c0_10 = arith.constant 0 : index
    %16 = vector.load %arg5[%c0_9, %c0_10] : memref<512x128xbf16, #tpu.memory_space<vmem>>, vector<512x128xbf16>
    tpu.vector_store %arg5[%c0_9, %c0_10], %15 {strides = array<i32>} : memref<512x128xbf16, #tpu.memory_space<vmem>>, vector<512x128xbf16>,
    return
  }
  func.func @transform_0(%arg0: i32) -> (i32, i32) {
    %c0_i32 = arith.constant 0 : i32
    %c0_i32_0 = arith.constant 0 : i32
    return %arg0, %c0_i32 : i32, i32
  }
  func.func @transform_1(%arg0: i32) -> (i32, i32) {
    %c0_i32 = arith.constant 0 : i32
    %c0_i32_0 = arith.constant 0 : i32
    %c0_i32_1 = arith.constant 0 : i32
    return %c0_i32, %c0_i32_0 : i32, i32
  }
  func.func @transform_2(%arg0: i32) -> (i32, i32) {
    %c0_i32 = arith.constant 0 : i32
    %c0_i32_0 = arith.constant 0 : i32
    %c0_i32_1 = arith.constant 0 : i32
    return %c0_i32, %c0_i32_0 : i32, i32
  }
  func.func @transform_3(%arg0: i32) -> (i32, i32) {
    %c0_i32 = arith.constant 0 : i32
    %c0_i32_0 = arith.constant 0 : i32
    return %arg0, %c0_i32 : i32, i32
  }
  func.func @transform_4(%arg0: i32) -> (i32, i32) {
    %c0_i32 = arith.constant 0 : i32
    %c0_i32_0 = arith.constant 0 : i32
    return %arg0, %c0_i32 : i32, i32
  }
}

module attributes {stable_mosaic.version = 11 : i64} {
  func.func @_bn_res_spike_kernel(%arg0: i32, %arg1: memref<512x128xf32, #tpu.memory_space<vmem>>, %arg2: memref<1x128xf32, #tpu.memory_space<vmem>>, %arg3: memref<1x128xf32, #tpu.memory_space<vmem>>, %arg4: memref<512x128xf32, #tpu.memory_space<vmem>>, %arg5: memref<512x128xf32, #tpu.memory_space<vmem>>, %arg6: memref<512x128xbf16, #tpu.memory_space<vmem>>) attributes {dimension_semantics = [#tpu.dimension_semantics<parallel>], iteration_bounds = array<i64: 1>, scalar_prefetch = 0 : i64, scratch_operands = 0 : i64, tpu.core_type = #tpu.core_type<tc>, window_params = [{transform_indices = @transform_0, window_bounds = array<i64: 512, 128>}, {pipeline_mode = #tpu.pipeline_mode<synchronous>, transform_indices = @transform_1, window_bounds = array<i64: 1, 128>}, {pipeline_mode = #tpu.pipeline_mode<synchronous>, transform_indices = @transform_2, window_bounds = array<i64: 1, 128>}, {transform_indices = @transform_3, window_bounds = array<i64: 512, 128>}, {transform_indices = @transform_4, window_bounds = array<i64: 512, 128>}, {transform_indices = @transform_5, window_bounds = array<i64: 512, 128>}]} {
    %c0 = arith.constant 0 : index
    %c0_0 = arith.constant 0 : index
    %0 = vector.load %arg1[%c0, %c0_0] : memref<512x128xf32, #tpu.memory_space<vmem>>, vector<512x128xf32>
    %c0_1 = arith.constant 0 : index
    %c0_2 = arith.constant 0 : index
    %1 = vector.load %arg2[%c0_1, %c0_2] : memref<1x128xf32, #tpu.memory_space<vmem>>, vector<1x128xf32>
    %2 = vector.broadcast %1 : vector<1x128xf32> to vector<512x128xf32>
    %3 = arith.mulf %0, %2 : vector<512x128xf32>
    %c0_3 = arith.constant 0 : index
    %c0_4 = arith.constant 0 : index
    %4 = vector.load %arg3[%c0_3, %c0_4] : memref<1x128xf32, #tpu.memory_space<vmem>>, vector<1x128xf32>
    %5 = vector.broadcast %4 : vector<1x128xf32> to vector<512x128xf32>
    %6 = arith.addf %3, %5 : vector<512x128xf32>
    %c0_5 = arith.constant 0 : index
    %c0_6 = arith.constant 0 : index
    %7 = vector.load %arg4[%c0_5, %c0_6] : memref<512x128xf32, #tpu.memory_space<vmem>>, vector<512x128xf32>
    %8 = arith.addf %6, %7 : vector<512x128xf32>
    %c0_7 = arith.constant 0 : index
    %c0_8 = arith.constant 0 : index
    %9 = vector.load %arg5[%c0_7, %c0_8] : memref<512x128xf32, #tpu.memory_space<vmem>>, vector<512x128xf32>
    tpu.vector_store %arg5[%c0_7, %c0_8], %8 {strides = array<i32>} : memref<512x128xf32, #tpu.memory_space<vmem>>, vector<512x128xf32>,
    %cst = arith.constant 0.000000e+00 : f32
    %cst_9 = arith.constant 4.000000e+00 : f32
    %10 = vector.broadcast %cst : f32 to vector<512x128xf32>
    %11 = arith.maximumf %10, %8 : vector<512x128xf32>
    %12 = vector.broadcast %cst_9 : f32 to vector<512x128xf32>
    %13 = arith.minimumf %12, %11 : vector<512x128xf32>
    %cst_10 = arith.constant 5.000000e-01 : f32
    %14 = vector.broadcast %cst_10 : f32 to vector<512x128xf32>
    %15 = arith.addf %13, %14 : vector<512x128xf32>
    %16 = math.floor %15 : vector<512x128xf32>
    %17 = arith.truncf %16 : vector<512x128xf32> to vector<512x128xbf16>
    %c0_11 = arith.constant 0 : index
    %c0_12 = arith.constant 0 : index
    %18 = vector.load %arg6[%c0_11, %c0_12] : memref<512x128xbf16, #tpu.memory_space<vmem>>, vector<512x128xbf16>
    tpu.vector_store %arg6[%c0_11, %c0_12], %17 {strides = array<i32>} : memref<512x128xbf16, #tpu.memory_space<vmem>>, vector<512x128xbf16>,
    return
  }
  func.func @transform_0(%arg0: i32) -> (i32, i32) {
    %c0_i32 = arith.constant 0 : i32
    %c0_i32_0 = arith.constant 0 : i32
    return %arg0, %c0_i32 : i32, i32
  }
  func.func @transform_1(%arg0: i32) -> (i32, i32) {
    %c0_i32 = arith.constant 0 : i32
    %c0_i32_0 = arith.constant 0 : i32
    %c0_i32_1 = arith.constant 0 : i32
    return %c0_i32, %c0_i32_0 : i32, i32
  }
  func.func @transform_2(%arg0: i32) -> (i32, i32) {
    %c0_i32 = arith.constant 0 : i32
    %c0_i32_0 = arith.constant 0 : i32
    %c0_i32_1 = arith.constant 0 : i32
    return %c0_i32, %c0_i32_0 : i32, i32
  }
  func.func @transform_3(%arg0: i32) -> (i32, i32) {
    %c0_i32 = arith.constant 0 : i32
    %c0_i32_0 = arith.constant 0 : i32
    return %arg0, %c0_i32 : i32, i32
  }
  func.func @transform_4(%arg0: i32) -> (i32, i32) {
    %c0_i32 = arith.constant 0 : i32
    %c0_i32_0 = arith.constant 0 : i32
    return %arg0, %c0_i32 : i32, i32
  }
  func.func @transform_5(%arg0: i32) -> (i32, i32) {
    %c0_i32 = arith.constant 0 : i32
    %c0_i32_0 = arith.constant 0 : i32
    return %arg0, %c0_i32 : i32, i32
  }
}

</mosaic_0001>

<llo_original>
// kernel: basic_block_forward.9
$region0: #{basic_block_forward.9}
  #allocation0 [shape = 'u32[]', space=smem, size = 0x4, offset = 0x4, fixed_abs, tag = 'smem constant byte address 0x4 - core index']
  #allocation1 [shape = 'u32[144,128]{1,0:T(1,128)}', space=vmem, size = 0x12000, scoped, tag = 'internal scratch']
  %s0 = inlined_call_operand.vmem [shape: f32[512,128], index: 0, kind: input, shape index: {}]
  %s1 = inlined_call_operand.vmem [shape: f32[1,128], index: 1, kind: input, shape index: {}]
  %s2 = inlined_call_operand.vmem [shape: f32[1,128], index: 2, kind: input, shape index: {}]
  %s3 = inlined_call_operand.hbm [shape: f32[512,128], index: 3, kind: output, shape index: {0}]
  %s4 = inlined_call_operand.vmem [shape: bf16[512,128], index: 4, kind: output, shape index: {1}]
  %5 = xla_tuple %s3, %s4
  %s6 = sld [smem:[#allocation0]]
  $region30: #{basic_block_forward.9} parent=0
    _
  %s8 = ssub.s32 1, %s6
  %s9 = scalar_select 0, %s8, %s6
  $region1: #{basic_block_forward.9} parent=0
    #allocation2 [shape = 'u8[262144]{0}', space=vmem, size = 0x40000, scoped, tag = 'output window, operand 0, single buffered']
    #allocation3 [shape = 's32[1]{0}', space=sflag, size = 0x4, scoped, tag = 'scoped memory for basic_block_forward.9']
    %10 = vsyncpa [#allocation3], 0
    // Predicated region
    $region2: #{basic_block_forward.9} parent=1 // pred_check
      _
    $region3: #{basic_block_forward.9} parent=1 // pred_check_branch
      %12 = sbr.rel (0) target = $region5
    $region4: #{basic_block_forward.9} parent=1 // pred_region
      _
    $region5: #{basic_block_forward.9} parent=1 // pred_fallthru
      _
    // Predicated region
    $region6: #{basic_block_forward.9} parent=1 // pred_check
      _
    $region7: #{basic_block_forward.9} parent=1 // pred_check_branch
      %14 = sbr.rel (0) target = $region9
    $region8: #{basic_block_forward.9} parent=1 // pred_region
      _
    $region9: #{basic_block_forward.9} parent=1 // pred_fallthru
      _
    // Predicated region
    $region10: #{basic_block_forward.9} parent=1 // pred_check
      _
    $region11: #{basic_block_forward.9} parent=1 // pred_check_branch
      %16 = sbr.rel (0) target = $region13
    $region12: #{basic_block_forward.9} parent=1 // pred_region
      _
    $region13: #{basic_block_forward.9} parent=1 // pred_fallthru
      _
    %v17 = vld [vmem:[%s0] sm:$0xff]
    %v18 = vld [vmem:[%s0 + $0x8] sm:$0xff]
    %v19 = vld [vmem:[%s0 + $0x10] sm:$0xff]
    %v20 = vld [vmem:[%s0 + $0x18] sm:$0xff]
    %v21 = vld [vmem:[%s0 + $0x20] sm:$0xff]
    %v22 = vld [vmem:[%s0 + $0x28] sm:$0xff]
    %v23 = vld [vmem:[%s0 + $0x30] sm:$0xff]
    %v24 = vld [vmem:[%s0 + $0x38] sm:$0xff]
    %v25 = vld [vmem:[%s0 + $0x40] sm:$0xff]
    %v26 = vld [vmem:[%s0 + $0x48] sm:$0xff]
    %v27 = vld [vmem:[%s0 + $0x50] sm:$0xff]
    %v28 = vld [vmem:[%s0 + $0x58] sm:$0xff]
    %v29 = vld [vmem:[%s0 + $0x60] sm:$0xff]
    %v30 = vld [vmem:[%s0 + $0x68] sm:$0xff]
    %v31 = vld [vmem:[%s0 + $0x70] sm:$0xff]
    %v32 = vld [vmem:[%s0 + $0x78] sm:$0xff]
    %v33 = vld [vmem:[%s0 + $0x80] sm:$0xff]
    %v34 = vld [vmem:[%s0 + $0x88] sm:$0xff]
    %v35 = vld [vmem:[%s0 + $0x90] sm:$0xff]
    %v36 = vld [vmem:[%s0 + $0x98] sm:$0xff]
    %v37 = vld [vmem:[%s0 + $0xa0] sm:$0xff]
    %v38 = vld [vmem:[%s0 + $0xa8] sm:$0xff]
    %v39 = vld [vmem:[%s0 + $0xb0] sm:$0xff]
    %v40 = vld [vmem:[%s0 + $0xb8] sm:$0xff]
    %v41 = vld [vmem:[%s0 + $0xc0] sm:$0xff]
    %v42 = vld [vmem:[%s0 + $0xc8] sm:$0xff]
    %v43 = vld [vmem:[%s0 + $0xd0] sm:$0xff]
    %v44 = vld [vmem:[%s0 + $0xd8] sm:$0xff]
    %v45 = vld [vmem:[%s0 + $0xe0] sm:$0xff]
    %v46 = vld [vmem:[%s0 + $0xe8] sm:$0xff]
    %v47 = vld [vmem:[%s0 + $0xf0] sm:$0xff]
    %v48 = vld [vmem:[%s0 + $0xf8] sm:$0xff]
    %v49 = vld [vmem:[%s0 + $0x100] sm:$0xff]
    %v50 = vld [vmem:[%s0 + $0x108] sm:$0xff]
    %v51 = vld [vmem:[%s0 + $0x110] sm:$0xff]
    %v52 = vld [vmem:[%s0 + $0x118] sm:$0xff]
    %v53 = vld [vmem:[%s0 + $0x120] sm:$0xff]
    %v54 = vld [vmem:[%s0 + $0x128] sm:$0xff]
    %v55 = vld [vmem:[%s0 + $0x130] sm:$0xff]
    %v56 = vld [vmem:[%s0 + $0x138] sm:$0xff]
    %v57 = vld [vmem:[%s0 + $0x140] sm:$0xff]
    %v58 = vld [vmem:[%s0 + $0x148] sm:$0xff]
    %v59 = vld [vmem:[%s0 + $0x150] sm:$0xff]
    %v60 = vld [vmem:[%s0 + $0x158] sm:$0xff]
    %v61 = vld [vmem:[%s0 + $0x160] sm:$0xff]
    %v62 = vld [vmem:[%s0 + $0x168] sm:$0xff]
    %v63 = vld [vmem:[%s0 + $0x170] sm:$0xff]
    %v64 = vld [vmem:[%s0 + $0x178] sm:$0xff]
    %v65 = vld [vmem:[%s0 + $0x180] sm:$0xff]
    %v66 = vld [vmem:[%s0 + $0x188] sm:$0xff]
    %v67 = vld [vmem:[%s0 + $0x190] sm:$0xff]
    %v68 = vld [vmem:[%s0 + $0x198] sm:$0xff]
    %v69 = vld [vmem:[%s0 + $0x1a0] sm:$0xff]
    %v70 = vld [vmem:[%s0 + $0x1a8] sm:$0xff]
    %v71 = vld [vmem:[%s0 + $0x1b0] sm:$0xff]
    %v72 = vld [vmem:[%s0 + $0x1b8] sm:$0xff]
    %v73 = vld [vmem:[%s0 + $0x1c0] sm:$0xff]
    %v74 = vld [vmem:[%s0 + $0x1c8] sm:$0xff]
    %v75 = vld [vmem:[%s0 + $0x1d0] sm:$0xff]
    %v76 = vld [vmem:[%s0 + $0x1d8] sm:$0xff]
    %v77 = vld [vmem:[%s0 + $0x1e0] sm:$0xff]
    %v78 = vld [vmem:[%s0 + $0x1e8] sm:$0xff]
    %v79 = vld [vmem:[%s0 + $0x1f0] sm:$0xff]
    %v80 = vld [vmem:[%s0 + $0x1f8] sm:$0xff]
    %v81 = vld [vmem:[%s1] sm:$0x1]
    %v83 = vlaneseq
    %v84 = vshrl.u32 %v83, 7
    %v85 = vsub.s32 0, %v84
    %v86 = vrot.slane %v81, %v85
    %v88 = vmul.f32 %v17, %v86
    %v89 = vmul.f32 %v18, %v86
    %v90 = vmul.f32 %v19, %v86
    %v91 = vmul.f32 %v20, %v86
    %v92 = vmul.f32 %v21, %v86
    %v93 = vmul.f32 %v22, %v86
    %v94 = vmul.f32 %v23, %v86
    %v95 = vmul.f32 %v24, %v86
    %v96 = vmul.f32 %v25, %v86
    %v97 = vmul.f32 %v26, %v86
    %v98 = vmul.f32 %v27, %v86
    %v99 = vmul.f32 %v28, %v86
    %v100 = vmul.f32 %v29, %v86
    %v101 = vmul.f32 %v30, %v86
    %v102 = vmul.f32 %v31, %v86
    %v103 = vmul.f32 %v32, %v86
    %v104 = vmul.f32 %v33, %v86
    %v105 = vmul.f32 %v34, %v86
    %v106 = vmul.f32 %v35, %v86
    %v107 = vmul.f32 %v36, %v86
    %v108 = vmul.f32 %v37, %v86
    %v109 = vmul.f32 %v38, %v86
    %v110 = vmul.f32 %v39, %v86
    %v111 = vmul.f32 %v40, %v86
    %v112 = vmul.f32 %v41, %v86
    %v113 = vmul.f32 %v42, %v86
    %v114 = vmul.f32 %v43, %v86
    %v115 = vmul.f32 %v44, %v86
    %v116 = vmul.f32 %v45, %v86
    %v117 = vmul.f32 %v46, %v86
    %v118 = vmul.f32 %v47, %v86
    %v119 = vmul.f32 %v48, %v86
    %v120 = vmul.f32 %v49, %v86
    %v121 = vmul.f32 %v50, %v86
    %v122 = vmul.f32 %v51, %v86
    %v123 = vmul.f32 %v52, %v86
    %v124 = vmul.f32 %v53, %v86
    %v125 = vmul.f32 %v54, %v86
    %v126 = vmul.f32 %v55, %v86
    %v127 = vmul.f32 %v56, %v86
    %v128 = vmul.f32 %v57, %v86
    %v129 = vmul.f32 %v58, %v86
    %v130 = vmul.f32 %v59, %v86
    %v131 = vmul.f32 %v60, %v86
    %v132 = vmul.f32 %v61, %v86
    %v133 = vmul.f32 %v62, %v86
    %v134 = vmul.f32 %v63, %v86
    %v135 = vmul.f32 %v64, %v86
    %v136 = vmul.f32 %v65, %v86
    %v137 = vmul.f32 %v66, %v86
    %v138 = vmul.f32 %v67, %v86
    %v139 = vmul.f32 %v68, %v86
    %v140 = vmul.f32 %v69, %v86
    %v141 = vmul.f32 %v70, %v86
    %v142 = vmul.f32 %v71, %v86
    %v143 = vmul.f32 %v72, %v86
    %v144 = vmul.f32 %v73, %v86
    %v145 = vmul.f32 %v74, %v86
    %v146 = vmul.f32 %v75, %v86
    %v147 = vmul.f32 %v76, %v86
    %v148 = vmul.f32 %v77, %v86
    %v149 = vmul.f32 %v78, %v86
    %v150 = vmul.f32 %v79, %v86
    %v151 = vmul.f32 %v80, %v86
    %v152 = vld [vmem:[%s2] sm:$0x1]
    %v154 = vlaneseq
    %v155 = vshrl.u32 %v154, 7
    %v156 = vsub.s32 0, %v155
    %v157 = vrot.slane %v152, %v156
    %v159 = vadd.f32 %v88, %v157
    %v160 = vadd.f32 %v89, %v157
    %v161 = vadd.f32 %v90, %v157
    %v162 = vadd.f32 %v91, %v157
    %v163 = vadd.f32 %v92, %v157
    %v164 = vadd.f32 %v93, %v157
    %v165 = vadd.f32 %v94, %v157
    %v166 = vadd.f32 %v95, %v157
    %v167 = vadd.f32 %v96, %v157
    %v168 = vadd.f32 %v97, %v157
    %v169 = vadd.f32 %v98, %v157
    %v170 = vadd.f32 %v99, %v157
    %v171 = vadd.f32 %v100, %v157
    %v172 = vadd.f32 %v101, %v157
    %v173 = vadd.f32 %v102, %v157
    %v174 = vadd.f32 %v103, %v157
    %v175 = vadd.f32 %v104, %v157
    %v176 = vadd.f32 %v105, %v157
    %v177 = vadd.f32 %v106, %v157
    %v178 = vadd.f32 %v107, %v157
    %v179 = vadd.f32 %v108, %v157
    %v180 = vadd.f32 %v109, %v157
    %v181 = vadd.f32 %v110, %v157
    %v182 = vadd.f32 %v111, %v157
    %v183 = vadd.f32 %v112, %v157
    %v184 = vadd.f32 %v113, %v157
    %v185 = vadd.f32 %v114, %v157
    %v186 = vadd.f32 %v115, %v157
    %v187 = vadd.f32 %v116, %v157
    %v188 = vadd.f32 %v117, %v157
    %v189 = vadd.f32 %v118, %v157
    %v190 = vadd.f32 %v119, %v157
    %v191 = vadd.f32 %v120, %v157
    %v192 = vadd.f32 %v121, %v157
    %v193 = vadd.f32 %v122, %v157
    %v194 = vadd.f32 %v123, %v157
    %v195 = vadd.f32 %v124, %v157
    %v196 = vadd.f32 %v125, %v157
    %v197 = vadd.f32 %v126, %v157
    %v198 = vadd.f32 %v127, %v157
    %v199 = vadd.f32 %v128, %v157
    %v200 = vadd.f32 %v129, %v157
    %v201 = vadd.f32 %v130, %v157
    %v202 = vadd.f32 %v131, %v157
    %v203 = vadd.f32 %v132, %v157
    %v204 = vadd.f32 %v133, %v157
    %v205 = vadd.f32 %v134, %v157
    %v206 = vadd.f32 %v135, %v157
    %v207 = vadd.f32 %v136, %v157
    %v208 = vadd.f32 %v137, %v157
    %v209 = vadd.f32 %v138, %v157
    %v210 = vadd.f32 %v139, %v157
    %v211 = vadd.f32 %v140, %v157
    %v212 = vadd.f32 %v141, %v157
    %v213 = vadd.f32 %v142, %v157
    %v214 = vadd.f32 %v143, %v157
    %v215 = vadd.f32 %v144, %v157
    %v216 = vadd.f32 %v145, %v157
    %v217 = vadd.f32 %v146, %v157
    %v218 = vadd.f32 %v147, %v157
    %v219 = vadd.f32 %v148, %v157
    %v220 = vadd.f32 %v149, %v157
    %v221 = vadd.f32 %v150, %v157
    %v222 = vadd.f32 %v151, %v157
    %223 = vst [vmem:[#allocation2] sm:$0xff] %v159
    %224 = vst [vmem:[#allocation2 + $0x8] sm:$0xff] %v160
    %225 = vst [vmem:[#allocation2 + $0x10] sm:$0xff] %v161
    %226 = vst [vmem:[#allocation2 + $0x18] sm:$0xff] %v162
    %227 = vst [vmem:[#allocation2 + $0x20] sm:$0xff] %v163
    %228 = vst [vmem:[#allocation2 + $0x28] sm:$0xff] %v164
    %229 = vst [vmem:[#allocation2 + $0x30] sm:$0xff] %v165
    %230 = vst [vmem:[#allocation2 + $0x38] sm:$0xff] %v166
    %231 = vst [vmem:[#allocation2 + $0x40] sm:$0xff] %v167
    %232 = vst [vmem:[#allocation2 + $0x48] sm:$0xff] %v168
    %233 = vst [vmem:[#allocation2 + $0x50] sm:$0xff] %v169
    %234 = vst [vmem:[#allocation2 + $0x58] sm:$0xff] %v170
    %235 = vst [vmem:[#allocation2 + $0x60] sm:$0xff] %v171
    %236 = vst [vmem:[#allocation2 + $0x68] sm:$0xff] %v172
    %237 = vst [vmem:[#allocation2 + $0x70] sm:$0xff] %v173
    %238 = vst [vmem:[#allocation2 + $0x78] sm:$0xff] %v174
    %239 = vst [vmem:[#allocation2 + $0x80] sm:$0xff] %v175
    %240 = vst [vmem:[#allocation2 + $0x88] sm:$0xff] %v176
    %241 = vst [vmem:[#allocation2 + $0x90] sm:$0xff] %v177
    %242 = vst [vmem:[#allocation2 + $0x98] sm:$0xff] %v178
    %243 = vst [vmem:[#allocation2 + $0xa0] sm:$0xff] %v179
    %244 = vst [vmem:[#allocation2 + $0xa8] sm:$0xff] %v180
    %245 = vst [vmem:[#allocation2 + $0xb0] sm:$0xff] %v181
    %246 = vst [vmem:[#allocation2 + $0xb8] sm:$0xff] %v182
    %247 = vst [vmem:[#allocation2 + $0xc0] sm:$0xff] %v183
    %248 = vst [vmem:[#allocation2 + $0xc8] sm:$0xff] %v184
    %249 = vst [vmem:[#allocation2 + $0xd0] sm:$0xff] %v185
    %250 = vst [vmem:[#allocation2 + $0xd8] sm:$0xff] %v186
    %251 = vst [vmem:[#allocation2 + $0xe0] sm:$0xff] %v187
    %252 = vst [vmem:[#allocation2 + $0xe8] sm:$0xff] %v188
    %253 = vst [vmem:[#allocation2 + $0xf0] sm:$0xff] %v189
    %254 = vst [vmem:[#allocation2 + $0xf8] sm:$0xff] %v190
    %255 = vst [vmem:[#allocation2 + $0x100] sm:$0xff] %v191
    %256 = vst [vmem:[#allocation2 + $0x108] sm:$0xff] %v192
    %257 = vst [vmem:[#allocation2 + $0x110] sm:$0xff] %v193
    %258 = vst [vmem:[#allocation2 + $0x118] sm:$0xff] %v194
    %259 = vst [vmem:[#allocation2 + $0x120] sm:$0xff] %v195
    %260 = vst [vmem:[#allocation2 + $0x128] sm:$0xff] %v196
    %261 = vst [vmem:[#allocation2 + $0x130] sm:$0xff] %v197
    %262 = vst [vmem:[#allocation2 + $0x138] sm:$0xff] %v198
    %263 = vst [vmem:[#allocation2 + $0x140] sm:$0xff] %v199
    %264 = vst [vmem:[#allocation2 + $0x148] sm:$0xff] %v200
    %265 = vst [vmem:[#allocation2 + $0x150] sm:$0xff] %v201
    %266 = vst [vmem:[#allocation2 + $0x158] sm:$0xff] %v202
    %267 = vst [vmem:[#allocation2 + $0x160] sm:$0xff] %v203
    %268 = vst [vmem:[#allocation2 + $0x168] sm:$0xff] %v204
    %269 = vst [vmem:[#allocation2 + $0x170] sm:$0xff] %v205
    %270 = vst [vmem:[#allocation2 + $0x178] sm:$0xff] %v206
    %271 = vst [vmem:[#allocation2 + $0x180] sm:$0xff] %v207
    %272 = vst [vmem:[#allocation2 + $0x188] sm:$0xff] %v208
    %273 = vst [vmem:[#allocation2 + $0x190] sm:$0xff] %v209
    %274 = vst [vmem:[#allocation2 + $0x198] sm:$0xff] %v210
    %275 = vst [vmem:[#allocation2 + $0x1a0] sm:$0xff] %v211
    %276 = vst [vmem:[#allocation2 + $0x1a8] sm:$0xff] %v212
    %277 = vst [vmem:[#allocation2 + $0x1b0] sm:$0xff] %v213
    %278 = vst [vmem:[#allocation2 + $0x1b8] sm:$0xff] %v214
    %279 = vst [vmem:[#allocation2 + $0x1c0] sm:$0xff] %v215
    %280 = vst [vmem:[#allocation2 + $0x1c8] sm:$0xff] %v216
    %281 = vst [vmem:[#allocation2 + $0x1d0] sm:$0xff] %v217
    %282 = vst [vmem:[#allocation2 + $0x1d8] sm:$0xff] %v218
    %283 = vst [vmem:[#allocation2 + $0x1e0] sm:$0xff] %v219
    %284 = vst [vmem:[#allocation2 + $0x1e8] sm:$0xff] %v220
    %285 = vst [vmem:[#allocation2 + $0x1f0] sm:$0xff] %v221
    %286 = vst [vmem:[#allocation2 + $0x1f8] sm:$0xff] %v222
    %v287 = vmax.f32 %v159, 0.0
    %v288 = vmax.f32 %v160, 0.0
    %v289 = vmax.f32 %v161, 0.0
    %v290 = vmax.f32 %v162, 0.0
    %v291 = vmax.f32 %v163, 0.0
    %v292 = vmax.f32 %v164, 0.0
    %v293 = vmax.f32 %v165, 0.0
    %v294 = vmax.f32 %v166, 0.0
    %v295 = vmax.f32 %v167, 0.0
    %v296 = vmax.f32 %v168, 0.0
    %v297 = vmax.f32 %v169, 0.0
    %v298 = vmax.f32 %v170, 0.0
    %v299 = vmax.f32 %v171, 0.0
    %v300 = vmax.f32 %v172, 0.0
    %v301 = vmax.f32 %v173, 0.0
    %v302 = vmax.f32 %v174, 0.0
    %v303 = vmax.f32 %v175, 0.0
    %v304 = vmax.f32 %v176, 0.0
    %v305 = vmax.f32 %v177, 0.0
    %v306 = vmax.f32 %v178, 0.0
    %v307 = vmax.f32 %v179, 0.0
    %v308 = vmax.f32 %v180, 0.0
    %v309 = vmax.f32 %v181, 0.0
    %v310 = vmax.f32 %v182, 0.0
    %v311 = vmax.f32 %v183, 0.0
    %v312 = vmax.f32 %v184, 0.0
    %v313 = vmax.f32 %v185, 0.0
    %v314 = vmax.f32 %v186, 0.0
    %v315 = vmax.f32 %v187, 0.0
    %v316 = vmax.f32 %v188, 0.0
    %v317 = vmax.f32 %v189, 0.0
    %v318 = vmax.f32 %v190, 0.0
    %v319 = vmax.f32 %v191, 0.0
    %v320 = vmax.f32 %v192, 0.0
    %v321 = vmax.f32 %v193, 0.0
    %v322 = vmax.f32 %v194, 0.0
    %v323 = vmax.f32 %v195, 0.0
    %v324 = vmax.f32 %v196, 0.0
    %v325 = vmax.f32 %v197, 0.0
    %v326 = vmax.f32 %v198, 0.0
    %v327 = vmax.f32 %v199, 0.0
    %v328 = vmax.f32 %v200, 0.0
    %v329 = vmax.f32 %v201, 0.0
    %v330 = vmax.f32 %v202, 0.0
    %v331 = vmax.f32 %v203, 0.0
    %v332 = vmax.f32 %v204, 0.0
    %v333 = vmax.f32 %v205, 0.0
    %v334 = vmax.f32 %v206, 0.0
    %v335 = vmax.f32 %v207, 0.0
    %v336 = vmax.f32 %v208, 0.0
    %v337 = vmax.f32 %v209, 0.0
    %v338 = vmax.f32 %v210, 0.0
    %v339 = vmax.f32 %v211, 0.0
    %v340 = vmax.f32 %v212, 0.0
    %v341 = vmax.f32 %v213, 0.0
    %v342 = vmax.f32 %v214, 0.0
    %v343 = vmax.f32 %v215, 0.0
    %v344 = vmax.f32 %v216, 0.0
    %v345 = vmax.f32 %v217, 0.0
    %v346 = vmax.f32 %v218, 0.0
    %v347 = vmax.f32 %v219, 0.0
    %v348 = vmax.f32 %v220, 0.0
    %v349 = vmax.f32 %v221, 0.0
    %v350 = vmax.f32 %v222, 0.0
    %v351 = vmin.f32 %v287, 4.0
    %v352 = vmin.f32 %v288, 4.0
    %v353 = vmin.f32 %v289, 4.0
    %v354 = vmin.f32 %v290, 4.0
    %v355 = vmin.f32 %v291, 4.0
    %v356 = vmin.f32 %v292, 4.0
    %v357 = vmin.f32 %v293, 4.0
    %v358 = vmin.f32 %v294, 4.0
    %v359 = vmin.f32 %v295, 4.0
    %v360 = vmin.f32 %v296, 4.0
    %v361 = vmin.f32 %v297, 4.0
    %v362 = vmin.f32 %v298, 4.0
    %v363 = vmin.f32 %v299, 4.0
    %v364 = vmin.f32 %v300, 4.0
    %v365 = vmin.f32 %v301, 4.0
    %v366 = vmin.f32 %v302, 4.0
    %v367 = vmin.f32 %v303, 4.0
    %v368 = vmin.f32 %v304, 4.0
    %v369 = vmin.f32 %v305, 4.0
    %v370 = vmin.f32 %v306, 4.0
    %v371 = vmin.f32 %v307, 4.0
    %v372 = vmin.f32 %v308, 4.0
    %v373 = vmin.f32 %v309, 4.0
    %v374 = vmin.f32 %v310, 4.0
    %v375 = vmin.f32 %v311, 4.0
    %v376 = vmin.f32 %v312, 4.0
    %v377 = vmin.f32 %v313, 4.0
    %v378 = vmin.f32 %v314, 4.0
    %v379 = vmin.f32 %v315, 4.0
    %v380 = vmin.f32 %v316, 4.0
    %v381 = vmin.f32 %v317, 4.0
    %v382 = vmin.f32 %v318, 4.0
    %v383 = vmin.f32 %v319, 4.0
    %v384 = vmin.f32 %v320, 4.0
    %v385 = vmin.f32 %v321, 4.0
    %v386 = vmin.f32 %v322, 4.0
    %v387 = vmin.f32 %v323, 4.0
    %v388 = vmin.f32 %v324, 4.0
    %v389 = vmin.f32 %v325, 4.0
    %v390 = vmin.f32 %v326, 4.0
    %v391 = vmin.f32 %v327, 4.0
    %v392 = vmin.f32 %v328, 4.0
    %v393 = vmin.f32 %v329, 4.0
    %v394 = vmin.f32 %v330, 4.0
    %v395 = vmin.f32 %v331, 4.0
    %v396 = vmin.f32 %v332, 4.0
    %v397 = vmin.f32 %v333, 4.0
    %v398 = vmin.f32 %v334, 4.0
    %v399 = vmin.f32 %v335, 4.0
    %v400 = vmin.f32 %v336, 4.0
    %v401 = vmin.f32 %v337, 4.0
    %v402 = vmin.f32 %v338, 4.0
    %v403 = vmin.f32 %v339, 4.0
    %v404 = vmin.f32 %v340, 4.0
    %v405 = vmin.f32 %v341, 4.0
    %v406 = vmin.f32 %v342, 4.0
    %v407 = vmin.f32 %v343, 4.0
    %v408 = vmin.f32 %v344, 4.0
    %v409 = vmin.f32 %v345, 4.0
    %v410 = vmin.f32 %v346, 4.0
    %v411 = vmin.f32 %v347, 4.0
    %v412 = vmin.f32 %v348, 4.0
    %v413 = vmin.f32 %v349, 4.0
    %v414 = vmin.f32 %v350, 4.0
    %v415 = vadd.f32 %v351, 0.5
    %v416 = vadd.f32 %v352, 0.5
    %v417 = vadd.f32 %v353, 0.5
    %v418 = vadd.f32 %v354, 0.5
    %v419 = vadd.f32 %v355, 0.5
    %v420 = vadd.f32 %v356, 0.5
    %v421 = vadd.f32 %v357, 0.5
    %v422 = vadd.f32 %v358, 0.5
    %v423 = vadd.f32 %v359, 0.5
    %v424 = vadd.f32 %v360, 0.5
    %v425 = vadd.f32 %v361, 0.5
    %v426 = vadd.f32 %v362, 0.5
    %v427 = vadd.f32 %v363, 0.5
    %v428 = vadd.f32 %v364, 0.5
    %v429 = vadd.f32 %v365, 0.5
    %v430 = vadd.f32 %v366, 0.5
    %v431 = vadd.f32 %v367, 0.5
    %v432 = vadd.f32 %v368, 0.5
    %v433 = vadd.f32 %v369, 0.5
    %v434 = vadd.f32 %v370, 0.5
    %v435 = vadd.f32 %v371, 0.5
    %v436 = vadd.f32 %v372, 0.5
    %v437 = vadd.f32 %v373, 0.5
    %v438 = vadd.f32 %v374, 0.5
    %v439 = vadd.f32 %v375, 0.5
    %v440 = vadd.f32 %v376, 0.5
    %v441 = vadd.f32 %v377, 0.5
    %v442 = vadd.f32 %v378, 0.5
    %v443 = vadd.f32 %v379, 0.5
    %v444 = vadd.f32 %v380, 0.5
    %v445 = vadd.f32 %v381, 0.5
    %v446 = vadd.f32 %v382, 0.5
    %v447 = vadd.f32 %v383, 0.5
    %v448 = vadd.f32 %v384, 0.5
    %v449 = vadd.f32 %v385, 0.5
    %v450 = vadd.f32 %v386, 0.5
    %v451 = vadd.f32 %v387, 0.5
    %v452 = vadd.f32 %v388, 0.5
    %v453 = vadd.f32 %v389, 0.5
    %v454 = vadd.f32 %v390, 0.5
    %v455 = vadd.f32 %v391, 0.5
    %v456 = vadd.f32 %v392, 0.5
    %v457 = vadd.f32 %v393, 0.5
    %v458 = vadd.f32 %v394, 0.5
    %v459 = vadd.f32 %v395, 0.5
    %v460 = vadd.f32 %v396, 0.5
    %v461 = vadd.f32 %v397, 0.5
    %v462 = vadd.f32 %v398, 0.5
    %v463 = vadd.f32 %v399, 0.5
    %v464 = vadd.f32 %v400, 0.5
    %v465 = vadd.f32 %v401, 0.5
    %v466 = vadd.f32 %v402, 0.5
    %v467 = vadd.f32 %v403, 0.5
    %v468 = vadd.f32 %v404, 0.5
    %v469 = vadd.f32 %v405, 0.5
    %v470 = vadd.f32 %v406, 0.5
    %v471 = vadd.f32 %v407, 0.5
    %v472 = vadd.f32 %v408, 0.5
    %v473 = vadd.f32 %v409, 0.5
    %v474 = vadd.f32 %v410, 0.5
    %v475 = vadd.f32 %v411, 0.5
    %v476 = vadd.f32 %v412, 0.5
    %v477 = vadd.f32 %v413, 0.5
    %v478 = vadd.f32 %v414, 0.5
    %v479 = vfloor.f32 %v415
    %v480 = vfloor.f32 %v416
    %v481 = vfloor.f32 %v417
    %v482 = vfloor.f32 %v418
    %v483 = vfloor.f32 %v419
    %v484 = vfloor.f32 %v420
    %v485 = vfloor.f32 %v421
    %v486 = vfloor.f32 %v422
    %v487 = vfloor.f32 %v423
    %v488 = vfloor.f32 %v424
    %v489 = vfloor.f32 %v425
    %v490 = vfloor.f32 %v426
    %v491 = vfloor.f32 %v427
    %v492 = vfloor.f32 %v428
    %v493 = vfloor.f32 %v429
    %v494 = vfloor.f32 %v430
    %v495 = vfloor.f32 %v431
    %v496 = vfloor.f32 %v432
    %v497 = vfloor.f32 %v433
    %v498 = vfloor.f32 %v434
    %v499 = vfloor.f32 %v435
    %v500 = vfloor.f32 %v436
    %v501 = vfloor.f32 %v437
    %v502 = vfloor.f32 %v438
    %v503 = vfloor.f32 %v439
    %v504 = vfloor.f32 %v440
    %v505 = vfloor.f32 %v441
    %v506 = vfloor.f32 %v442
    %v507 = vfloor.f32 %v443
    %v508 = vfloor.f32 %v444
    %v509 = vfloor.f32 %v445
    %v510 = vfloor.f32 %v446
    %v511 = vfloor.f32 %v447
    %v512 = vfloor.f32 %v448
    %v513 = vfloor.f32 %v449
    %v514 = vfloor.f32 %v450
    %v515 = vfloor.f32 %v451
    %v516 = vfloor.f32 %v452
    %v517 = vfloor.f32 %v453
    %v518 = vfloor.f32 %v454
    %v519 = vfloor.f32 %v455
    %v520 = vfloor.f32 %v456
    %v521 = vfloor.f32 %v457
    %v522 = vfloor.f32 %v458
    %v523 = vfloor.f32 %v459
    %v524 = vfloor.f32 %v460
    %v525 = vfloor.f32 %v461
    %v526 = vfloor.f32 %v462
    %v527 = vfloor.f32 %v463
    %v528 = vfloor.f32 %v464
    %v529 = vfloor.f32 %v465
    %v530 = vfloor.f32 %v466
    %v531 = vfloor.f32 %v467
    %v532 = vfloor.f32 %v468
    %v533 = vfloor.f32 %v469
    %v534 = vfloor.f32 %v470
    %v535 = vfloor.f32 %v471
    %v536 = vfloor.f32 %v472
    %v537 = vfloor.f32 %v473
    %v538 = vfloor.f32 %v474
    %v539 = vfloor.f32 %v475
    %v540 = vfloor.f32 %v476
    %v541 = vfloor.f32 %v477
    %v542 = vfloor.f32 %v478
    %v543 = vpack.c.bf16 %v480, %v479
    %v544 = vpack.c.bf16 %v482, %v481
    %v545 = vpack.c.bf16 %v484, %v483
    %v546 = vpack.c.bf16 %v486, %v485
    %v547 = vpack.c.bf16 %v488, %v487
    %v548 = vpack.c.bf16 %v490, %v489
    %v549 = vpack.c.bf16 %v492, %v491
    %v550 = vpack.c.bf16 %v494, %v493
    %v551 = vpack.c.bf16 %v496, %v495
    %v552 = vpack.c.bf16 %v498, %v497
    %v553 = vpack.c.bf16 %v500, %v499
    %v554 = vpack.c.bf16 %v502, %v501
    %v555 = vpack.c.bf16 %v504, %v503
    %v556 = vpack.c.bf16 %v506, %v505
    %v557 = vpack.c.bf16 %v508, %v507
    %v558 = vpack.c.bf16 %v510, %v509
    %v559 = vpack.c.bf16 %v512, %v511
    %v560 = vpack.c.bf16 %v514, %v513
    %v561 = vpack.c.bf16 %v516, %v515
    %v562 = vpack.c.bf16 %v518, %v517
    %v563 = vpack.c.bf16 %v520, %v519
    %v564 = vpack.c.bf16 %v522, %v521
    %v565 = vpack.c.bf16 %v524, %v523
    %v566 = vpack.c.bf16 %v526, %v525
    %v567 = vpack.c.bf16 %v528, %v527
    %v568 = vpack.c.bf16 %v530, %v529
    %v569 = vpack.c.bf16 %v532, %v531
    %v570 = vpack.c.bf16 %v534, %v533
    %v571 = vpack.c.bf16 %v536, %v535
    %v572 = vpack.c.bf16 %v538, %v537
    %v573 = vpack.c.bf16 %v540, %v539
    %v574 = vpack.c.bf16 %v542, %v541
    %v607 = vunpack.c.l.b16 %v543
    %v608 = vunpack.c.h.b16 %v543
    %v609 = vunpack.c.l.b16 %v544
    %v610 = vunpack.c.h.b16 %v544
    %v611 = vunpack.c.l.b16 %v545
    %v612 = vunpack.c.h.b16 %v545
    %v613 = vunpack.c.l.b16 %v546
    %v614 = vunpack.c.h.b16 %v546
    %v615 = vunpack.c.l.b16 %v547
    %v616 = vunpack.c.h.b16 %v547
    %v617 = vunpack.c.l.b16 %v548
    %v618 = vunpack.c.h.b16 %v548
    %v619 = vunpack.c.l.b16 %v549
    %v620 = vunpack.c.h.b16 %v549
    %v621 = vunpack.c.l.b16 %v550
    %v622 = vunpack.c.h.b16 %v550
    %v623 = vunpack.c.l.b16 %v551
    %v624 = vunpack.c.h.b16 %v551
    %v625 = vunpack.c.l.b16 %v552
    %v626 = vunpack.c.h.b16 %v552
    %v627 = vunpack.c.l.b16 %v553
    %v628 = vunpack.c.h.b16 %v553
    %v629 = vunpack.c.l.b16 %v554
    %v630 = vunpack.c.h.b16 %v554
    %v631 = vunpack.c.l.b16 %v555
    %v632 = vunpack.c.h.b16 %v555
    %v633 = vunpack.c.l.b16 %v556
    %v634 = vunpack.c.h.b16 %v556
    %v635 = vunpack.c.l.b16 %v557
    %v636 = vunpack.c.h.b16 %v557
    %v637 = vunpack.c.l.b16 %v558
    %v638 = vunpack.c.h.b16 %v558
    %v639 = vunpack.c.l.b16 %v559
    %v640 = vunpack.c.h.b16 %v559
    %v641 = vunpack.c.l.b16 %v560
    %v642 = vunpack.c.h.b16 %v560
    %v643 = vunpack.c.l.b16 %v561
    %v644 = vunpack.c.h.b16 %v561
    %v645 = vunpack.c.l.b16 %v562
    %v646 = vunpack.c.h.b16 %v562
    %v647 = vunpack.c.l.b16 %v563
    %v648 = vunpack.c.h.b16 %v563
    %v649 = vunpack.c.l.b16 %v564
    %v650 = vunpack.c.h.b16 %v564
    %v651 = vunpack.c.l.b16 %v565
    %v652 = vunpack.c.h.b16 %v565
    %v653 = vunpack.c.l.b16 %v566
    %v654 = vunpack.c.h.b16 %v566
    %v655 = vunpack.c.l.b16 %v567
    %v656 = vunpack.c.h.b16 %v567
    %v657 = vunpack.c.l.b16 %v568
    %v658 = vunpack.c.h.b16 %v568
    %v659 = vunpack.c.l.b16 %v569
    %v660 = vunpack.c.h.b16 %v569
    %v661 = vunpack.c.l.b16 %v570
    %v662 = vunpack.c.h.b16 %v570
    %v663 = vunpack.c.l.b16 %v571
    %v664 = vunpack.c.h.b16 %v571
    %v665 = vunpack.c.l.b16 %v572
    %v666 = vunpack.c.h.b16 %v572
    %v667 = vunpack.c.l.b16 %v573
    %v668 = vunpack.c.h.b16 %v573
    %v669 = vunpack.c.l.b16 %v574
    %v670 = vunpack.c.h.b16 %v574
    %v671 = vpack.c.b16 %v607, %v607
    %v672 = vpack.c.b16 %v608, %v608
    %v673 = vpack.c.b16 %v609, %v609
    %v674 = vpack.c.b16 %v610, %v610
    %v675 = vpack.c.b16 %v611, %v611
    %v676 = vpack.c.b16 %v612, %v612
    %v677 = vpack.c.b16 %v613, %v613
    %v678 = vpack.c.b16 %v614, %v614
    %v679 = vpack.c.b16 %v615, %v615
    %v680 = vpack.c.b16 %v616, %v616
    %v681 = vpack.c.b16 %v617, %v617
    %v682 = vpack.c.b16 %v618, %v618
    %v683 = vpack.c.b16 %v619, %v619
    %v684 = vpack.c.b16 %v620, %v620
    %v685 = vpack.c.b16 %v621, %v621
    %v686 = vpack.c.b16 %v622, %v622
    %v687 = vpack.c.b16 %v623, %v623
    %v688 = vpack.c.b16 %v624, %v624
    %v689 = vpack.c.b16 %v625, %v625
    %v690 = vpack.c.b16 %v626, %v626
    %v691 = vpack.c.b16 %v627, %v627
    %v692 = vpack.c.b16 %v628, %v628
    %v693 = vpack.c.b16 %v629, %v629
    %v694 = vpack.c.b16 %v630, %v630
    %v695 = vpack.c.b16 %v631, %v631
    %v696 = vpack.c.b16 %v632, %v632
    %v697 = vpack.c.b16 %v633, %v633
    %v698 = vpack.c.b16 %v634, %v634
    %v699 = vpack.c.b16 %v635, %v635
    %v700 = vpack.c.b16 %v636, %v636
    %v701 = vpack.c.b16 %v637, %v637
    %v702 = vpack.c.b16 %v638, %v638
    %v703 = vpack.c.b16 %v639, %v639
    %v704 = vpack.c.b16 %v640, %v640
    %v705 = vpack.c.b16 %v641, %v641
    %v706 = vpack.c.b16 %v642, %v642
    %v707 = vpack.c.b16 %v643, %v643
    %v708 = vpack.c.b16 %v644, %v644
    %v709 = vpack.c.b16 %v645, %v645
    %v710 = vpack.c.b16 %v646, %v646
    %v711 = vpack.c.b16 %v647, %v647
    %v712 = vpack.c.b16 %v648, %v648
    %v713 = vpack.c.b16 %v649, %v649
    %v714 = vpack.c.b16 %v650, %v650
    %v715 = vpack.c.b16 %v651, %v651
    %v716 = vpack.c.b16 %v652, %v652
    %v717 = vpack.c.b16 %v653, %v653
    %v718 = vpack.c.b16 %v654, %v654
    %v719 = vpack.c.b16 %v655, %v655
    %v720 = vpack.c.b16 %v656, %v656
    %v721 = vpack.c.b16 %v657, %v657
    %v722 = vpack.c.b16 %v658, %v658
    %v723 = vpack.c.b16 %v659, %v659
    %v724 = vpack.c.b16 %v660, %v660
    %v725 = vpack.c.b16 %v661, %v661
    %v726 = vpack.c.b16 %v662, %v662
    %v727 = vpack.c.b16 %v663, %v663
    %v728 = vpack.c.b16 %v664, %v664
    %v729 = vpack.c.b16 %v665, %v665
    %v730 = vpack.c.b16 %v666, %v666
    %v731 = vpack.c.b16 %v667, %v667
    %v732 = vpack.c.b16 %v668, %v668
    %v733 = vpack.c.b16 %v669, %v669
    %v734 = vpack.c.b16 %v670, %v670
    %799 = vst [vmem:[%s4] sm:$0xf] %v671
    %800 = vst [vmem:[%s4 + $0x4] sm:$0xf] %v672
    %801 = vst [vmem:[%s4 + $0x8] sm:$0xf] %v673
    %802 = vst [vmem:[%s4 + $0xc] sm:$0xf] %v674
    %803 = vst [vmem:[%s4 + $0x10] sm:$0xf] %v675
    %804 = vst [vmem:[%s4 + $0x14] sm:$0xf] %v676
    %805 = vst [vmem:[%s4 + $0x18] sm:$0xf] %v677
    %806 = vst [vmem:[%s4 + $0x1c] sm:$0xf] %v678
    %807 = vst [vmem:[%s4 + $0x20] sm:$0xf] %v679
    %808 = vst [vmem:[%s4 + $0x24] sm:$0xf] %v680
    %809 = vst [vmem:[%s4 + $0x28] sm:$0xf] %v681
    %810 = vst [vmem:[%s4 + $0x2c] sm:$0xf] %v682
    %811 = vst [vmem:[%s4 + $0x30] sm:$0xf] %v683
    %812 = vst [vmem:[%s4 + $0x34] sm:$0xf] %v684
    %813 = vst [vmem:[%s4 + $0x38] sm:$0xf] %v685
    %814 = vst [vmem:[%s4 + $0x3c] sm:$0xf] %v686
    %815 = vst [vmem:[%s4 + $0x40] sm:$0xf] %v687
    %816 = vst [vmem:[%s4 + $0x44] sm:$0xf] %v688
    %817 = vst [vmem:[%s4 + $0x48] sm:$0xf] %v689
    %818 = vst [vmem:[%s4 + $0x4c] sm:$0xf] %v690
    %819 = vst [vmem:[%s4 + $0x50] sm:$0xf] %v691
    %820 = vst [vmem:[%s4 + $0x54] sm:$0xf] %v692
    %821 = vst [vmem:[%s4 + $0x58] sm:$0xf] %v693
    %822 = vst [vmem:[%s4 + $0x5c] sm:$0xf] %v694
    %823 = vst [vmem:[%s4 + $0x60] sm:$0xf] %v695
    %824 = vst [vmem:[%s4 + $0x64] sm:$0xf] %v696
    %825 = vst [vmem:[%s4 + $0x68] sm:$0xf] %v697
    %826 = vst [vmem:[%s4 + $0x6c] sm:$0xf] %v698
    %827 = vst [vmem:[%s4 + $0x70] sm:$0xf] %v699
    %828 = vst [vmem:[%s4 + $0x74] sm:$0xf] %v700
    %829 = vst [vmem:[%s4 + $0x78] sm:$0xf] %v701
    %830 = vst [vmem:[%s4 + $0x7c] sm:$0xf] %v702
    %831 = vst [vmem:[%s4 + $0x80] sm:$0xf] %v703
    %832 = vst [vmem:[%s4 + $0x84] sm:$0xf] %v704
    %833 = vst [vmem:[%s4 + $0x88] sm:$0xf] %v705
    %834 = vst [vmem:[%s4 + $0x8c] sm:$0xf] %v706
    %835 = vst [vmem:[%s4 + $0x90] sm:$0xf] %v707
    %836 = vst [vmem:[%s4 + $0x94] sm:$0xf] %v708
    %837 = vst [vmem:[%s4 + $0x98] sm:$0xf] %v709
    %838 = vst [vmem:[%s4 + $0x9c] sm:$0xf] %v710
    %839 = vst [vmem:[%s4 + $0xa0] sm:$0xf] %v711
    %840 = vst [vmem:[%s4 + $0xa4] sm:$0xf] %v712
    %841 = vst [vmem:[%s4 + $0xa8] sm:$0xf] %v713
    %842 = vst [vmem:[%s4 + $0xac] sm:$0xf] %v714
    %843 = vst [vmem:[%s4 + $0xb0] sm:$0xf] %v715
    %844 = vst [vmem:[%s4 + $0xb4] sm:$0xf] %v716
    %845 = vst [vmem:[%s4 + $0xb8] sm:$0xf] %v717
    %846 = vst [vmem:[%s4 + $0xbc] sm:$0xf] %v718
    %847 = vst [vmem:[%s4 + $0xc0] sm:$0xf] %v719
    %848 = vst [vmem:[%s4 + $0xc4] sm:$0xf] %v720
    %849 = vst [vmem:[%s4 + $0xc8] sm:$0xf] %v721
    %850 = vst [vmem:[%s4 + $0xcc] sm:$0xf] %v722
    %851 = vst [vmem:[%s4 + $0xd0] sm:$0xf] %v723
    %852 = vst [vmem:[%s4 + $0xd4] sm:$0xf] %v724
    %853 = vst [vmem:[%s4 + $0xd8] sm:$0xf] %v725
    %854 = vst [vmem:[%s4 + $0xdc] sm:$0xf] %v726
    %855 = vst [vmem:[%s4 + $0xe0] sm:$0xf] %v727
    %856 = vst [vmem:[%s4 + $0xe4] sm:$0xf] %v728
    %857 = vst [vmem:[%s4 + $0xe8] sm:$0xf] %v729
    %858 = vst [vmem:[%s4 + $0xec] sm:$0xf] %v730
    %859 = vst [vmem:[%s4 + $0xf0] sm:$0xf] %v731
    %860 = vst [vmem:[%s4 + $0xf4] sm:$0xf] %v732
    %861 = vst [vmem:[%s4 + $0xf8] sm:$0xf] %v733
    %862 = vst [vmem:[%s4 + $0xfc] sm:$0xf] %v734
    // Predicated region
    $region14: #{basic_block_forward.9} parent=1 // pred_check
      _
    $region15: #{basic_block_forward.9} parent=1 // pred_check_branch
      %864 = sbr.rel (0) target = $region17
    $region16: #{basic_block_forward.9} parent=1 // pred_region
      %s866 = ssub.s32 8192, 8192
      %867 = vsyncadd [#allocation3], %s866
      %s868 = sshll.u32 [#allocation2], 4
      %s869 = int_to_ptr.vmem [resolvable:$true] %s868
      %874 = dma.vmem_to_hbm [thread:$0]  %s869, 8192, %s3, [#allocation3], 128, 128, 8
    $region17: #{basic_block_forward.9} parent=1 // pred_fallthru
      _
    // Predicated region
    $region18: #{basic_block_forward.9} parent=1 // pred_check
      _
    $region19: #{basic_block_forward.9} parent=1 // pred_check_branch
      %876 = sbr.rel (0) target = $region21
    $region20: #{basic_block_forward.9} parent=1 // pred_region
      _
    $region21: #{basic_block_forward.9} parent=1 // pred_fallthru
      _
    // Predicated region
    $region22: #{basic_block_forward.9} parent=1 // pred_check
      _
    $region23: #{basic_block_forward.9} parent=1 // pred_check_branch
      %878 = sbr.rel (0) target = $region25
    $region24: #{basic_block_forward.9} parent=1 // pred_region
      %879 = dma.done [#allocation3], 8192
    $region25: #{basic_block_forward.9} parent=1 // pred_fallthru
      _
    // Predicated region
    $region26: #{basic_block_forward.9} parent=1 // pred_check
      _
    $region27: #{basic_block_forward.9} parent=1 // pred_check_branch
      %881 = sbr.rel (0) target = $region29
    $region28: #{basic_block_forward.9} parent=1 // pred_region
      _
    $region29: #{basic_block_forward.9} parent=1 // pred_fallthru
      _
    %882 = vsyncpa [#allocation3], 1

// kernel: basic_block_forward.7
$region0: #{basic_block_forward.7}
  #allocation0 [shape = 'u32[]', space=smem, size = 0x4, offset = 0x4, fixed_abs, tag = 'smem constant byte address 0x4 - core index']
  #allocation1 [shape = 'u32[144,128]{1,0:T(1,128)}', space=vmem, size = 0x12000, scoped, tag = 'internal scratch']
  %s0 = inlined_call_operand.vmem [shape: f32[512,128], index: 0, kind: input, shape index: {}]
  %s1 = inlined_call_operand.vmem [shape: f32[1,128], index: 1, kind: input, shape index: {}]
  %s2 = inlined_call_operand.vmem [shape: f32[1,128], index: 2, kind: input, shape index: {}]
  %s3 = inlined_call_operand.vmem [shape: f32[512,128], index: 3, kind: input, shape index: {}]
  %s4 = inlined_call_operand.vmem [shape: f32[512,128], index: 4, kind: output, shape index: {0}]
  %s5 = inlined_call_operand.vmem [shape: bf16[512,128], index: 5, kind: output, shape index: {1}]
  %6 = xla_tuple %s4, %s5
  %s7 = sld [smem:[#allocation0]]
  $region34: #{basic_block_forward.7} parent=0
    _
  %s9 = ssub.s32 1, %s7
  %s10 = scalar_select 0, %s9, %s7
  // Predicated region
  $region2: #{basic_block_forward.7} parent=0 // pred_check
    _
  $region3: #{basic_block_forward.7} parent=0 // pred_check_branch
    %12 = sbr.rel (0) target = $region5
  $region4: #{basic_block_forward.7} parent=0 // pred_region
    _
  $region5: #{basic_block_forward.7} parent=0 // pred_fallthru
    _
  // Predicated region
  $region6: #{basic_block_forward.7} parent=0 // pred_check
    _
  $region7: #{basic_block_forward.7} parent=0 // pred_check_branch
    %14 = sbr.rel (0) target = $region9
  $region8: #{basic_block_forward.7} parent=0 // pred_region
    _
  $region9: #{basic_block_forward.7} parent=0 // pred_fallthru
    _
  // Predicated region
  $region10: #{basic_block_forward.7} parent=0 // pred_check
    _
  $region11: #{basic_block_forward.7} parent=0 // pred_check_branch
    %16 = sbr.rel (0) target = $region13
  $region12: #{basic_block_forward.7} parent=0 // pred_region
    _
  $region13: #{basic_block_forward.7} parent=0 // pred_fallthru
    _
  // Predicated region
  $region14: #{basic_block_forward.7} parent=0 // pred_check
    _
  $region15: #{basic_block_forward.7} parent=0 // pred_check_branch
    %18 = sbr.rel (0) target = $region17
  $region16: #{basic_block_forward.7} parent=0 // pred_region
    _
  $region17: #{basic_block_forward.7} parent=0 // pred_fallthru
    _
  %v19 = vld [vmem:[%s0] sm:$0xff]
  %v20 = vld [vmem:[%s0 + $0x8] sm:$0xff]
  %v21 = vld [vmem:[%s0 + $0x10] sm:$0xff]
  %v22 = vld [vmem:[%s0 + $0x18] sm:$0xff]
  %v23 = vld [vmem:[%s0 + $0x20] sm:$0xff]
  %v24 = vld [vmem:[%s0 + $0x28] sm:$0xff]
  %v25 = vld [vmem:[%s0 + $0x30] sm:$0xff]
  %v26 = vld [vmem:[%s0 + $0x38] sm:$0xff]
  %v27 = vld [vmem:[%s0 + $0x40] sm:$0xff]
  %v28 = vld [vmem:[%s0 + $0x48] sm:$0xff]
  %v29 = vld [vmem:[%s0 + $0x50] sm:$0xff]
  %v30 = vld [vmem:[%s0 + $0x58] sm:$0xff]
  %v31 = vld [vmem:[%s0 + $0x60] sm:$0xff]
  %v32 = vld [vmem:[%s0 + $0x68] sm:$0xff]
  %v33 = vld [vmem:[%s0 + $0x70] sm:$0xff]
  %v34 = vld [vmem:[%s0 + $0x78] sm:$0xff]
  %v35 = vld [vmem:[%s0 + $0x80] sm:$0xff]
  %v36 = vld [vmem:[%s0 + $0x88] sm:$0xff]
  %v37 = vld [vmem:[%s0 + $0x90] sm:$0xff]
  %v38 = vld [vmem:[%s0 + $0x98] sm:$0xff]
  %v39 = vld [vmem:[%s0 + $0xa0] sm:$0xff]
  %v40 = vld [vmem:[%s0 + $0xa8] sm:$0xff]
  %v41 = vld [vmem:[%s0 + $0xb0] sm:$0xff]
  %v42 = vld [vmem:[%s0 + $0xb8] sm:$0xff]
  %v43 = vld [vmem:[%s0 + $0xc0] sm:$0xff]
  %v44 = vld [vmem:[%s0 + $0xc8] sm:$0xff]
  %v45 = vld [vmem:[%s0 + $0xd0] sm:$0xff]
  %v46 = vld [vmem:[%s0 + $0xd8] sm:$0xff]
  %v47 = vld [vmem:[%s0 + $0xe0] sm:$0xff]
  %v48 = vld [vmem:[%s0 + $0xe8] sm:$0xff]
  %v49 = vld [vmem:[%s0 + $0xf0] sm:$0xff]
  %v50 = vld [vmem:[%s0 + $0xf8] sm:$0xff]
  %v51 = vld [vmem:[%s0 + $0x100] sm:$0xff]
  %v52 = vld [vmem:[%s0 + $0x108] sm:$0xff]
  %v53 = vld [vmem:[%s0 + $0x110] sm:$0xff]
  %v54 = vld [vmem:[%s0 + $0x118] sm:$0xff]
  %v55 = vld [vmem:[%s0 + $0x120] sm:$0xff]
  %v56 = vld [vmem:[%s0 + $0x128] sm:$0xff]
  %v57 = vld [vmem:[%s0 + $0x130] sm:$0xff]
  %v58 = vld [vmem:[%s0 + $0x138] sm:$0xff]
  %v59 = vld [vmem:[%s0 + $0x140] sm:$0xff]
  %v60 = vld [vmem:[%s0 + $0x148] sm:$0xff]
  %v61 = vld [vmem:[%s0 + $0x150] sm:$0xff]
  %v62 = vld [vmem:[%s0 + $0x158] sm:$0xff]
  %v63 = vld [vmem:[%s0 + $0x160] sm:$0xff]
  %v64 = vld [vmem:[%s0 + $0x168] sm:$0xff]
  %v65 = vld [vmem:[%s0 + $0x170] sm:$0xff]
  %v66 = vld [vmem:[%s0 + $0x178] sm:$0xff]
  %v67 = vld [vmem:[%s0 + $0x180] sm:$0xff]
  %v68 = vld [vmem:[%s0 + $0x188] sm:$0xff]
  %v69 = vld [vmem:[%s0 + $0x190] sm:$0xff]
  %v70 = vld [vmem:[%s0 + $0x198] sm:$0xff]
  %v71 = vld [vmem:[%s0 + $0x1a0] sm:$0xff]
  %v72 = vld [vmem:[%s0 + $0x1a8] sm:$0xff]
  %v73 = vld [vmem:[%s0 + $0x1b0] sm:$0xff]
  %v74 = vld [vmem:[%s0 + $0x1b8] sm:$0xff]
  %v75 = vld [vmem:[%s0 + $0x1c0] sm:$0xff]
  %v76 = vld [vmem:[%s0 + $0x1c8] sm:$0xff]
  %v77 = vld [vmem:[%s0 + $0x1d0] sm:$0xff]
  %v78 = vld [vmem:[%s0 + $0x1d8] sm:$0xff]
  %v79 = vld [vmem:[%s0 + $0x1e0] sm:$0xff]
  %v80 = vld [vmem:[%s0 + $0x1e8] sm:$0xff]
  %v81 = vld [vmem:[%s0 + $0x1f0] sm:$0xff]
  %v82 = vld [vmem:[%s0 + $0x1f8] sm:$0xff]
  %v83 = vld [vmem:[%s1] sm:$0x1]
  %v85 = vlaneseq
  %v86 = vshrl.u32 %v85, 7
  %v87 = vsub.s32 0, %v86
  %v88 = vrot.slane %v83, %v87
  %v90 = vmul.f32 %v19, %v88
  %v91 = vmul.f32 %v20, %v88
  %v92 = vmul.f32 %v21, %v88
  %v93 = vmul.f32 %v22, %v88
  %v94 = vmul.f32 %v23, %v88
  %v95 = vmul.f32 %v24, %v88
  %v96 = vmul.f32 %v25, %v88
  %v97 = vmul.f32 %v26, %v88
  %v98 = vmul.f32 %v27, %v88
  %v99 = vmul.f32 %v28, %v88
  %v100 = vmul.f32 %v29, %v88
  %v101 = vmul.f32 %v30, %v88
  %v102 = vmul.f32 %v31, %v88
  %v103 = vmul.f32 %v32, %v88
  %v104 = vmul.f32 %v33, %v88
  %v105 = vmul.f32 %v34, %v88
  %v106 = vmul.f32 %v35, %v88
  %v107 = vmul.f32 %v36, %v88
  %v108 = vmul.f32 %v37, %v88
  %v109 = vmul.f32 %v38, %v88
  %v110 = vmul.f32 %v39, %v88
  %v111 = vmul.f32 %v40, %v88
  %v112 = vmul.f32 %v41, %v88
  %v113 = vmul.f32 %v42, %v88
  %v114 = vmul.f32 %v43, %v88
  %v115 = vmul.f32 %v44, %v88
  %v116 = vmul.f32 %v45, %v88
  %v117 = vmul.f32 %v46, %v88
  %v118 = vmul.f32 %v47, %v88
  %v119 = vmul.f32 %v48, %v88
  %v120 = vmul.f32 %v49, %v88
  %v121 = vmul.f32 %v50, %v88
  %v122 = vmul.f32 %v51, %v88
  %v123 = vmul.f32 %v52, %v88
  %v124 = vmul.f32 %v53, %v88
  %v125 = vmul.f32 %v54, %v88
  %v126 = vmul.f32 %v55, %v88
  %v127 = vmul.f32 %v56, %v88
  %v128 = vmul.f32 %v57, %v88
  %v129 = vmul.f32 %v58, %v88
  %v130 = vmul.f32 %v59, %v88
  %v131 = vmul.f32 %v60, %v88
  %v132 = vmul.f32 %v61, %v88
  %v133 = vmul.f32 %v62, %v88
  %v134 = vmul.f32 %v63, %v88
  %v135 = vmul.f32 %v64, %v88
  %v136 = vmul.f32 %v65, %v88
  %v137 = vmul.f32 %v66, %v88
  %v138 = vmul.f32 %v67, %v88
  %v139 = vmul.f32 %v68, %v88
  %v140 = vmul.f32 %v69, %v88
  %v141 = vmul.f32 %v70, %v88
  %v142 = vmul.f32 %v71, %v88
  %v143 = vmul.f32 %v72, %v88
  %v144 = vmul.f32 %v73, %v88
  %v145 = vmul.f32 %v74, %v88
  %v146 = vmul.f32 %v75, %v88
  %v147 = vmul.f32 %v76, %v88
  %v148 = vmul.f32 %v77, %v88
  %v149 = vmul.f32 %v78, %v88
  %v150 = vmul.f32 %v79, %v88
  %v151 = vmul.f32 %v80, %v88
  %v152 = vmul.f32 %v81, %v88
  %v153 = vmul.f32 %v82, %v88
  %v154 = vld [vmem:[%s2] sm:$0x1]
  %v156 = vlaneseq
  %v157 = vshrl.u32 %v156, 7
  %v158 = vsub.s32 0, %v157
  %v159 = vrot.slane %v154, %v158
  %v161 = vadd.f32 %v90, %v159
  %v162 = vadd.f32 %v91, %v159
  %v163 = vadd.f32 %v92, %v159
  %v164 = vadd.f32 %v93, %v159
  %v165 = vadd.f32 %v94, %v159
  %v166 = vadd.f32 %v95, %v159
  %v167 = vadd.f32 %v96, %v159
  %v168 = vadd.f32 %v97, %v159
  %v169 = vadd.f32 %v98, %v159
  %v170 = vadd.f32 %v99, %v159
  %v171 = vadd.f32 %v100, %v159
  %v172 = vadd.f32 %v101, %v159
  %v173 = vadd.f32 %v102, %v159
  %v174 = vadd.f32 %v103, %v159
  %v175 = vadd.f32 %v104, %v159
  %v176 = vadd.f32 %v105, %v159
  %v177 = vadd.f32 %v106, %v159
  %v178 = vadd.f32 %v107, %v159
  %v179 = vadd.f32 %v108, %v159
  %v180 = vadd.f32 %v109, %v159
  %v181 = vadd.f32 %v110, %v159
  %v182 = vadd.f32 %v111, %v159
  %v183 = vadd.f32 %v112, %v159
  %v184 = vadd.f32 %v113, %v159
  %v185 = vadd.f32 %v114, %v159
  %v186 = vadd.f32 %v115, %v159
  %v187 = vadd.f32 %v116, %v159
  %v188 = vadd.f32 %v117, %v159
  %v189 = vadd.f32 %v118, %v159
  %v190 = vadd.f32 %v119, %v159
  %v191 = vadd.f32 %v120, %v159
  %v192 = vadd.f32 %v121, %v159
  %v193 = vadd.f32 %v122, %v159
  %v194 = vadd.f32 %v123, %v159
  %v195 = vadd.f32 %v124, %v159
  %v196 = vadd.f32 %v125, %v159
  %v197 = vadd.f32 %v126, %v159
  %v198 = vadd.f32 %v127, %v159
  %v199 = vadd.f32 %v128, %v159
  %v200 = vadd.f32 %v129, %v159
  %v201 = vadd.f32 %v130, %v159
  %v202 = vadd.f32 %v131, %v159
  %v203 = vadd.f32 %v132, %v159
  %v204 = vadd.f32 %v133, %v159
  %v205 = vadd.f32 %v134, %v159
  %v206 = vadd.f32 %v135, %v159
  %v207 = vadd.f32 %v136, %v159
  %v208 = vadd.f32 %v137, %v159
  %v209 = vadd.f32 %v138, %v159
  %v210 = vadd.f32 %v139, %v159
  %v211 = vadd.f32 %v140, %v159
  %v212 = vadd.f32 %v141, %v159
  %v213 = vadd.f32 %v142, %v159
  %v214 = vadd.f32 %v143, %v159
  %v215 = vadd.f32 %v144, %v159
  %v216 = vadd.f32 %v145, %v159
  %v217 = vadd.f32 %v146, %v159
  %v218 = vadd.f32 %v147, %v159
  %v219 = vadd.f32 %v148, %v159
  %v220 = vadd.f32 %v149, %v159
  %v221 = vadd.f32 %v150, %v159
  %v222 = vadd.f32 %v151, %v159
  %v223 = vadd.f32 %v152, %v159
  %v224 = vadd.f32 %v153, %v159
  %v225 = vld [vmem:[%s3] sm:$0xff]
  %v226 = vld [vmem:[%s3 + $0x8] sm:$0xff]
  %v227 = vld [vmem:[%s3 + $0x10] sm:$0xff]
  %v228 = vld [vmem:[%s3 + $0x18] sm:$0xff]
  %v229 = vld [vmem:[%s3 + $0x20] sm:$0xff]
  %v230 = vld [vmem:[%s3 + $0x28] sm:$0xff]
  %v231 = vld [vmem:[%s3 + $0x30] sm:$0xff]
  %v232 = vld [vmem:[%s3 + $0x38] sm:$0xff]
  %v233 = vld [vmem:[%s3 + $0x40] sm:$0xff]
  %v234 = vld [vmem:[%s3 + $0x48] sm:$0xff]
  %v235 = vld [vmem:[%s3 + $0x50] sm:$0xff]
  %v236 = vld [vmem:[%s3 + $0x58] sm:$0xff]
  %v237 = vld [vmem:[%s3 + $0x60] sm:$0xff]
  %v238 = vld [vmem:[%s3 + $0x68] sm:$0xff]
  %v239 = vld [vmem:[%s3 + $0x70] sm:$0xff]
  %v240 = vld [vmem:[%s3 + $0x78] sm:$0xff]
  %v241 = vld [vmem:[%s3 + $0x80] sm:$0xff]
  %v242 = vld [vmem:[%s3 + $0x88] sm:$0xff]
  %v243 = vld [vmem:[%s3 + $0x90] sm:$0xff]
  %v244 = vld [vmem:[%s3 + $0x98] sm:$0xff]
  %v245 = vld [vmem:[%s3 + $0xa0] sm:$0xff]
  %v246 = vld [vmem:[%s3 + $0xa8] sm:$0xff]
  %v247 = vld [vmem:[%s3 + $0xb0] sm:$0xff]
  %v248 = vld [vmem:[%s3 + $0xb8] sm:$0xff]
  %v249 = vld [vmem:[%s3 + $0xc0] sm:$0xff]
  %v250 = vld [vmem:[%s3 + $0xc8] sm:$0xff]
  %v251 = vld [vmem:[%s3 + $0xd0] sm:$0xff]
  %v252 = vld [vmem:[%s3 + $0xd8] sm:$0xff]
  %v253 = vld [vmem:[%s3 + $0xe0] sm:$0xff]
  %v254 = vld [vmem:[%s3 + $0xe8] sm:$0xff]
  %v255 = vld [vmem:[%s3 + $0xf0] sm:$0xff]
  %v256 = vld [vmem:[%s3 + $0xf8] sm:$0xff]
  %v257 = vld [vmem:[%s3 + $0x100] sm:$0xff]
  %v258 = vld [vmem:[%s3 + $0x108] sm:$0xff]
  %v259 = vld [vmem:[%s3 + $0x110] sm:$0xff]
  %v260 = vld [vmem:[%s3 + $0x118] sm:$0xff]
  %v261 = vld [vmem:[%s3 + $0x120] sm:$0xff]
  %v262 = vld [vmem:[%s3 + $0x128] sm:$0xff]
  %v263 = vld [vmem:[%s3 + $0x130] sm:$0xff]
  %v264 = vld [vmem:[%s3 + $0x138] sm:$0xff]
  %v265 = vld [vmem:[%s3 + $0x140] sm:$0xff]
  %v266 = vld [vmem:[%s3 + $0x148] sm:$0xff]
  %v267 = vld [vmem:[%s3 + $0x150] sm:$0xff]
  %v268 = vld [vmem:[%s3 + $0x158] sm:$0xff]
  %v269 = vld [vmem:[%s3 + $0x160] sm:$0xff]
  %v270 = vld [vmem:[%s3 + $0x168] sm:$0xff]
  %v271 = vld [vmem:[%s3 + $0x170] sm:$0xff]
  %v272 = vld [vmem:[%s3 + $0x178] sm:$0xff]
  %v273 = vld [vmem:[%s3 + $0x180] sm:$0xff]
  %v274 = vld [vmem:[%s3 + $0x188] sm:$0xff]
  %v275 = vld [vmem:[%s3 + $0x190] sm:$0xff]
  %v276 = vld [vmem:[%s3 + $0x198] sm:$0xff]
  %v277 = vld [vmem:[%s3 + $0x1a0] sm:$0xff]
  %v278 = vld [vmem:[%s3 + $0x1a8] sm:$0xff]
  %v279 = vld [vmem:[%s3 + $0x1b0] sm:$0xff]
  %v280 = vld [vmem:[%s3 + $0x1b8] sm:$0xff]
  %v281 = vld [vmem:[%s3 + $0x1c0] sm:$0xff]
  %v282 = vld [vmem:[%s3 + $0x1c8] sm:$0xff]
  %v283 = vld [vmem:[%s3 + $0x1d0] sm:$0xff]
  %v284 = vld [vmem:[%s3 + $0x1d8] sm:$0xff]
  %v285 = vld [vmem:[%s3 + $0x1e0] sm:$0xff]
  %v286 = vld [vmem:[%s3 + $0x1e8] sm:$0xff]
  %v287 = vld [vmem:[%s3 + $0x1f0] sm:$0xff]
  %v288 = vld [vmem:[%s3 + $0x1f8] sm:$0xff]
  %v289 = vadd.f32 %v161, %v225
  %v290 = vadd.f32 %v162, %v226
  %v291 = vadd.f32 %v163, %v227
  %v292 = vadd.f32 %v164, %v228
  %v293 = vadd.f32 %v165, %v229
  %v294 = vadd.f32 %v166, %v230
  %v295 = vadd.f32 %v167, %v231
  %v296 = vadd.f32 %v168, %v232
  %v297 = vadd.f32 %v169, %v233
  %v298 = vadd.f32 %v170, %v234
  %v299 = vadd.f32 %v171, %v235
  %v300 = vadd.f32 %v172, %v236
  %v301 = vadd.f32 %v173, %v237
  %v302 = vadd.f32 %v174, %v238
  %v303 = vadd.f32 %v175, %v239
  %v304 = vadd.f32 %v176, %v240
  %v305 = vadd.f32 %v177, %v241
  %v306 = vadd.f32 %v178, %v242
  %v307 = vadd.f32 %v179, %v243
  %v308 = vadd.f32 %v180, %v244
  %v309 = vadd.f32 %v181, %v245
  %v310 = vadd.f32 %v182, %v246
  %v311 = vadd.f32 %v183, %v247
  %v312 = vadd.f32 %v184, %v248
  %v313 = vadd.f32 %v185, %v249
  %v314 = vadd.f32 %v186, %v250
  %v315 = vadd.f32 %v187, %v251
  %v316 = vadd.f32 %v188, %v252
  %v317 = vadd.f32 %v189, %v253
  %v318 = vadd.f32 %v190, %v254
  %v319 = vadd.f32 %v191, %v255
  %v320 = vadd.f32 %v192, %v256
  %v321 = vadd.f32 %v193, %v257
  %v322 = vadd.f32 %v194, %v258
  %v323 = vadd.f32 %v195, %v259
  %v324 = vadd.f32 %v196, %v260
  %v325 = vadd.f32 %v197, %v261
  %v326 = vadd.f32 %v198, %v262
  %v327 = vadd.f32 %v199, %v263
  %v328 = vadd.f32 %v200, %v264
  %v329 = vadd.f32 %v201, %v265
  %v330 = vadd.f32 %v202, %v266
  %v331 = vadd.f32 %v203, %v267
  %v332 = vadd.f32 %v204, %v268
  %v333 = vadd.f32 %v205, %v269
  %v334 = vadd.f32 %v206, %v270
  %v335 = vadd.f32 %v207, %v271
  %v336 = vadd.f32 %v208, %v272
  %v337 = vadd.f32 %v209, %v273
  %v338 = vadd.f32 %v210, %v274
  %v339 = vadd.f32 %v211, %v275
  %v340 = vadd.f32 %v212, %v276
  %v341 = vadd.f32 %v213, %v277
  %v342 = vadd.f32 %v214, %v278
  %v343 = vadd.f32 %v215, %v279
  %v344 = vadd.f32 %v216, %v280
  %v345 = vadd.f32 %v217, %v281
  %v346 = vadd.f32 %v218, %v282
  %v347 = vadd.f32 %v219, %v283
  %v348 = vadd.f32 %v220, %v284
  %v349 = vadd.f32 %v221, %v285
  %v350 = vadd.f32 %v222, %v286
  %v351 = vadd.f32 %v223, %v287
  %v352 = vadd.f32 %v224, %v288
  %353 = vst [vmem:[%s4] sm:$0xff] %v289
  %354 = vst [vmem:[%s4 + $0x8] sm:$0xff] %v290
  %355 = vst [vmem:[%s4 + $0x10] sm:$0xff] %v291
  %356 = vst [vmem:[%s4 + $0x18] sm:$0xff] %v292
  %357 = vst [vmem:[%s4 + $0x20] sm:$0xff] %v293
  %358 = vst [vmem:[%s4 + $0x28] sm:$0xff] %v294
  %359 = vst [vmem:[%s4 + $0x30] sm:$0xff] %v295
  %360 = vst [vmem:[%s4 + $0x38] sm:$0xff] %v296
  %361 = vst [vmem:[%s4 + $0x40] sm:$0xff] %v297
  %362 = vst [vmem:[%s4 + $0x48] sm:$0xff] %v298
  %363 = vst [vmem:[%s4 + $0x50] sm:$0xff] %v299
  %364 = vst [vmem:[%s4 + $0x58] sm:$0xff] %v300
  %365 = vst [vmem:[%s4 + $0x60] sm:$0xff] %v301
  %366 = vst [vmem:[%s4 + $0x68] sm:$0xff] %v302
  %367 = vst [vmem:[%s4 + $0x70] sm:$0xff] %v303
  %368 = vst [vmem:[%s4 + $0x78] sm:$0xff] %v304
  %369 = vst [vmem:[%s4 + $0x80] sm:$0xff] %v305
  %370 = vst [vmem:[%s4 + $0x88] sm:$0xff] %v306
  %371 = vst [vmem:[%s4 + $0x90] sm:$0xff] %v307
  %372 = vst [vmem:[%s4 + $0x98] sm:$0xff] %v308
  %373 = vst [vmem:[%s4 + $0xa0] sm:$0xff] %v309
  %374 = vst [vmem:[%s4 + $0xa8] sm:$0xff] %v310
  %375 = vst [vmem:[%s4 + $0xb0] sm:$0xff] %v311
  %376 = vst [vmem:[%s4 + $0xb8] sm:$0xff] %v312
  %377 = vst [vmem:[%s4 + $0xc0] sm:$0xff] %v313
  %378 = vst [vmem:[%s4 + $0xc8] sm:$0xff] %v314
  %379 = vst [vmem:[%s4 + $0xd0] sm:$0xff] %v315
  %380 = vst [vmem:[%s4 + $0xd8] sm:$0xff] %v316
  %381 = vst [vmem:[%s4 + $0xe0] sm:$0xff] %v317
  %382 = vst [vmem:[%s4 + $0xe8] sm:$0xff] %v318
  %383 = vst [vmem:[%s4 + $0xf0] sm:$0xff] %v319
  %384 = vst [vmem:[%s4 + $0xf8] sm:$0xff] %v320
  %385 = vst [vmem:[%s4 + $0x100] sm:$0xff] %v321
  %386 = vst [vmem:[%s4 + $0x108] sm:$0xff] %v322
  %387 = vst [vmem:[%s4 + $0x110] sm:$0xff] %v323
  %388 = vst [vmem:[%s4 + $0x118] sm:$0xff] %v324
  %389 = vst [vmem:[%s4 + $0x120] sm:$0xff] %v325
  %390 = vst [vmem:[%s4 + $0x128] sm:$0xff] %v326
  %391 = vst [vmem:[%s4 + $0x130] sm:$0xff] %v327
  %392 = vst [vmem:[%s4 + $0x138] sm:$0xff] %v328
  %393 = vst [vmem:[%s4 + $0x140] sm:$0xff] %v329
  %394 = vst [vmem:[%s4 + $0x148] sm:$0xff] %v330
  %395 = vst [vmem:[%s4 + $0x150] sm:$0xff] %v331
  %396 = vst [vmem:[%s4 + $0x158] sm:$0xff] %v332
  %397 = vst [vmem:[%s4 + $0x160] sm:$0xff] %v333
  %398 = vst [vmem:[%s4 + $0x168] sm:$0xff] %v334
  %399 = vst [vmem:[%s4 + $0x170] sm:$0xff] %v335
  %400 = vst [vmem:[%s4 + $0x178] sm:$0xff] %v336
  %401 = vst [vmem:[%s4 + $0x180] sm:$0xff] %v337
  %402 = vst [vmem:[%s4 + $0x188] sm:$0xff] %v338
  %403 = vst [vmem:[%s4 + $0x190] sm:$0xff] %v339
  %404 = vst [vmem:[%s4 + $0x198] sm:$0xff] %v340
  %405 = vst [vmem:[%s4 + $0x1a0] sm:$0xff] %v341
  %406 = vst [vmem:[%s4 + $0x1a8] sm:$0xff] %v342
  %407 = vst [vmem:[%s4 + $0x1b0] sm:$0xff] %v343
  %408 = vst [vmem:[%s4 + $0x1b8] sm:$0xff] %v344
  %409 = vst [vmem:[%s4 + $0x1c0] sm:$0xff] %v345
  %410 = vst [vmem:[%s4 + $0x1c8] sm:$0xff] %v346
  %411 = vst [vmem:[%s4 + $0x1d0] sm:$0xff] %v347
  %412 = vst [vmem:[%s4 + $0x1d8] sm:$0xff] %v348
  %413 = vst [vmem:[%s4 + $0x1e0] sm:$0xff] %v349
  %414 = vst [vmem:[%s4 + $0x1e8] sm:$0xff] %v350
  %415 = vst [vmem:[%s4 + $0x1f0] sm:$0xff] %v351
  %416 = vst [vmem:[%s4 + $0x1f8] sm:$0xff] %v352
  %v417 = vmax.f32 %v289, 0.0
  %v418 = vmax.f32 %v290, 0.0
  %v419 = vmax.f32 %v291, 0.0
  %v420 = vmax.f32 %v292, 0.0
  %v421 = vmax.f32 %v293, 0.0
  %v422 = vmax.f32 %v294, 0.0
  %v423 = vmax.f32 %v295, 0.0
  %v424 = vmax.f32 %v296, 0.0
  %v425 = vmax.f32 %v297, 0.0
  %v426 = vmax.f32 %v298, 0.0
  %v427 = vmax.f32 %v299, 0.0
  %v428 = vmax.f32 %v300, 0.0
  %v429 = vmax.f32 %v301, 0.0
  %v430 = vmax.f32 %v302, 0.0
  %v431 = vmax.f32 %v303, 0.0
  %v432 = vmax.f32 %v304, 0.0
  %v433 = vmax.f32 %v305, 0.0
  %v434 = vmax.f32 %v306, 0.0
  %v435 = vmax.f32 %v307, 0.0
  %v436 = vmax.f32 %v308, 0.0
  %v437 = vmax.f32 %v309, 0.0
  %v438 = vmax.f32 %v310, 0.0
  %v439 = vmax.f32 %v311, 0.0
  %v440 = vmax.f32 %v312, 0.0
  %v441 = vmax.f32 %v313, 0.0
  %v442 = vmax.f32 %v314, 0.0
  %v443 = vmax.f32 %v315, 0.0
  %v444 = vmax.f32 %v316, 0.0
  %v445 = vmax.f32 %v317, 0.0
  %v446 = vmax.f32 %v318, 0.0
  %v447 = vmax.f32 %v319, 0.0
  %v448 = vmax.f32 %v320, 0.0
  %v449 = vmax.f32 %v321, 0.0
  %v450 = vmax.f32 %v322, 0.0
  %v451 = vmax.f32 %v323, 0.0
  %v452 = vmax.f32 %v324, 0.0
  %v453 = vmax.f32 %v325, 0.0
  %v454 = vmax.f32 %v326, 0.0
  %v455 = vmax.f32 %v327, 0.0
  %v456 = vmax.f32 %v328, 0.0
  %v457 = vmax.f32 %v329, 0.0
  %v458 = vmax.f32 %v330, 0.0
  %v459 = vmax.f32 %v331, 0.0
  %v460 = vmax.f32 %v332, 0.0
  %v461 = vmax.f32 %v333, 0.0
  %v462 = vmax.f32 %v334, 0.0
  %v463 = vmax.f32 %v335, 0.0
  %v464 = vmax.f32 %v336, 0.0
  %v465 = vmax.f32 %v337, 0.0
  %v466 = vmax.f32 %v338, 0.0
  %v467 = vmax.f32 %v339, 0.0
  %v468 = vmax.f32 %v340, 0.0
  %v469 = vmax.f32 %v341, 0.0
  %v470 = vmax.f32 %v342, 0.0
  %v471 = vmax.f32 %v343, 0.0
  %v472 = vmax.f32 %v344, 0.0
  %v473 = vmax.f32 %v345, 0.0
  %v474 = vmax.f32 %v346, 0.0
  %v475 = vmax.f32 %v347, 0.0
  %v476 = vmax.f32 %v348, 0.0
  %v477 = vmax.f32 %v349, 0.0
  %v478 = vmax.f32 %v350, 0.0
  %v479 = vmax.f32 %v351, 0.0
  %v480 = vmax.f32 %v352, 0.0
  %v481 = vmin.f32 %v417, 4.0
  %v482 = vmin.f32 %v418, 4.0
  %v483 = vmin.f32 %v419, 4.0
  %v484 = vmin.f32 %v420, 4.0
  %v485 = vmin.f32 %v421, 4.0
  %v486 = vmin.f32 %v422, 4.0
  %v487 = vmin.f32 %v423, 4.0
  %v488 = vmin.f32 %v424, 4.0
  %v489 = vmin.f32 %v425, 4.0
  %v490 = vmin.f32 %v426, 4.0
  %v491 = vmin.f32 %v427, 4.0
  %v492 = vmin.f32 %v428, 4.0
  %v493 = vmin.f32 %v429, 4.0
  %v494 = vmin.f32 %v430, 4.0
  %v495 = vmin.f32 %v431, 4.0
  %v496 = vmin.f32 %v432, 4.0
  %v497 = vmin.f32 %v433, 4.0
  %v498 = vmin.f32 %v434, 4.0
  %v499 = vmin.f32 %v435, 4.0
  %v500 = vmin.f32 %v436, 4.0
  %v501 = vmin.f32 %v437, 4.0
  %v502 = vmin.f32 %v438, 4.0
  %v503 = vmin.f32 %v439, 4.0
  %v504 = vmin.f32 %v440, 4.0
  %v505 = vmin.f32 %v441, 4.0
  %v506 = vmin.f32 %v442, 4.0
  %v507 = vmin.f32 %v443, 4.0
  %v508 = vmin.f32 %v444, 4.0
  %v509 = vmin.f32 %v445, 4.0
  %v510 = vmin.f32 %v446, 4.0
  %v511 = vmin.f32 %v447, 4.0
  %v512 = vmin.f32 %v448, 4.0
  %v513 = vmin.f32 %v449, 4.0
  %v514 = vmin.f32 %v450, 4.0
  %v515 = vmin.f32 %v451, 4.0
  %v516 = vmin.f32 %v452, 4.0
  %v517 = vmin.f32 %v453, 4.0
  %v518 = vmin.f32 %v454, 4.0
  %v519 = vmin.f32 %v455, 4.0
  %v520 = vmin.f32 %v456, 4.0
  %v521 = vmin.f32 %v457, 4.0
  %v522 = vmin.f32 %v458, 4.0
  %v523 = vmin.f32 %v459, 4.0
  %v524 = vmin.f32 %v460, 4.0
  %v525 = vmin.f32 %v461, 4.0
  %v526 = vmin.f32 %v462, 4.0
  %v527 = vmin.f32 %v463, 4.0
  %v528 = vmin.f32 %v464, 4.0
  %v529 = vmin.f32 %v465, 4.0
  %v530 = vmin.f32 %v466, 4.0
  %v531 = vmin.f32 %v467, 4.0
  %v532 = vmin.f32 %v468, 4.0
  %v533 = vmin.f32 %v469, 4.0
  %v534 = vmin.f32 %v470, 4.0
  %v535 = vmin.f32 %v471, 4.0
  %v536 = vmin.f32 %v472, 4.0
  %v537 = vmin.f32 %v473, 4.0
  %v538 = vmin.f32 %v474, 4.0
  %v539 = vmin.f32 %v475, 4.0
  %v540 = vmin.f32 %v476, 4.0
  %v541 = vmin.f32 %v477, 4.0
  %v542 = vmin.f32 %v478, 4.0
  %v543 = vmin.f32 %v479, 4.0
  %v544 = vmin.f32 %v480, 4.0
  %v545 = vadd.f32 %v481, 0.5
  %v546 = vadd.f32 %v482, 0.5
  %v547 = vadd.f32 %v483, 0.5
  %v548 = vadd.f32 %v484, 0.5
  %v549 = vadd.f32 %v485, 0.5
  %v550 = vadd.f32 %v486, 0.5
  %v551 = vadd.f32 %v487, 0.5
  %v552 = vadd.f32 %v488, 0.5
  %v553 = vadd.f32 %v489, 0.5
  %v554 = vadd.f32 %v490, 0.5
  %v555 = vadd.f32 %v491, 0.5
  %v556 = vadd.f32 %v492, 0.5
  %v557 = vadd.f32 %v493, 0.5
  %v558 = vadd.f32 %v494, 0.5
  %v559 = vadd.f32 %v495, 0.5
  %v560 = vadd.f32 %v496, 0.5
  %v561 = vadd.f32 %v497, 0.5
  %v562 = vadd.f32 %v498, 0.5
  %v563 = vadd.f32 %v499, 0.5
  %v564 = vadd.f32 %v500, 0.5
  %v565 = vadd.f32 %v501, 0.5
  %v566 = vadd.f32 %v502, 0.5
  %v567 = vadd.f32 %v503, 0.5
  %v568 = vadd.f32 %v504, 0.5
  %v569 = vadd.f32 %v505, 0.5
  %v570 = vadd.f32 %v506, 0.5
  %v571 = vadd.f32 %v507, 0.5
  %v572 = vadd.f32 %v508, 0.5
  %v573 = vadd.f32 %v509, 0.5
  %v574 = vadd.f32 %v510, 0.5
  %v575 = vadd.f32 %v511, 0.5
  %v576 = vadd.f32 %v512, 0.5
  %v577 = vadd.f32 %v513, 0.5
  %v578 = vadd.f32 %v514, 0.5
  %v579 = vadd.f32 %v515, 0.5
  %v580 = vadd.f32 %v516, 0.5
  %v581 = vadd.f32 %v517, 0.5
  %v582 = vadd.f32 %v518, 0.5
  %v583 = vadd.f32 %v519, 0.5
  %v584 = vadd.f32 %v520, 0.5
  %v585 = vadd.f32 %v521, 0.5
  %v586 = vadd.f32 %v522, 0.5
  %v587 = vadd.f32 %v523, 0.5
  %v588 = vadd.f32 %v524, 0.5
  %v589 = vadd.f32 %v525, 0.5
  %v590 = vadd.f32 %v526, 0.5
  %v591 = vadd.f32 %v527, 0.5
  %v592 = vadd.f32 %v528, 0.5
  %v593 = vadd.f32 %v529, 0.5
  %v594 = vadd.f32 %v530, 0.5
  %v595 = vadd.f32 %v531, 0.5
  %v596 = vadd.f32 %v532, 0.5
  %v597 = vadd.f32 %v533, 0.5
  %v598 = vadd.f32 %v534, 0.5
  %v599 = vadd.f32 %v535, 0.5
  %v600 = vadd.f32 %v536, 0.5
  %v601 = vadd.f32 %v537, 0.5
  %v602 = vadd.f32 %v538, 0.5
  %v603 = vadd.f32 %v539, 0.5
  %v604 = vadd.f32 %v540, 0.5
  %v605 = vadd.f32 %v541, 0.5
  %v606 = vadd.f32 %v542, 0.5
  %v607 = vadd.f32 %v543, 0.5
  %v608 = vadd.f32 %v544, 0.5
  %v609 = vfloor.f32 %v545
  %v610 = vfloor.f32 %v546
  %v611 = vfloor.f32 %v547
  %v612 = vfloor.f32 %v548
  %v613 = vfloor.f32 %v549
  %v614 = vfloor.f32 %v550
  %v615 = vfloor.f32 %v551
  %v616 = vfloor.f32 %v552
  %v617 = vfloor.f32 %v553
  %v618 = vfloor.f32 %v554
  %v619 = vfloor.f32 %v555
  %v620 = vfloor.f32 %v556
  %v621 = vfloor.f32 %v557
  %v622 = vfloor.f32 %v558
  %v623 = vfloor.f32 %v559
  %v624 = vfloor.f32 %v560
  %v625 = vfloor.f32 %v561
  %v626 = vfloor.f32 %v562
  %v627 = vfloor.f32 %v563
  %v628 = vfloor.f32 %v564
  %v629 = vfloor.f32 %v565
  %v630 = vfloor.f32 %v566
  %v631 = vfloor.f32 %v567
  %v632 = vfloor.f32 %v568
  %v633 = vfloor.f32 %v569
  %v634 = vfloor.f32 %v570
  %v635 = vfloor.f32 %v571
  %v636 = vfloor.f32 %v572
  %v637 = vfloor.f32 %v573
  %v638 = vfloor.f32 %v574
  %v639 = vfloor.f32 %v575
  %v640 = vfloor.f32 %v576
  %v641 = vfloor.f32 %v577
  %v642 = vfloor.f32 %v578
  %v643 = vfloor.f32 %v579
  %v644 = vfloor.f32 %v580
  %v645 = vfloor.f32 %v581
  %v646 = vfloor.f32 %v582
  %v647 = vfloor.f32 %v583
  %v648 = vfloor.f32 %v584
  %v649 = vfloor.f32 %v585
  %v650 = vfloor.f32 %v586
  %v651 = vfloor.f32 %v587
  %v652 = vfloor.f32 %v588
  %v653 = vfloor.f32 %v589
  %v654 = vfloor.f32 %v590
  %v655 = vfloor.f32 %v591
  %v656 = vfloor.f32 %v592
  %v657 = vfloor.f32 %v593
  %v658 = vfloor.f32 %v594
  %v659 = vfloor.f32 %v595
  %v660 = vfloor.f32 %v596
  %v661 = vfloor.f32 %v597
  %v662 = vfloor.f32 %v598
  %v663 = vfloor.f32 %v599
  %v664 = vfloor.f32 %v600
  %v665 = vfloor.f32 %v601
  %v666 = vfloor.f32 %v602
  %v667 = vfloor.f32 %v603
  %v668 = vfloor.f32 %v604
  %v669 = vfloor.f32 %v605
  %v670 = vfloor.f32 %v606
  %v671 = vfloor.f32 %v607
  %v672 = vfloor.f32 %v608
  %v673 = vpack.c.bf16 %v610, %v609
  %v674 = vpack.c.bf16 %v612, %v611
  %v675 = vpack.c.bf16 %v614, %v613
  %v676 = vpack.c.bf16 %v616, %v615
  %v677 = vpack.c.bf16 %v618, %v617
  %v678 = vpack.c.bf16 %v620, %v619
  %v679 = vpack.c.bf16 %v622, %v621
  %v680 = vpack.c.bf16 %v624, %v623
  %v681 = vpack.c.bf16 %v626, %v625
  %v682 = vpack.c.bf16 %v628, %v627
  %v683 = vpack.c.bf16 %v630, %v629
  %v684 = vpack.c.bf16 %v632, %v631
  %v685 = vpack.c.bf16 %v634, %v633
  %v686 = vpack.c.bf16 %v636, %v635
  %v687 = vpack.c.bf16 %v638, %v637
  %v688 = vpack.c.bf16 %v640, %v639
  %v689 = vpack.c.bf16 %v642, %v641
  %v690 = vpack.c.bf16 %v644, %v643
  %v691 = vpack.c.bf16 %v646, %v645
  %v692 = vpack.c.bf16 %v648, %v647
  %v693 = vpack.c.bf16 %v650, %v649
  %v694 = vpack.c.bf16 %v652, %v651
  %v695 = vpack.c.bf16 %v654, %v653
  %v696 = vpack.c.bf16 %v656, %v655
  %v697 = vpack.c.bf16 %v658, %v657
  %v698 = vpack.c.bf16 %v660, %v659
  %v699 = vpack.c.bf16 %v662, %v661
  %v700 = vpack.c.bf16 %v664, %v663
  %v701 = vpack.c.bf16 %v666, %v665
  %v702 = vpack.c.bf16 %v668, %v667
  %v703 = vpack.c.bf16 %v670, %v669
  %v704 = vpack.c.bf16 %v672, %v671
  %v737 = vunpack.c.l.b16 %v673
  %v738 = vunpack.c.h.b16 %v673
  %v739 = vunpack.c.l.b16 %v674
  %v740 = vunpack.c.h.b16 %v674
  %v741 = vunpack.c.l.b16 %v675
  %v742 = vunpack.c.h.b16 %v675
  %v743 = vunpack.c.l.b16 %v676
  %v744 = vunpack.c.h.b16 %v676
  %v745 = vunpack.c.l.b16 %v677
  %v746 = vunpack.c.h.b16 %v677
  %v747 = vunpack.c.l.b16 %v678
  %v748 = vunpack.c.h.b16 %v678
  %v749 = vunpack.c.l.b16 %v679
  %v750 = vunpack.c.h.b16 %v679
  %v751 = vunpack.c.l.b16 %v680
  %v752 = vunpack.c.h.b16 %v680
  %v753 = vunpack.c.l.b16 %v681
  %v754 = vunpack.c.h.b16 %v681
  %v755 = vunpack.c.l.b16 %v682
  %v756 = vunpack.c.h.b16 %v682
  %v757 = vunpack.c.l.b16 %v683
  %v758 = vunpack.c.h.b16 %v683
  %v759 = vunpack.c.l.b16 %v684
  %v760 = vunpack.c.h.b16 %v684
  %v761 = vunpack.c.l.b16 %v685
  %v762 = vunpack.c.h.b16 %v685
  %v763 = vunpack.c.l.b16 %v686
  %v764 = vunpack.c.h.b16 %v686
  %v765 = vunpack.c.l.b16 %v687
  %v766 = vunpack.c.h.b16 %v687
  %v767 = vunpack.c.l.b16 %v688
  %v768 = vunpack.c.h.b16 %v688
  %v769 = vunpack.c.l.b16 %v689
  %v770 = vunpack.c.h.b16 %v689
  %v771 = vunpack.c.l.b16 %v690
  %v772 = vunpack.c.h.b16 %v690
  %v773 = vunpack.c.l.b16 %v691
  %v774 = vunpack.c.h.b16 %v691
  %v775 = vunpack.c.l.b16 %v692
  %v776 = vunpack.c.h.b16 %v692
  %v777 = vunpack.c.l.b16 %v693
  %v778 = vunpack.c.h.b16 %v693
  %v779 = vunpack.c.l.b16 %v694
  %v780 = vunpack.c.h.b16 %v694
  %v781 = vunpack.c.l.b16 %v695
  %v782 = vunpack.c.h.b16 %v695
  %v783 = vunpack.c.l.b16 %v696
  %v784 = vunpack.c.h.b16 %v696
  %v785 = vunpack.c.l.b16 %v697
  %v786 = vunpack.c.h.b16 %v697
  %v787 = vunpack.c.l.b16 %v698
  %v788 = vunpack.c.h.b16 %v698
  %v789 = vunpack.c.l.b16 %v699
  %v790 = vunpack.c.h.b16 %v699
  %v791 = vunpack.c.l.b16 %v700
  %v792 = vunpack.c.h.b16 %v700
  %v793 = vunpack.c.l.b16 %v701
  %v794 = vunpack.c.h.b16 %v701
  %v795 = vunpack.c.l.b16 %v702
  %v796 = vunpack.c.h.b16 %v702
  %v797 = vunpack.c.l.b16 %v703
  %v798 = vunpack.c.h.b16 %v703
  %v799 = vunpack.c.l.b16 %v704
  %v800 = vunpack.c.h.b16 %v704
  %v801 = vpack.c.b16 %v737, %v737
  %v802 = vpack.c.b16 %v738, %v738
  %v803 = vpack.c.b16 %v739, %v739
  %v804 = vpack.c.b16 %v740, %v740
  %v805 = vpack.c.b16 %v741, %v741
  %v806 = vpack.c.b16 %v742, %v742
  %v807 = vpack.c.b16 %v743, %v743
  %v808 = vpack.c.b16 %v744, %v744
  %v809 = vpack.c.b16 %v745, %v745
  %v810 = vpack.c.b16 %v746, %v746
  %v811 = vpack.c.b16 %v747, %v747
  %v812 = vpack.c.b16 %v748, %v748
  %v813 = vpack.c.b16 %v749, %v749
  %v814 = vpack.c.b16 %v750, %v750
  %v815 = vpack.c.b16 %v751, %v751
  %v816 = vpack.c.b16 %v752, %v752
  %v817 = vpack.c.b16 %v753, %v753
  %v818 = vpack.c.b16 %v754, %v754
  %v819 = vpack.c.b16 %v755, %v755
  %v820 = vpack.c.b16 %v756, %v756
  %v821 = vpack.c.b16 %v757, %v757
  %v822 = vpack.c.b16 %v758, %v758
  %v823 = vpack.c.b16 %v759, %v759
  %v824 = vpack.c.b16 %v760, %v760
  %v825 = vpack.c.b16 %v761, %v761
  %v826 = vpack.c.b16 %v762, %v762
  %v827 = vpack.c.b16 %v763, %v763
  %v828 = vpack.c.b16 %v764, %v764
  %v829 = vpack.c.b16 %v765, %v765
  %v830 = vpack.c.b16 %v766, %v766
  %v831 = vpack.c.b16 %v767, %v767
  %v832 = vpack.c.b16 %v768, %v768
  %v833 = vpack.c.b16 %v769, %v769
  %v834 = vpack.c.b16 %v770, %v770
  %v835 = vpack.c.b16 %v771, %v771
  %v836 = vpack.c.b16 %v772, %v772
  %v837 = vpack.c.b16 %v773, %v773
  %v838 = vpack.c.b16 %v774, %v774
  %v839 = vpack.c.b16 %v775, %v775
  %v840 = vpack.c.b16 %v776, %v776
  %v841 = vpack.c.b16 %v777, %v777
  %v842 = vpack.c.b16 %v778, %v778
  %v843 = vpack.c.b16 %v779, %v779
  %v844 = vpack.c.b16 %v780, %v780
  %v845 = vpack.c.b16 %v781, %v781
  %v846 = vpack.c.b16 %v782, %v782
  %v847 = vpack.c.b16 %v783, %v783
  %v848 = vpack.c.b16 %v784, %v784
  %v849 = vpack.c.b16 %v785, %v785
  %v850 = vpack.c.b16 %v786, %v786
  %v851 = vpack.c.b16 %v787, %v787
  %v852 = vpack.c.b16 %v788, %v788
  %v853 = vpack.c.b16 %v789, %v789
  %v854 = vpack.c.b16 %v790, %v790
  %v855 = vpack.c.b16 %v791, %v791
  %v856 = vpack.c.b16 %v792, %v792
  %v857 = vpack.c.b16 %v793, %v793
  %v858 = vpack.c.b16 %v794, %v794
  %v859 = vpack.c.b16 %v795, %v795
  %v860 = vpack.c.b16 %v796, %v796
  %v861 = vpack.c.b16 %v797, %v797
  %v862 = vpack.c.b16 %v798, %v798
  %v863 = vpack.c.b16 %v799, %v799
  %v864 = vpack.c.b16 %v800, %v800
  %929 = vst [vmem:[%s5] sm:$0xf] %v801
  %930 = vst [vmem:[%s5 + $0x4] sm:$0xf] %v802
  %931 = vst [vmem:[%s5 + $0x8] sm:$0xf] %v803
  %932 = vst [vmem:[%s5 + $0xc] sm:$0xf] %v804
  %933 = vst [vmem:[%s5 + $0x10] sm:$0xf] %v805
  %934 = vst [vmem:[%s5 + $0x14] sm:$0xf] %v806
  %935 = vst [vmem:[%s5 + $0x18] sm:$0xf] %v807
  %936 = vst [vmem:[%s5 + $0x1c] sm:$0xf] %v808
  %937 = vst [vmem:[%s5 + $0x20] sm:$0xf] %v809
  %938 = vst [vmem:[%s5 + $0x24] sm:$0xf] %v810
  %939 = vst [vmem:[%s5 + $0x28] sm:$0xf] %v811
  %940 = vst [vmem:[%s5 + $0x2c] sm:$0xf] %v812
  %941 = vst [vmem:[%s5 + $0x30] sm:$0xf] %v813
  %942 = vst [vmem:[%s5 + $0x34] sm:$0xf] %v814
  %943 = vst [vmem:[%s5 + $0x38] sm:$0xf] %v815
  %944 = vst [vmem:[%s5 + $0x3c] sm:$0xf] %v816
  %945 = vst [vmem:[%s5 + $0x40] sm:$0xf] %v817
  %946 = vst [vmem:[%s5 + $0x44] sm:$0xf] %v818
  %947 = vst [vmem:[%s5 + $0x48] sm:$0xf] %v819
  %948 = vst [vmem:[%s5 + $0x4c] sm:$0xf] %v820
  %949 = vst [vmem:[%s5 + $0x50] sm:$0xf] %v821
  %950 = vst [vmem:[%s5 + $0x54] sm:$0xf] %v822
  %951 = vst [vmem:[%s5 + $0x58] sm:$0xf] %v823
  %952 = vst [vmem:[%s5 + $0x5c] sm:$0xf] %v824
  %953 = vst [vmem:[%s5 + $0x60] sm:$0xf] %v825
  %954 = vst [vmem:[%s5 + $0x64] sm:$0xf] %v826
  %955 = vst [vmem:[%s5 + $0x68] sm:$0xf] %v827
  %956 = vst [vmem:[%s5 + $0x6c] sm:$0xf] %v828
  %957 = vst [vmem:[%s5 + $0x70] sm:$0xf] %v829
  %958 = vst [vmem:[%s5 + $0x74] sm:$0xf] %v830
  %959 = vst [vmem:[%s5 + $0x78] sm:$0xf] %v831
  %960 = vst [vmem:[%s5 + $0x7c] sm:$0xf] %v832
  %961 = vst [vmem:[%s5 + $0x80] sm:$0xf] %v833
  %962 = vst [vmem:[%s5 + $0x84] sm:$0xf] %v834
  %963 = vst [vmem:[%s5 + $0x88] sm:$0xf] %v835
  %964 = vst [vmem:[%s5 + $0x8c] sm:$0xf] %v836
  %965 = vst [vmem:[%s5 + $0x90] sm:$0xf] %v837
  %966 = vst [vmem:[%s5 + $0x94] sm:$0xf] %v838
  %967 = vst [vmem:[%s5 + $0x98] sm:$0xf] %v839
  %968 = vst [vmem:[%s5 + $0x9c] sm:$0xf] %v840
  %969 = vst [vmem:[%s5 + $0xa0] sm:$0xf] %v841
  %970 = vst [vmem:[%s5 + $0xa4] sm:$0xf] %v842
  %971 = vst [vmem:[%s5 + $0xa8] sm:$0xf] %v843
  %972 = vst [vmem:[%s5 + $0xac] sm:$0xf] %v844
  %973 = vst [vmem:[%s5 + $0xb0] sm:$0xf] %v845
  %974 = vst [vmem:[%s5 + $0xb4] sm:$0xf] %v846
  %975 = vst [vmem:[%s5 + $0xb8] sm:$0xf] %v847
  %976 = vst [vmem:[%s5 + $0xbc] sm:$0xf] %v848
  %977 = vst [vmem:[%s5 + $0xc0] sm:$0xf] %v849
  %978 = vst [vmem:[%s5 + $0xc4] sm:$0xf] %v850
  %979 = vst [vmem:[%s5 + $0xc8] sm:$0xf] %v851
  %980 = vst [vmem:[%s5 + $0xcc] sm:$0xf] %v852
  %981 = vst [vmem:[%s5 + $0xd0] sm:$0xf] %v853
  %982 = vst [vmem:[%s5 + $0xd4] sm:$0xf] %v854
  %983 = vst [vmem:[%s5 + $0xd8] sm:$0xf] %v855
  %984 = vst [vmem:[%s5 + $0xdc] sm:$0xf] %v856
  %985 = vst [vmem:[%s5 + $0xe0] sm:$0xf] %v857
  %986 = vst [vmem:[%s5 + $0xe4] sm:$0xf] %v858
  %987 = vst [vmem:[%s5 + $0xe8] sm:$0xf] %v859
  %988 = vst [vmem:[%s5 + $0xec] sm:$0xf] %v860
  %989 = vst [vmem:[%s5 + $0xf0] sm:$0xf] %v861
  %990 = vst [vmem:[%s5 + $0xf4] sm:$0xf] %v862
  %991 = vst [vmem:[%s5 + $0xf8] sm:$0xf] %v863
  %992 = vst [vmem:[%s5 + $0xfc] sm:$0xf] %v864
  // Predicated region
  $region18: #{basic_block_forward.7} parent=0 // pred_check
    _
  $region19: #{basic_block_forward.7} parent=0 // pred_check_branch
    %994 = sbr.rel (0) target = $region21
  $region20: #{basic_block_forward.7} parent=0 // pred_region
    _
  $region21: #{basic_block_forward.7} parent=0 // pred_fallthru
    _
  // Predicated region
  $region22: #{basic_block_forward.7} parent=0 // pred_check
    _
  $region23: #{basic_block_forward.7} parent=0 // pred_check_branch
    %996 = sbr.rel (0) target = $region25
  $region24: #{basic_block_forward.7} parent=0 // pred_region
    _
  $region25: #{basic_block_forward.7} parent=0 // pred_fallthru
    _
  // Predicated region
  $region26: #{basic_block_forward.7} parent=0 // pred_check
    _
  $region27: #{basic_block_forward.7} parent=0 // pred_check_branch
    %998 = sbr.rel (0) target = $region29
  $region28: #{basic_block_forward.7} parent=0 // pred_region
    _
  $region29: #{basic_block_forward.7} parent=0 // pred_fallthru
    _
  // Predicated region
  $region30: #{basic_block_forward.7} parent=0 // pred_check
    _
  $region31: #{basic_block_forward.7} parent=0 // pred_check_branch
    %1000 = sbr.rel (0) target = $region33
  $region32: #{basic_block_forward.7} parent=0 // pred_region
    _
  $region33: #{basic_block_forward.7} parent=0 // pred_fallthru
    _

// kernel: basic_block_forward.6
$region0: #{basic_block_forward.6}
  #allocation0 [shape = 'u32[]', space=smem, size = 0x4, offset = 0x4, fixed_abs, tag = 'smem constant byte address 0x4 - core index']
  #allocation1 [shape = 'u32[144,128]{1,0:T(1,128)}', space=vmem, size = 0x12000, scoped, tag = 'internal scratch']
  %s0 = inlined_call_operand.vmem [shape: bf16[512,896], index: 0, kind: input, shape index: {}]
  %s1 = inlined_call_operand.vmem [shape: bf16[896,128], index: 1, kind: input, shape index: {}]
  %s2 = inlined_call_operand.vmem [shape: bf16[896,128], index: 2, kind: input, shape index: {}]
  %s3 = inlined_call_operand.vmem [shape: f32[512,128], index: 3, kind: output, shape index: {0}]
  %s4 = inlined_call_operand.vmem [shape: f32[16,128], index: 4, kind: output, shape index: {1}]
  %5 = xla_tuple %s3, %s4
  %s6 = sld [smem:[#allocation0]]
  $region53: #{basic_block_forward.6} parent=0
    _
  %s8 = ssub.s32 1, %s6
  %s9 = scalar_select 0, %s8, %s6
  loop: start=0, step=1, limit=4
  $region2: #{basic_block_forward.6} parent=0 // loop_pre_header
    _
  $region3: #{basic_block_forward.6} parent=0 // loop_header
    %s11 = sphi 0, %s15
    %p12 = scmp.ge.s32.totalorder %s11, 4
    %s21 = sphi 0, %s23
    %s24 = sphi 0, %s21
    %s25 = sphi 0, %s24
    %s41 = sphi 0, %s25
    %s45 = sphi 0, %s45
    %s47 = sphi 0, %s45
    %s48 = sphi 0, %s47
    %s62 = sphi 0, %s48
    %s66 = sphi 0, %s66
    %s68 = sphi 0, %s66
    %s69 = sphi 0, %s68
    %s83 = sphi 0, %s69
    %s89 = sphi 0, %s91
    %s92 = sphi 0, %s89
    %s93 = sphi 0, %s92
    %s109 = sphi 0, %s93
    %s115 = sphi 0, %s117
    %s118 = sphi 0, %s115
    %s119 = sphi 0, %s118
    %s135 = sphi 0, %s119
  $region4: #{basic_block_forward.6} parent=0 // loop_header_branch
    %14 = sbr.rel (%p12) target = $region8
  $region5: #{basic_block_forward.6} parent=0 // loop_body
    %s16 = ssub.s32 %s11, 1
    %s17 = ssub.s32 %s11, 2
    %s18 = sadd.s32 %s11, 1
    %s19 = ssub.s32 %s11, %s18
    %p20 = scmp.eq.s32.totalorder %s19, 0
    %s22 = sadd.s32 %s21, 1
    %s23 = scalar_select %p20, %s21, %s22
    %p26 = pneg %p20
    %p27 = scmp.eq.s32.totalorder %s11, 1
    %p28 = por %p26, %p27
    %p29 = scmp.ne.s32.totalorder %s21, %s24
    %p30 = scmp.eq.s32.totalorder %s11, 0
    %p31 = por %p29, %p30
    %p32 = scmp.ne.s32.totalorder %s21, %s24
    %p33 = scmp.eq.s32.totalorder %s16, 1
    %p34 = por %p32, %p33
    %p35 = scmp.ne.s32.totalorder %s24, %s25
    %p36 = scmp.eq.s32.totalorder %s16, 0
    %p37 = por %p35, %p36
    %p38 = scmp.ne.s32.totalorder %s24, %s25
    %p39 = scmp.eq.s32.totalorder %s17, 1
    %p40 = por %p38, %p39
    %p42 = scmp.ne.s32.totalorder %s25, %s41
    %p43 = scmp.eq.s32.totalorder %s17, 0
    %p44 = por %p42, %p43
    %s46 = sadd.s32 %s45, 1
    %p49 = scmp.eq.s32.totalorder %s11, 1
    %p50 = scmp.ne.s32.totalorder %s45, %s47
    %p51 = scmp.eq.s32.totalorder %s11, 0
    %p52 = por %p50, %p51
    %p53 = scmp.ne.s32.totalorder %s45, %s47
    %p54 = scmp.eq.s32.totalorder %s16, 1
    %p55 = por %p53, %p54
    %p56 = scmp.ne.s32.totalorder %s47, %s48
    %p57 = scmp.eq.s32.totalorder %s16, 0
    %p58 = por %p56, %p57
    %p59 = scmp.ne.s32.totalorder %s47, %s48
    %p60 = scmp.eq.s32.totalorder %s17, 1
    %p61 = por %p59, %p60
    %p63 = scmp.ne.s32.totalorder %s48, %s62
    %p64 = scmp.eq.s32.totalorder %s17, 0
    %p65 = por %p63, %p64
    %s67 = sadd.s32 %s66, 1
    %p70 = scmp.eq.s32.totalorder %s11, 1
    %p71 = scmp.ne.s32.totalorder %s66, %s68
    %p72 = scmp.eq.s32.totalorder %s11, 0
    %p73 = por %p71, %p72
    %p74 = scmp.ne.s32.totalorder %s66, %s68
    %p75 = scmp.eq.s32.totalorder %s16, 1
    %p76 = por %p74, %p75
    %p77 = scmp.ne.s32.totalorder %s68, %s69
    %p78 = scmp.eq.s32.totalorder %s16, 0
    %p79 = por %p77, %p78
    %p80 = scmp.ne.s32.totalorder %s68, %s69
    %p81 = scmp.eq.s32.totalorder %s17, 1
    %p82 = por %p80, %p81
    %p84 = scmp.ne.s32.totalorder %s69, %s83
    %p85 = scmp.eq.s32.totalorder %s17, 0
    %p86 = por %p84, %p85
    %s87 = ssub.s32 %s11, %s18
    %p88 = scmp.eq.s32.totalorder %s87, 0
    %s90 = sadd.s32 %s89, 1
    %s91 = scalar_select %p88, %s89, %s90
    %p94 = pneg %p88
    %p95 = scmp.eq.s32.totalorder %s11, 1
    %p96 = por %p94, %p95
    %p97 = scmp.ne.s32.totalorder %s89, %s92
    %p98 = scmp.eq.s32.totalorder %s11, 0
    %p99 = por %p97, %p98
    %p100 = scmp.ne.s32.totalorder %s89, %s92
    %p101 = scmp.eq.s32.totalorder %s16, 1
    %p102 = por %p100, %p101
    %p103 = scmp.ne.s32.totalorder %s92, %s93
    %p104 = scmp.eq.s32.totalorder %s16, 0
    %p105 = por %p103, %p104
    %p106 = scmp.ne.s32.totalorder %s92, %s93
    %p107 = scmp.eq.s32.totalorder %s17, 1
    %p108 = por %p106, %p107
    %p110 = scmp.ne.s32.totalorder %s93, %s109
    %p111 = scmp.eq.s32.totalorder %s17, 0
    %p112 = por %p110, %p111
    %s113 = ssub.s32 %s11, %s18
    %p114 = scmp.eq.s32.totalorder %s113, 0
    %s116 = sadd.s32 %s115, 1
    %s117 = scalar_select %p114, %s115, %s116
    %p120 = pneg %p114
    %p121 = scmp.eq.s32.totalorder %s11, 1
    %p122 = por %p120, %p121
    %p123 = scmp.ne.s32.totalorder %s115, %s118
    %p124 = scmp.eq.s32.totalorder %s11, 0
    %p125 = por %p123, %p124
    %p126 = scmp.ne.s32.totalorder %s115, %s118
    %p127 = scmp.eq.s32.totalorder %s16, 1
    %p128 = por %p126, %p127
    %p129 = scmp.ne.s32.totalorder %s118, %s119
    %p130 = scmp.eq.s32.totalorder %s16, 0
    %p131 = por %p129, %p130
    %p132 = scmp.ne.s32.totalorder %s118, %s119
    %p133 = scmp.eq.s32.totalorder %s17, 1
    %p134 = por %p132, %p133
    %p136 = scmp.ne.s32.totalorder %s119, %s135
    %p137 = scmp.eq.s32.totalorder %s17, 0
    %p138 = por %p136, %p137
    %p139 = scmp.le.s32.totalorder 1, %s11
    %p140 = scmp.lt.s32.totalorder %s11, 3
    %p141 = pnand %p139, %p140
    %p142 = pneg %p141
    // Predicated region
    $region9: #{basic_block_forward.6} parent=5 // pred_check
      _
    $region10: #{basic_block_forward.6} parent=5 // pred_check_branch
      %144 = sbr.rel (%p141) target = $region12
    $region11: #{basic_block_forward.6} parent=5 // pred_region
      %s145 = ssub.s32 %s11, 1
      // Predicated region
      $region13: #{basic_block_forward.6} parent=11 // pred_check
        %p146 = pneg %p58
      $region14: #{basic_block_forward.6} parent=11 // pred_check_branch
        %148 = sbr.rel (%p146) target = $region16
      $region15: #{basic_block_forward.6} parent=11 // pred_region
        _
      $region16: #{basic_block_forward.6} parent=11 // pred_fallthru
        _
      // Predicated region
      $region17: #{basic_block_forward.6} parent=11 // pred_check
        %p149 = pneg %p79
      $region18: #{basic_block_forward.6} parent=11 // pred_check_branch
        %151 = sbr.rel (%p149) target = $region20
      $region19: #{basic_block_forward.6} parent=11 // pred_region
        _
      $region20: #{basic_block_forward.6} parent=11 // pred_fallthru
        _
    $region12: #{basic_block_forward.6} parent=5 // pred_fallthru
      _
    %p152 = scmp.lt.s32.totalorder %s11, 2
    // Predicated region
    $region21: #{basic_block_forward.6} parent=5 // pred_check
      %p153 = pneg %p152
    $region22: #{basic_block_forward.6} parent=5 // pred_check_branch
      %155 = sbr.rel (%p153) target = $region24
    $region23: #{basic_block_forward.6} parent=5 // pred_region
      // Predicated region
      $region25: #{basic_block_forward.6} parent=23 // pred_check
        %p156 = pneg %p31
      $region26: #{basic_block_forward.6} parent=23 // pred_check_branch
        %158 = sbr.rel (%p156) target = $region28
      $region27: #{basic_block_forward.6} parent=23 // pred_region
        %s159 = smul.u32 32, %s11
        %p160 = scmp.lt.s32.totalorder %s159, 63
        %s161 = scalar_select %p160, %s159, 63
        %s162 = smul.addr %s161, 7
        %s163 = smul.addr %s162, 4
        %s164 = scalar_lea.vmem %s0, %s163
        %s165 = smul.u32 32, %s11
      $region28: #{basic_block_forward.6} parent=23 // pred_fallthru
        _
    $region24: #{basic_block_forward.6} parent=5 // pred_fallthru
      _
    %p166 = scmp.le.s32.totalorder 1, %s11
    %p167 = scmp.lt.s32.totalorder %s11, 3
    %p168 = pnand %p166, %p167
    %p169 = pneg %p168
    // Predicated region
    $region29: #{basic_block_forward.6} parent=5 // pred_check
      _
    $region30: #{basic_block_forward.6} parent=5 // pred_check_branch
      %171 = sbr.rel (%p168) target = $region32
    $region31: #{basic_block_forward.6} parent=5 // pred_region
      %s172 = ssub.s32 %s11, 1
      %s173 = smul.u32 32, %s16
      %p174 = scmp.lt.s32.totalorder %s173, 63
      %s175 = scalar_select %p174, %s173, 63
      %s176 = smul.addr %s175, 7
      %s177 = smul.addr %s176, 4
      %s178 = scalar_lea.vmem %s0, %s177
      %p179 = pneg %p37
      %p180 = pneg %p34
      %p181 = pneg %p58
      %p182 = pneg %p55
      %p183 = pneg %p79
      %p184 = pneg %p76
      %p185 = pneg %p105
      %p186 = pneg %p102
      %s187 = smul.u32 32, %s16
      %p188 = scmp.lt.s32.totalorder %s187, 63
      %s189 = scalar_select %p188, %s187, 63
      %s190 = smul.addr %s189, 8
      %s191 = scalar_lea.vmem %s3, %s190
      %p192 = pneg %p131
      %p193 = pneg %p128
      %p194 = scmp.lt.s32.totalorder %s16, 1
      %s195 = scalar_select %p194, %s16, 1
      %s196 = smul.addr %s195, 8
      %s197 = scalar_lea.vmem %s4, %s196
      %s198 = smul.u32 32, %s16
      %p199 = scmp.lt.s32.totalorder %s198, 63
      %s200 = scalar_select %p199, %s198, 63
      %s201 = smul.addr %s200, 7
      %s202 = smul.addr %s201, 4
      %s203 = scalar_lea.vmem %s0, %s202
      %s204 = smul.u32 32, %s16
      %s205 = smul.u32 32, %s16
      %p206 = scmp.lt.s32.totalorder %s205, 63
      %s207 = scalar_select %p206, %s205, 63
      %s208 = smul.addr %s207, 8
      %s209 = scalar_lea.vmem %s3, %s208
      %s210 = smul.u32 32, %s16
      %p211 = scmp.lt.s32.totalorder %s16, 1
      %s212 = scalar_select %p211, %s16, 1
      %s213 = smul.addr %s212, 8
      %s214 = scalar_lea.vmem %s4, %s213
      %v216 = vld [vmem:[%s203] sm:$0xff]
      %v217 = vld [vmem:[%s203 + $0x8] sm:$0xff]
      %v218 = vld [vmem:[%s203 + $0x10] sm:$0xff]
      %v219 = vld [vmem:[%s203 + $0x18] sm:$0xf]
      %v220 = vld [vmem:[%s203 + $0x1c] sm:$0xff]
      %v221 = vld [vmem:[%s203 + $0x24] sm:$0xff]
      %v222 = vld [vmem:[%s203 + $0x2c] sm:$0xff]
      %v223 = vld [vmem:[%s203 + $0x34] sm:$0xf]
      %v224 = vld [vmem:[%s203 + $0x38] sm:$0xff]
      %v225 = vld [vmem:[%s203 + $0x40] sm:$0xff]
      %v226 = vld [vmem:[%s203 + $0x48] sm:$0xff]
      %v227 = vld [vmem:[%s203 + $0x50] sm:$0xf]
      %v228 = vld [vmem:[%s203 + $0x54] sm:$0xff]
      %v229 = vld [vmem:[%s203 + $0x5c] sm:$0xff]
      %v230 = vld [vmem:[%s203 + $0x64] sm:$0xff]
      %v231 = vld [vmem:[%s203 + $0x6c] sm:$0xf]
      %v232 = vld [vmem:[%s203 + $0x70] sm:$0xff]
      %v233 = vld [vmem:[%s203 + $0x78] sm:$0xff]
      %v234 = vld [vmem:[%s203 + $0x80] sm:$0xff]
      %v235 = vld [vmem:[%s203 + $0x88] sm:$0xf]
      %v236 = vld [vmem:[%s203 + $0x8c] sm:$0xff]
      %v237 = vld [vmem:[%s203 + $0x94] sm:$0xff]
      %v238 = vld [vmem:[%s203 + $0x9c] sm:$0xff]
      %v239 = vld [vmem:[%s203 + $0xa4] sm:$0xf]
      %v240 = vld [vmem:[%s203 + $0xa8] sm:$0xff]
      %v241 = vld [vmem:[%s203 + $0xb0] sm:$0xff]
      %v242 = vld [vmem:[%s203 + $0xb8] sm:$0xff]
      %v243 = vld [vmem:[%s203 + $0xc0] sm:$0xf]
      %v244 = vld [vmem:[%s203 + $0xc4] sm:$0xff]
      %v245 = vld [vmem:[%s203 + $0xcc] sm:$0xff]
      %v246 = vld [vmem:[%s203 + $0xd4] sm:$0xff]
      %v247 = vld [vmem:[%s203 + $0xdc] sm:$0xf]
      %v248 = vld [vmem:[%s203 + $0xe0] sm:$0xff]
      %v249 = vld [vmem:[%s203 + $0xe8] sm:$0xff]
      %v250 = vld [vmem:[%s203 + $0xf0] sm:$0xff]
      %v251 = vld [vmem:[%s203 + $0xf8] sm:$0xf]
      %v252 = vld [vmem:[%s203 + $0xfc] sm:$0xff]
      %v253 = vld [vmem:[%s203 + $0x104] sm:$0xff]
      %v254 = vld [vmem:[%s203 + $0x10c] sm:$0xff]
      %v255 = vld [vmem:[%s203 + $0x114] sm:$0xf]
      %v256 = vld [vmem:[%s203 + $0x118] sm:$0xff]
      %v257 = vld [vmem:[%s203 + $0x120] sm:$0xff]
      %v258 = vld [vmem:[%s203 + $0x128] sm:$0xff]
      %v259 = vld [vmem:[%s203 + $0x130] sm:$0xf]
      %v260 = vld [vmem:[%s203 + $0x134] sm:$0xff]
      %v261 = vld [vmem:[%s203 + $0x13c] sm:$0xff]
      %v262 = vld [vmem:[%s203 + $0x144] sm:$0xff]
      %v263 = vld [vmem:[%s203 + $0x14c] sm:$0xf]
      %v264 = vld [vmem:[%s203 + $0x150] sm:$0xff]
      %v265 = vld [vmem:[%s203 + $0x158] sm:$0xff]
      %v266 = vld [vmem:[%s203 + $0x160] sm:$0xff]
      %v267 = vld [vmem:[%s203 + $0x168] sm:$0xf]
      %v268 = vld [vmem:[%s203 + $0x16c] sm:$0xff]
      %v269 = vld [vmem:[%s203 + $0x174] sm:$0xff]
      %v270 = vld [vmem:[%s203 + $0x17c] sm:$0xff]
      %v271 = vld [vmem:[%s203 + $0x184] sm:$0xf]
      %v272 = vld [vmem:[%s203 + $0x188] sm:$0xff]
      %v273 = vld [vmem:[%s203 + $0x190] sm:$0xff]
      %v274 = vld [vmem:[%s203 + $0x198] sm:$0xff]
      %v275 = vld [vmem:[%s203 + $0x1a0] sm:$0xf]
      %v276 = vld [vmem:[%s203 + $0x1a4] sm:$0xff]
      %v277 = vld [vmem:[%s203 + $0x1ac] sm:$0xff]
      %v278 = vld [vmem:[%s203 + $0x1b4] sm:$0xff]
      %v279 = vld [vmem:[%s203 + $0x1bc] sm:$0xf]
      %v280 = vld [vmem:[%s203 + $0x1c0] sm:$0xff]
      %v281 = vld [vmem:[%s203 + $0x1c8] sm:$0xff]
      %v282 = vld [vmem:[%s203 + $0x1d0] sm:$0xff]
      %v283 = vld [vmem:[%s203 + $0x1d8] sm:$0xf]
      %v284 = vld [vmem:[%s203 + $0x1dc] sm:$0xff]
      %v285 = vld [vmem:[%s203 + $0x1e4] sm:$0xff]
      %v286 = vld [vmem:[%s203 + $0x1ec] sm:$0xff]
      %v287 = vld [vmem:[%s203 + $0x1f4] sm:$0xf]
      %v288 = vld [vmem:[%s203 + $0x1f8] sm:$0xff]
      %v289 = vld [vmem:[%s203 + $0x200] sm:$0xff]
      %v290 = vld [vmem:[%s203 + $0x208] sm:$0xff]
      %v291 = vld [vmem:[%s203 + $0x210] sm:$0xf]
      %v292 = vld [vmem:[%s203 + $0x214] sm:$0xff]
      %v293 = vld [vmem:[%s203 + $0x21c] sm:$0xff]
      %v294 = vld [vmem:[%s203 + $0x224] sm:$0xff]
      %v295 = vld [vmem:[%s203 + $0x22c] sm:$0xf]
      %v296 = vld [vmem:[%s203 + $0x230] sm:$0xff]
      %v297 = vld [vmem:[%s203 + $0x238] sm:$0xff]
      %v298 = vld [vmem:[%s203 + $0x240] sm:$0xff]
      %v299 = vld [vmem:[%s203 + $0x248] sm:$0xf]
      %v300 = vld [vmem:[%s203 + $0x24c] sm:$0xff]
      %v301 = vld [vmem:[%s203 + $0x254] sm:$0xff]
      %v302 = vld [vmem:[%s203 + $0x25c] sm:$0xff]
      %v303 = vld [vmem:[%s203 + $0x264] sm:$0xf]
      %v304 = vld [vmem:[%s203 + $0x268] sm:$0xff]
      %v305 = vld [vmem:[%s203 + $0x270] sm:$0xff]
      %v306 = vld [vmem:[%s203 + $0x278] sm:$0xff]
      %v307 = vld [vmem:[%s203 + $0x280] sm:$0xf]
      %v308 = vld [vmem:[%s203 + $0x284] sm:$0xff]
      %v309 = vld [vmem:[%s203 + $0x28c] sm:$0xff]
      %v310 = vld [vmem:[%s203 + $0x294] sm:$0xff]
      %v311 = vld [vmem:[%s203 + $0x29c] sm:$0xf]
      %v312 = vld [vmem:[%s203 + $0x2a0] sm:$0xff]
      %v313 = vld [vmem:[%s203 + $0x2a8] sm:$0xff]
      %v314 = vld [vmem:[%s203 + $0x2b0] sm:$0xff]
      %v315 = vld [vmem:[%s203 + $0x2b8] sm:$0xf]
      %v316 = vld [vmem:[%s203 + $0x2bc] sm:$0xff]
      %v317 = vld [vmem:[%s203 + $0x2c4] sm:$0xff]
      %v318 = vld [vmem:[%s203 + $0x2cc] sm:$0xff]
      %v319 = vld [vmem:[%s203 + $0x2d4] sm:$0xf]
      %v320 = vld [vmem:[%s203 + $0x2d8] sm:$0xff]
      %v321 = vld [vmem:[%s203 + $0x2e0] sm:$0xff]
      %v322 = vld [vmem:[%s203 + $0x2e8] sm:$0xff]
      %v323 = vld [vmem:[%s203 + $0x2f0] sm:$0xf]
      %v324 = vld [vmem:[%s203 + $0x2f4] sm:$0xff]
      %v325 = vld [vmem:[%s203 + $0x2fc] sm:$0xff]
      %v326 = vld [vmem:[%s203 + $0x304] sm:$0xff]
      %v327 = vld [vmem:[%s203 + $0x30c] sm:$0xf]
      %v328 = vld [vmem:[%s203 + $0x310] sm:$0xff]
      %v329 = vld [vmem:[%s203 + $0x318] sm:$0xff]
      %v330 = vld [vmem:[%s203 + $0x320] sm:$0xff]
      %v331 = vld [vmem:[%s203 + $0x328] sm:$0xf]
      %v332 = vld [vmem:[%s203 + $0x32c] sm:$0xff]
      %v333 = vld [vmem:[%s203 + $0x334] sm:$0xff]
      %v334 = vld [vmem:[%s203 + $0x33c] sm:$0xff]
      %v335 = vld [vmem:[%s203 + $0x344] sm:$0xf]
      %v336 = vld [vmem:[%s203 + $0x348] sm:$0xff]
      %v337 = vld [vmem:[%s203 + $0x350] sm:$0xff]
      %v338 = vld [vmem:[%s203 + $0x358] sm:$0xff]
      %v339 = vld [vmem:[%s203 + $0x360] sm:$0xf]
      %v340 = vld [vmem:[%s203 + $0x364] sm:$0xff]
      %v341 = vld [vmem:[%s203 + $0x36c] sm:$0xff]
      %v342 = vld [vmem:[%s203 + $0x374] sm:$0xff]
      %v343 = vld [vmem:[%s203 + $0x37c] sm:$0xf]
      %v344 = vld [vmem:[%s1] sm:$0xf]
      %v345 = vld [vmem:[%s1 + $0x4] sm:$0xf]
      %v346 = vld [vmem:[%s1 + $0x8] sm:$0xf]
      %v347 = vld [vmem:[%s1 + $0xc] sm:$0xf]
      %v348 = vld [vmem:[%s1 + $0x10] sm:$0xf]
      %v349 = vld [vmem:[%s1 + $0x14] sm:$0xf]
      %v350 = vld [vmem:[%s1 + $0x18] sm:$0xf]
      %v351 = vld [vmem:[%s1 + $0x1c] sm:$0xf]
      %v352 = vld [vmem:[%s1 + $0x20] sm:$0xf]
      %v353 = vld [vmem:[%s1 + $0x24] sm:$0xf]
      %v354 = vld [vmem:[%s1 + $0x28] sm:$0xf]
      %v355 = vld [vmem:[%s1 + $0x2c] sm:$0xf]
      %v356 = vld [vmem:[%s1 + $0x30] sm:$0xf]
      %v357 = vld [vmem:[%s1 + $0x34] sm:$0xf]
      %v358 = vld [vmem:[%s1 + $0x38] sm:$0xf]
      %v359 = vld [vmem:[%s1 + $0x3c] sm:$0xf]
      %v360 = vld [vmem:[%s1 + $0x40] sm:$0xf]
      %v361 = vld [vmem:[%s1 + $0x44] sm:$0xf]
      %v362 = vld [vmem:[%s1 + $0x48] sm:$0xf]
      %v363 = vld [vmem:[%s1 + $0x4c] sm:$0xf]
      %v364 = vld [vmem:[%s1 + $0x50] sm:$0xf]
      %v365 = vld [vmem:[%s1 + $0x54] sm:$0xf]
      %v366 = vld [vmem:[%s1 + $0x58] sm:$0xf]
      %v367 = vld [vmem:[%s1 + $0x5c] sm:$0xf]
      %v368 = vld [vmem:[%s1 + $0x60] sm:$0xf]
      %v369 = vld [vmem:[%s1 + $0x64] sm:$0xf]
      %v370 = vld [vmem:[%s1 + $0x68] sm:$0xf]
      %v371 = vld [vmem:[%s1 + $0x6c] sm:$0xf]
      %v372 = vld [vmem:[%s1 + $0x70] sm:$0xf]
      %v373 = vld [vmem:[%s1 + $0x74] sm:$0xf]
      %v374 = vld [vmem:[%s1 + $0x78] sm:$0xf]
      %v375 = vld [vmem:[%s1 + $0x7c] sm:$0xf]
      %v376 = vld [vmem:[%s1 + $0x80] sm:$0xf]
      %v377 = vld [vmem:[%s1 + $0x84] sm:$0xf]
      %v378 = vld [vmem:[%s1 + $0x88] sm:$0xf]
      %v379 = vld [vmem:[%s1 + $0x8c] sm:$0xf]
      %v380 = vld [vmem:[%s1 + $0x90] sm:$0xf]
      %v381 = vld [vmem:[%s1 + $0x94] sm:$0xf]
      %v382 = vld [vmem:[%s1 + $0x98] sm:$0xf]
      %v383 = vld [vmem:[%s1 + $0x9c] sm:$0xf]
      %v384 = vld [vmem:[%s1 + $0xa0] sm:$0xf]
      %v385 = vld [vmem:[%s1 + $0xa4] sm:$0xf]
      %v386 = vld [vmem:[%s1 + $0xa8] sm:$0xf]
      %v387 = vld [vmem:[%s1 + $0xac] sm:$0xf]
      %v388 = vld [vmem:[%s1 + $0xb0] sm:$0xf]
      %v389 = vld [vmem:[%s1 + $0xb4] sm:$0xf]
      %v390 = vld [vmem:[%s1 + $0xb8] sm:$0xf]
      %v391 = vld [vmem:[%s1 + $0xbc] sm:$0xf]
      %v392 = vld [vmem:[%s1 + $0xc0] sm:$0xf]
      %v393 = vld [vmem:[%s1 + $0xc4] sm:$0xf]
      %v394 = vld [vmem:[%s1 + $0xc8] sm:$0xf]
      %v395 = vld [vmem:[%s1 + $0xcc] sm:$0xf]
      %v396 = vld [vmem:[%s1 + $0xd0] sm:$0xf]
      %v397 = vld [vmem:[%s1 + $0xd4] sm:$0xf]
      %v398 = vld [vmem:[%s1 + $0xd8] sm:$0xf]
      %v399 = vld [vmem:[%s1 + $0xdc] sm:$0xf]
      %v400 = vld [vmem:[%s1 + $0xe0] sm:$0xf]
      %v401 = vld [vmem:[%s1 + $0xe4] sm:$0xf]
      %v402 = vld [vmem:[%s1 + $0xe8] sm:$0xf]
      %v403 = vld [vmem:[%s1 + $0xec] sm:$0xf]
      %v404 = vld [vmem:[%s1 + $0xf0] sm:$0xf]
      %v405 = vld [vmem:[%s1 + $0xf4] sm:$0xf]
      %v406 = vld [vmem:[%s1 + $0xf8] sm:$0xf]
      %v407 = vld [vmem:[%s1 + $0xfc] sm:$0xf]
      %v408 = vld [vmem:[%s1 + $0x100] sm:$0xf]
      %v409 = vld [vmem:[%s1 + $0x104] sm:$0xf]
      %v410 = vld [vmem:[%s1 + $0x108] sm:$0xf]
      %v411 = vld [vmem:[%s1 + $0x10c] sm:$0xf]
      %v412 = vld [vmem:[%s1 + $0x110] sm:$0xf]
      %v413 = vld [vmem:[%s1 + $0x114] sm:$0xf]
      %v414 = vld [vmem:[%s1 + $0x118] sm:$0xf]
      %v415 = vld [vmem:[%s1 + $0x11c] sm:$0xf]
      %v416 = vld [vmem:[%s1 + $0x120] sm:$0xf]
      %v417 = vld [vmem:[%s1 + $0x124] sm:$0xf]
      %v418 = vld [vmem:[%s1 + $0x128] sm:$0xf]
      %v419 = vld [vmem:[%s1 + $0x12c] sm:$0xf]
      %v420 = vld [vmem:[%s1 + $0x130] sm:$0xf]
      %v421 = vld [vmem:[%s1 + $0x134] sm:$0xf]
      %v422 = vld [vmem:[%s1 + $0x138] sm:$0xf]
      %v423 = vld [vmem:[%s1 + $0x13c] sm:$0xf]
      %v424 = vld [vmem:[%s1 + $0x140] sm:$0xf]
      %v425 = vld [vmem:[%s1 + $0x144] sm:$0xf]
      %v426 = vld [vmem:[%s1 + $0x148] sm:$0xf]
      %v427 = vld [vmem:[%s1 + $0x14c] sm:$0xf]
      %v428 = vld [vmem:[%s1 + $0x150] sm:$0xf]
      %v429 = vld [vmem:[%s1 + $0x154] sm:$0xf]
      %v430 = vld [vmem:[%s1 + $0x158] sm:$0xf]
      %v431 = vld [vmem:[%s1 + $0x15c] sm:$0xf]
      %v432 = vld [vmem:[%s1 + $0x160] sm:$0xf]
      %v433 = vld [vmem:[%s1 + $0x164] sm:$0xf]
      %v434 = vld [vmem:[%s1 + $0x168] sm:$0xf]
      %v435 = vld [vmem:[%s1 + $0x16c] sm:$0xf]
      %v436 = vld [vmem:[%s1 + $0x170] sm:$0xf]
      %v437 = vld [vmem:[%s1 + $0x174] sm:$0xf]
      %v438 = vld [vmem:[%s1 + $0x178] sm:$0xf]
      %v439 = vld [vmem:[%s1 + $0x17c] sm:$0xf]
      %v440 = vld [vmem:[%s1 + $0x180] sm:$0xf]
      %v441 = vld [vmem:[%s1 + $0x184] sm:$0xf]
      %v442 = vld [vmem:[%s1 + $0x188] sm:$0xf]
      %v443 = vld [vmem:[%s1 + $0x18c] sm:$0xf]
      %v444 = vld [vmem:[%s1 + $0x190] sm:$0xf]
      %v445 = vld [vmem:[%s1 + $0x194] sm:$0xf]
      %v446 = vld [vmem:[%s1 + $0x198] sm:$0xf]
      %v447 = vld [vmem:[%s1 + $0x19c] sm:$0xf]
      %v448 = vld [vmem:[%s1 + $0x1a0] sm:$0xf]
      %v449 = vld [vmem:[%s1 + $0x1a4] sm:$0xf]
      %v450 = vld [vmem:[%s1 + $0x1a8] sm:$0xf]
      %v451 = vld [vmem:[%s1 + $0x1ac] sm:$0xf]
      %v452 = vld [vmem:[%s1 + $0x1b0] sm:$0xf]
      %v453 = vld [vmem:[%s1 + $0x1b4] sm:$0xf]
      %v454 = vld [vmem:[%s1 + $0x1b8] sm:$0xf]
      %v455 = vld [vmem:[%s1 + $0x1bc] sm:$0xf]
      %v456 = vld [vmem:[%s2] sm:$0xf]
      %v457 = vld [vmem:[%s2 + $0x4] sm:$0xf]
      %v458 = vld [vmem:[%s2 + $0x8] sm:$0xf]
      %v459 = vld [vmem:[%s2 + $0xc] sm:$0xf]
      %v460 = vld [vmem:[%s2 + $0x10] sm:$0xf]
      %v461 = vld [vmem:[%s2 + $0x14] sm:$0xf]
      %v462 = vld [vmem:[%s2 + $0x18] sm:$0xf]
      %v463 = vld [vmem:[%s2 + $0x1c] sm:$0xf]
      %v464 = vld [vmem:[%s2 + $0x20] sm:$0xf]
      %v465 = vld [vmem:[%s2 + $0x24] sm:$0xf]
      %v466 = vld [vmem:[%s2 + $0x28] sm:$0xf]
      %v467 = vld [vmem:[%s2 + $0x2c] sm:$0xf]
      %v468 = vld [vmem:[%s2 + $0x30] sm:$0xf]
      %v469 = vld [vmem:[%s2 + $0x34] sm:$0xf]
      %v470 = vld [vmem:[%s2 + $0x38] sm:$0xf]
      %v471 = vld [vmem:[%s2 + $0x3c] sm:$0xf]
      %v472 = vld [vmem:[%s2 + $0x40] sm:$0xf]
      %v473 = vld [vmem:[%s2 + $0x44] sm:$0xf]
      %v474 = vld [vmem:[%s2 + $0x48] sm:$0xf]
      %v475 = vld [vmem:[%s2 + $0x4c] sm:$0xf]
      %v476 = vld [vmem:[%s2 + $0x50] sm:$0xf]
      %v477 = vld [vmem:[%s2 + $0x54] sm:$0xf]
      %v478 = vld [vmem:[%s2 + $0x58] sm:$0xf]
      %v479 = vld [vmem:[%s2 + $0x5c] sm:$0xf]
      %v480 = vld [vmem:[%s2 + $0x60] sm:$0xf]
      %v481 = vld [vmem:[%s2 + $0x64] sm:$0xf]
      %v482 = vld [vmem:[%s2 + $0x68] sm:$0xf]
      %v483 = vld [vmem:[%s2 + $0x6c] sm:$0xf]
      %v484 = vld [vmem:[%s2 + $0x70] sm:$0xf]
      %v485 = vld [vmem:[%s2 + $0x74] sm:$0xf]
      %v486 = vld [vmem:[%s2 + $0x78] sm:$0xf]
      %v487 = vld [vmem:[%s2 + $0x7c] sm:$0xf]
      %v488 = vld [vmem:[%s2 + $0x80] sm:$0xf]
      %v489 = vld [vmem:[%s2 + $0x84] sm:$0xf]
      %v490 = vld [vmem:[%s2 + $0x88] sm:$0xf]
      %v491 = vld [vmem:[%s2 + $0x8c] sm:$0xf]
      %v492 = vld [vmem:[%s2 + $0x90] sm:$0xf]
      %v493 = vld [vmem:[%s2 + $0x94] sm:$0xf]
      %v494 = vld [vmem:[%s2 + $0x98] sm:$0xf]
      %v495 = vld [vmem:[%s2 + $0x9c] sm:$0xf]
      %v496 = vld [vmem:[%s2 + $0xa0] sm:$0xf]
      %v497 = vld [vmem:[%s2 + $0xa4] sm:$0xf]
      %v498 = vld [vmem:[%s2 + $0xa8] sm:$0xf]
      %v499 = vld [vmem:[%s2 + $0xac] sm:$0xf]
      %v500 = vld [vmem:[%s2 + $0xb0] sm:$0xf]
      %v501 = vld [vmem:[%s2 + $0xb4] sm:$0xf]
      %v502 = vld [vmem:[%s2 + $0xb8] sm:$0xf]
      %v503 = vld [vmem:[%s2 + $0xbc] sm:$0xf]
      %v504 = vld [vmem:[%s2 + $0xc0] sm:$0xf]
      %v505 = vld [vmem:[%s2 + $0xc4] sm:$0xf]
      %v506 = vld [vmem:[%s2 + $0xc8] sm:$0xf]
      %v507 = vld [vmem:[%s2 + $0xcc] sm:$0xf]
      %v508 = vld [vmem:[%s2 + $0xd0] sm:$0xf]
      %v509 = vld [vmem:[%s2 + $0xd4] sm:$0xf]
      %v510 = vld [vmem:[%s2 + $0xd8] sm:$0xf]
      %v511 = vld [vmem:[%s2 + $0xdc] sm:$0xf]
      %v512 = vld [vmem:[%s2 + $0xe0] sm:$0xf]
      %v513 = vld [vmem:[%s2 + $0xe4] sm:$0xf]
      %v514 = vld [vmem:[%s2 + $0xe8] sm:$0xf]
      %v515 = vld [vmem:[%s2 + $0xec] sm:$0xf]
      %v516 = vld [vmem:[%s2 + $0xf0] sm:$0xf]
      %v517 = vld [vmem:[%s2 + $0xf4] sm:$0xf]
      %v518 = vld [vmem:[%s2 + $0xf8] sm:$0xf]
      %v519 = vld [vmem:[%s2 + $0xfc] sm:$0xf]
      %v520 = vld [vmem:[%s2 + $0x100] sm:$0xf]
      %v521 = vld [vmem:[%s2 + $0x104] sm:$0xf]
      %v522 = vld [vmem:[%s2 + $0x108] sm:$0xf]
      %v523 = vld [vmem:[%s2 + $0x10c] sm:$0xf]
      %v524 = vld [vmem:[%s2 + $0x110] sm:$0xf]
      %v525 = vld [vmem:[%s2 + $0x114] sm:$0xf]
      %v526 = vld [vmem:[%s2 + $0x118] sm:$0xf]
      %v527 = vld [vmem:[%s2 + $0x11c] sm:$0xf]
      %v528 = vld [vmem:[%s2 + $0x120] sm:$0xf]
      %v529 = vld [vmem:[%s2 + $0x124] sm:$0xf]
      %v530 = vld [vmem:[%s2 + $0x128] sm:$0xf]
      %v531 = vld [vmem:[%s2 + $0x12c] sm:$0xf]
      %v532 = vld [vmem:[%s2 + $0x130] sm:$0xf]
      %v533 = vld [vmem:[%s2 + $0x134] sm:$0xf]
      %v534 = vld [vmem:[%s2 + $0x138] sm:$0xf]
      %v535 = vld [vmem:[%s2 + $0x13c] sm:$0xf]
      %v536 = vld [vmem:[%s2 + $0x140] sm:$0xf]
      %v537 = vld [vmem:[%s2 + $0x144] sm:$0xf]
      %v538 = vld [vmem:[%s2 + $0x148] sm:$0xf]
      %v539 = vld [vmem:[%s2 + $0x14c] sm:$0xf]
      %v540 = vld [vmem:[%s2 + $0x150] sm:$0xf]
      %v541 = vld [vmem:[%s2 + $0x154] sm:$0xf]
      %v542 = vld [vmem:[%s2 + $0x158] sm:$0xf]
      %v543 = vld [vmem:[%s2 + $0x15c] sm:$0xf]
      %v544 = vld [vmem:[%s2 + $0x160] sm:$0xf]
      %v545 = vld [vmem:[%s2 + $0x164] sm:$0xf]
      %v546 = vld [vmem:[%s2 + $0x168] sm:$0xf]
      %v547 = vld [vmem:[%s2 + $0x16c] sm:$0xf]
      %v548 = vld [vmem:[%s2 + $0x170] sm:$0xf]
      %v549 = vld [vmem:[%s2 + $0x174] sm:$0xf]
      %v550 = vld [vmem:[%s2 + $0x178] sm:$0xf]
      %v551 = vld [vmem:[%s2 + $0x17c] sm:$0xf]
      %v552 = vld [vmem:[%s2 + $0x180] sm:$0xf]
      %v553 = vld [vmem:[%s2 + $0x184] sm:$0xf]
      %v554 = vld [vmem:[%s2 + $0x188] sm:$0xf]
      %v555 = vld [vmem:[%s2 + $0x18c] sm:$0xf]
      %v556 = vld [vmem:[%s2 + $0x190] sm:$0xf]
      %v557 = vld [vmem:[%s2 + $0x194] sm:$0xf]
      %v558 = vld [vmem:[%s2 + $0x198] sm:$0xf]
      %v559 = vld [vmem:[%s2 + $0x19c] sm:$0xf]
      %v560 = vld [vmem:[%s2 + $0x1a0] sm:$0xf]
      %v561 = vld [vmem:[%s2 + $0x1a4] sm:$0xf]
      %v562 = vld [vmem:[%s2 + $0x1a8] sm:$0xf]
      %v563 = vld [vmem:[%s2 + $0x1ac] sm:$0xf]
      %v564 = vld [vmem:[%s2 + $0x1b0] sm:$0xf]
      %v565 = vld [vmem:[%s2 + $0x1b4] sm:$0xf]
      %v566 = vld [vmem:[%s2 + $0x1b8] sm:$0xf]
      %v567 = vld [vmem:[%s2 + $0x1bc] sm:$0xf]
      %v696 = vunpack.c.l.b16 %v216
      %v697 = vunpack.c.h.b16 %v216
      %v698 = vunpack.c.l.b16 %v217
      %v699 = vunpack.c.h.b16 %v217
      %v700 = vunpack.c.l.b16 %v218
      %v701 = vunpack.c.h.b16 %v218
      %v702 = vunpack.c.l.b16 %v219
      %v703 = vunpack.c.l.b16 %v220
      %v704 = vunpack.c.h.b16 %v220
      %v705 = vunpack.c.l.b16 %v221
      %v706 = vunpack.c.h.b16 %v221
      %v707 = vunpack.c.l.b16 %v222
      %v708 = vunpack.c.h.b16 %v222
      %v709 = vunpack.c.l.b16 %v223
      %v710 = vunpack.c.l.b16 %v224
      %v711 = vunpack.c.h.b16 %v224
      %v712 = vunpack.c.l.b16 %v225
      %v713 = vunpack.c.h.b16 %v225
      %v714 = vunpack.c.l.b16 %v226
      %v715 = vunpack.c.h.b16 %v226
      %v716 = vunpack.c.l.b16 %v227
      %v717 = vunpack.c.l.b16 %v228
      %v718 = vunpack.c.h.b16 %v228
      %v719 = vunpack.c.l.b16 %v229
      %v720 = vunpack.c.h.b16 %v229
      %v721 = vunpack.c.l.b16 %v230
      %v722 = vunpack.c.h.b16 %v230
      %v723 = vunpack.c.l.b16 %v231
      %v724 = vunpack.c.l.b16 %v232
      %v725 = vunpack.c.h.b16 %v232
      %v726 = vunpack.c.l.b16 %v233
      %v727 = vunpack.c.h.b16 %v233
      %v728 = vunpack.c.l.b16 %v234
      %v729 = vunpack.c.h.b16 %v234
      %v730 = vunpack.c.l.b16 %v235
      %v731 = vunpack.c.l.b16 %v236
      %v732 = vunpack.c.h.b16 %v236
      %v733 = vunpack.c.l.b16 %v237
      %v734 = vunpack.c.h.b16 %v237
      %v735 = vunpack.c.l.b16 %v238
      %v736 = vunpack.c.h.b16 %v238
      %v737 = vunpack.c.l.b16 %v239
      %v738 = vunpack.c.l.b16 %v240
      %v739 = vunpack.c.h.b16 %v240
      %v740 = vunpack.c.l.b16 %v241
      %v741 = vunpack.c.h.b16 %v241
      %v742 = vunpack.c.l.b16 %v242
      %v743 = vunpack.c.h.b16 %v242
      %v744 = vunpack.c.l.b16 %v243
      %v745 = vunpack.c.l.b16 %v244
      %v746 = vunpack.c.h.b16 %v244
      %v747 = vunpack.c.l.b16 %v245
      %v748 = vunpack.c.h.b16 %v245
      %v749 = vunpack.c.l.b16 %v246
      %v750 = vunpack.c.h.b16 %v246
      %v751 = vunpack.c.l.b16 %v247
      %v752 = vunpack.c.l.b16 %v248
      %v753 = vunpack.c.h.b16 %v248
      %v754 = vunpack.c.l.b16 %v249
      %v755 = vunpack.c.h.b16 %v249
      %v756 = vunpack.c.l.b16 %v250
      %v757 = vunpack.c.h.b16 %v250
      %v758 = vunpack.c.l.b16 %v251
      %v759 = vunpack.c.l.b16 %v252
      %v760 = vunpack.c.h.b16 %v252
      %v761 = vunpack.c.l.b16 %v253
      %v762 = vunpack.c.h.b16 %v253
      %v763 = vunpack.c.l.b16 %v254
      %v764 = vunpack.c.h.b16 %v254
      %v765 = vunpack.c.l.b16 %v255
      %v766 = vunpack.c.l.b16 %v256
      %v767 = vunpack.c.h.b16 %v256
      %v768 = vunpack.c.l.b16 %v257
      %v769 = vunpack.c.h.b16 %v257
      %v770 = vunpack.c.l.b16 %v258
      %v771 = vunpack.c.h.b16 %v258
      %v772 = vunpack.c.l.b16 %v259
      %v773 = vunpack.c.l.b16 %v260
      %v774 = vunpack.c.h.b16 %v260
      %v775 = vunpack.c.l.b16 %v261
      %v776 = vunpack.c.h.b16 %v261
      %v777 = vunpack.c.l.b16 %v262
      %v778 = vunpack.c.h.b16 %v262
      %v779 = vunpack.c.l.b16 %v263
      %v780 = vunpack.c.l.b16 %v264
      %v781 = vunpack.c.h.b16 %v264
      %v782 = vunpack.c.l.b16 %v265
      %v783 = vunpack.c.h.b16 %v265
      %v784 = vunpack.c.l.b16 %v266
      %v785 = vunpack.c.h.b16 %v266
      %v786 = vunpack.c.l.b16 %v267
      %v787 = vunpack.c.l.b16 %v268
      %v788 = vunpack.c.h.b16 %v268
      %v789 = vunpack.c.l.b16 %v269
      %v790 = vunpack.c.h.b16 %v269
      %v791 = vunpack.c.l.b16 %v270
      %v792 = vunpack.c.h.b16 %v270
      %v793 = vunpack.c.l.b16 %v271
      %v794 = vunpack.c.l.b16 %v272
      %v795 = vunpack.c.h.b16 %v272
      %v796 = vunpack.c.l.b16 %v273
      %v797 = vunpack.c.h.b16 %v273
      %v798 = vunpack.c.l.b16 %v274
      %v799 = vunpack.c.h.b16 %v274
      %v800 = vunpack.c.l.b16 %v275
      %v801 = vunpack.c.l.b16 %v276
      %v802 = vunpack.c.h.b16 %v276
      %v803 = vunpack.c.l.b16 %v277
      %v804 = vunpack.c.h.b16 %v277
      %v805 = vunpack.c.l.b16 %v278
      %v806 = vunpack.c.h.b16 %v278
      %v807 = vunpack.c.l.b16 %v279
      %v808 = vunpack.c.l.b16 %v280
      %v809 = vunpack.c.h.b16 %v280
      %v810 = vunpack.c.l.b16 %v281
      %v811 = vunpack.c.h.b16 %v281
      %v812 = vunpack.c.l.b16 %v282
      %v813 = vunpack.c.h.b16 %v282
      %v814 = vunpack.c.l.b16 %v283
      %v815 = vunpack.c.l.b16 %v284
      %v816 = vunpack.c.h.b16 %v284
      %v817 = vunpack.c.l.b16 %v285
      %v818 = vunpack.c.h.b16 %v285
      %v819 = vunpack.c.l.b16 %v286
      %v820 = vunpack.c.h.b16 %v286
      %v821 = vunpack.c.l.b16 %v287
      %v822 = vunpack.c.l.b16 %v288
      %v823 = vunpack.c.h.b16 %v288
      %v824 = vunpack.c.l.b16 %v289
      %v825 = vunpack.c.h.b16 %v289
      %v826 = vunpack.c.l.b16 %v290
      %v827 = vunpack.c.h.b16 %v290
      %v828 = vunpack.c.l.b16 %v291
      %v829 = vunpack.c.l.b16 %v292
      %v830 = vunpack.c.h.b16 %v292
      %v831 = vunpack.c.l.b16 %v293
      %v832 = vunpack.c.h.b16 %v293
      %v833 = vunpack.c.l.b16 %v294
      %v834 = vunpack.c.h.b16 %v294
      %v835 = vunpack.c.l.b16 %v295
      %v836 = vunpack.c.l.b16 %v296
      %v837 = vunpack.c.h.b16 %v296
      %v838 = vunpack.c.l.b16 %v297
      %v839 = vunpack.c.h.b16 %v297
      %v840 = vunpack.c.l.b16 %v298
      %v841 = vunpack.c.h.b16 %v298
      %v842 = vunpack.c.l.b16 %v299
      %v843 = vunpack.c.l.b16 %v300
      %v844 = vunpack.c.h.b16 %v300
      %v845 = vunpack.c.l.b16 %v301
      %v846 = vunpack.c.h.b16 %v301
      %v847 = vunpack.c.l.b16 %v302
      %v848 = vunpack.c.h.b16 %v302
      %v849 = vunpack.c.l.b16 %v303
      %v850 = vunpack.c.l.b16 %v304
      %v851 = vunpack.c.h.b16 %v304
      %v852 = vunpack.c.l.b16 %v305
      %v853 = vunpack.c.h.b16 %v305
      %v854 = vunpack.c.l.b16 %v306
      %v855 = vunpack.c.h.b16 %v306
      %v856 = vunpack.c.l.b16 %v307
      %v857 = vunpack.c.l.b16 %v308
      %v858 = vunpack.c.h.b16 %v308
      %v859 = vunpack.c.l.b16 %v309
      %v860 = vunpack.c.h.b16 %v309
      %v861 = vunpack.c.l.b16 %v310
      %v862 = vunpack.c.h.b16 %v310
      %v863 = vunpack.c.l.b16 %v311
      %v864 = vunpack.c.l.b16 %v312
      %v865 = vunpack.c.h.b16 %v312
      %v866 = vunpack.c.l.b16 %v313
      %v867 = vunpack.c.h.b16 %v313
      %v868 = vunpack.c.l.b16 %v314
      %v869 = vunpack.c.h.b16 %v314
      %v870 = vunpack.c.l.b16 %v315
      %v871 = vunpack.c.l.b16 %v316
      %v872 = vunpack.c.h.b16 %v316
      %v873 = vunpack.c.l.b16 %v317
      %v874 = vunpack.c.h.b16 %v317
      %v875 = vunpack.c.l.b16 %v318
      %v876 = vunpack.c.h.b16 %v318
      %v877 = vunpack.c.l.b16 %v319
      %v878 = vunpack.c.l.b16 %v320
      %v879 = vunpack.c.h.b16 %v320
      %v880 = vunpack.c.l.b16 %v321
      %v881 = vunpack.c.h.b16 %v321
      %v882 = vunpack.c.l.b16 %v322
      %v883 = vunpack.c.h.b16 %v322
      %v884 = vunpack.c.l.b16 %v323
      %v885 = vunpack.c.l.b16 %v324
      %v886 = vunpack.c.h.b16 %v324
      %v887 = vunpack.c.l.b16 %v325
      %v888 = vunpack.c.h.b16 %v325
      %v889 = vunpack.c.l.b16 %v326
      %v890 = vunpack.c.h.b16 %v326
      %v891 = vunpack.c.l.b16 %v327
      %v892 = vunpack.c.l.b16 %v328
      %v893 = vunpack.c.h.b16 %v328
      %v894 = vunpack.c.l.b16 %v329
      %v895 = vunpack.c.h.b16 %v329
      %v896 = vunpack.c.l.b16 %v330
      %v897 = vunpack.c.h.b16 %v330
      %v898 = vunpack.c.l.b16 %v331
      %v899 = vunpack.c.l.b16 %v332
      %v900 = vunpack.c.h.b16 %v332
      %v901 = vunpack.c.l.b16 %v333
      %v902 = vunpack.c.h.b16 %v333
      %v903 = vunpack.c.l.b16 %v334
      %v904 = vunpack.c.h.b16 %v334
      %v905 = vunpack.c.l.b16 %v335
      %v906 = vunpack.c.l.b16 %v336
      %v907 = vunpack.c.h.b16 %v336
      %v908 = vunpack.c.l.b16 %v337
      %v909 = vunpack.c.h.b16 %v337
      %v910 = vunpack.c.l.b16 %v338
      %v911 = vunpack.c.h.b16 %v338
      %v912 = vunpack.c.l.b16 %v339
      %v913 = vunpack.c.l.b16 %v340
      %v914 = vunpack.c.h.b16 %v340
      %v915 = vunpack.c.l.b16 %v341
      %v916 = vunpack.c.h.b16 %v341
      %v917 = vunpack.c.l.b16 %v342
      %v918 = vunpack.c.h.b16 %v342
      %v919 = vunpack.c.l.b16 %v343
      %v920 = vpack.c.b16 %v703, %v696
      %v921 = vpack.c.b16 %v704, %v697
      %v922 = vpack.c.b16 %v705, %v698
      %v923 = vpack.c.b16 %v706, %v699
      %v924 = vpack.c.b16 %v707, %v700
      %v925 = vpack.c.b16 %v708, %v701
      %v926 = vpack.c.b16 %v709, %v702
      %v927 = vpack.c.b16 %v717, %v710
      %v928 = vpack.c.b16 %v718, %v711
      %v929 = vpack.c.b16 %v719, %v712
      %v930 = vpack.c.b16 %v720, %v713
      %v931 = vpack.c.b16 %v721, %v714
      %v932 = vpack.c.b16 %v722, %v715
      %v933 = vpack.c.b16 %v723, %v716
      %v934 = vpack.c.b16 %v731, %v724
      %v935 = vpack.c.b16 %v732, %v725
      %v936 = vpack.c.b16 %v733, %v726
      %v937 = vpack.c.b16 %v734, %v727
      %v938 = vpack.c.b16 %v735, %v728
      %v939 = vpack.c.b16 %v736, %v729
      %v940 = vpack.c.b16 %v737, %v730
      %v941 = vpack.c.b16 %v745, %v738
      %v942 = vpack.c.b16 %v746, %v739
      %v943 = vpack.c.b16 %v747, %v740
      %v944 = vpack.c.b16 %v748, %v741
      %v945 = vpack.c.b16 %v749, %v742
      %v946 = vpack.c.b16 %v750, %v743
      %v947 = vpack.c.b16 %v751, %v744
      %v948 = vpack.c.b16 %v759, %v752
      %v949 = vpack.c.b16 %v760, %v753
      %v950 = vpack.c.b16 %v761, %v754
      %v951 = vpack.c.b16 %v762, %v755
      %v952 = vpack.c.b16 %v763, %v756
      %v953 = vpack.c.b16 %v764, %v757
      %v954 = vpack.c.b16 %v765, %v758
      %v955 = vpack.c.b16 %v773, %v766
      %v956 = vpack.c.b16 %v774, %v767
      %v957 = vpack.c.b16 %v775, %v768
      %v958 = vpack.c.b16 %v776, %v769
      %v959 = vpack.c.b16 %v777, %v770
      %v960 = vpack.c.b16 %v778, %v771
      %v961 = vpack.c.b16 %v779, %v772
      %v962 = vpack.c.b16 %v787, %v780
      %v963 = vpack.c.b16 %v788, %v781
      %v964 = vpack.c.b16 %v789, %v782
      %v965 = vpack.c.b16 %v790, %v783
      %v966 = vpack.c.b16 %v791, %v784
      %v967 = vpack.c.b16 %v792, %v785
      %v968 = vpack.c.b16 %v793, %v786
      %v969 = vpack.c.b16 %v801, %v794
      %v970 = vpack.c.b16 %v802, %v795
      %v971 = vpack.c.b16 %v803, %v796
      %v972 = vpack.c.b16 %v804, %v797
      %v973 = vpack.c.b16 %v805, %v798
      %v974 = vpack.c.b16 %v806, %v799
      %v975 = vpack.c.b16 %v807, %v800
      %v976 = vpack.c.b16 %v815, %v808
      %v977 = vpack.c.b16 %v816, %v809
      %v978 = vpack.c.b16 %v817, %v810
      %v979 = vpack.c.b16 %v818, %v811
      %v980 = vpack.c.b16 %v819, %v812
      %v981 = vpack.c.b16 %v820, %v813
      %v982 = vpack.c.b16 %v821, %v814
      %v983 = vpack.c.b16 %v829, %v822
      %v984 = vpack.c.b16 %v830, %v823
      %v985 = vpack.c.b16 %v831, %v824
      %v986 = vpack.c.b16 %v832, %v825
      %v987 = vpack.c.b16 %v833, %v826
      %v988 = vpack.c.b16 %v834, %v827
      %v989 = vpack.c.b16 %v835, %v828
      %v990 = vpack.c.b16 %v843, %v836
      %v991 = vpack.c.b16 %v844, %v837
      %v992 = vpack.c.b16 %v845, %v838
      %v993 = vpack.c.b16 %v846, %v839
      %v994 = vpack.c.b16 %v847, %v840
      %v995 = vpack.c.b16 %v848, %v841
      %v996 = vpack.c.b16 %v849, %v842
      %v997 = vpack.c.b16 %v857, %v850
      %v998 = vpack.c.b16 %v858, %v851
      %v999 = vpack.c.b16 %v859, %v852
      %v1000 = vpack.c.b16 %v860, %v853
      %v1001 = vpack.c.b16 %v861, %v854
      %v1002 = vpack.c.b16 %v862, %v855
      %v1003 = vpack.c.b16 %v863, %v856
      %v1004 = vpack.c.b16 %v871, %v864
      %v1005 = vpack.c.b16 %v872, %v865
      %v1006 = vpack.c.b16 %v873, %v866
      %v1007 = vpack.c.b16 %v874, %v867
      %v1008 = vpack.c.b16 %v875, %v868
      %v1009 = vpack.c.b16 %v876, %v869
      %v1010 = vpack.c.b16 %v877, %v870
      %v1011 = vpack.c.b16 %v885, %v878
      %v1012 = vpack.c.b16 %v886, %v879
      %v1013 = vpack.c.b16 %v887, %v880
      %v1014 = vpack.c.b16 %v888, %v881
      %v1015 = vpack.c.b16 %v889, %v882
      %v1016 = vpack.c.b16 %v890, %v883
      %v1017 = vpack.c.b16 %v891, %v884
      %v1018 = vpack.c.b16 %v899, %v892
      %v1019 = vpack.c.b16 %v900, %v893
      %v1020 = vpack.c.b16 %v901, %v894
      %v1021 = vpack.c.b16 %v902, %v895
      %v1022 = vpack.c.b16 %v903, %v896
      %v1023 = vpack.c.b16 %v904, %v897
      %v1024 = vpack.c.b16 %v905, %v898
      %v1025 = vpack.c.b16 %v913, %v906
      %v1026 = vpack.c.b16 %v914, %v907
      %v1027 = vpack.c.b16 %v915, %v908
      %v1028 = vpack.c.b16 %v916, %v909
      %v1029 = vpack.c.b16 %v917, %v910
      %v1030 = vpack.c.b16 %v918, %v911
      %v1031 = vpack.c.b16 %v919, %v912
      %v1256 = vunpack.c.l.b16 %v456
      %v1257 = vunpack.c.l.b16 %v457
      %v1258 = vunpack.c.l.b16 %v458
      %v1259 = vunpack.c.l.b16 %v459
      %v1260 = vunpack.c.l.b16 %v460
      %v1261 = vunpack.c.l.b16 %v461
      %v1262 = vunpack.c.l.b16 %v462
      %v1263 = vunpack.c.l.b16 %v463
      %v1264 = vunpack.c.l.b16 %v464
      %v1265 = vunpack.c.l.b16 %v465
      %v1266 = vunpack.c.l.b16 %v466
      %v1267 = vunpack.c.l.b16 %v467
      %v1268 = vunpack.c.l.b16 %v468
      %v1269 = vunpack.c.l.b16 %v469
      %v1270 = vunpack.c.l.b16 %v470
      %v1271 = vunpack.c.l.b16 %v471
      %v1272 = vunpack.c.l.b16 %v472
      %v1273 = vunpack.c.l.b16 %v473
      %v1274 = vunpack.c.l.b16 %v474
      %v1275 = vunpack.c.l.b16 %v475
      %v1276 = vunpack.c.l.b16 %v476
      %v1277 = vunpack.c.l.b16 %v477
      %v1278 = vunpack.c.l.b16 %v478
      %v1279 = vunpack.c.l.b16 %v479
      %v1280 = vunpack.c.l.b16 %v480
      %v1281 = vunpack.c.l.b16 %v481
      %v1282 = vunpack.c.l.b16 %v482
      %v1283 = vunpack.c.l.b16 %v483
      %v1284 = vunpack.c.l.b16 %v484
      %v1285 = vunpack.c.l.b16 %v485
      %v1286 = vunpack.c.l.b16 %v486
      %v1287 = vunpack.c.l.b16 %v487
      %v1288 = vunpack.c.l.b16 %v488
      %v1289 = vunpack.c.l.b16 %v489
      %v1290 = vunpack.c.l.b16 %v490
      %v1291 = vunpack.c.l.b16 %v491
      %v1292 = vunpack.c.l.b16 %v492
      %v1293 = vunpack.c.l.b16 %v493
      %v1294 = vunpack.c.l.b16 %v494
      %v1295 = vunpack.c.l.b16 %v495
      %v1296 = vunpack.c.l.b16 %v496
      %v1297 = vunpack.c.l.b16 %v497
      %v1298 = vunpack.c.l.b16 %v498
      %v1299 = vunpack.c.l.b16 %v499
      %v1300 = vunpack.c.l.b16 %v500
      %v1301 = vunpack.c.l.b16 %v501
      %v1302 = vunpack.c.l.b16 %v502
      %v1303 = vunpack.c.l.b16 %v503
      %v1304 = vunpack.c.l.b16 %v504
      %v1305 = vunpack.c.l.b16 %v505
      %v1306 = vunpack.c.l.b16 %v506
      %v1307 = vunpack.c.l.b16 %v507
      %v1308 = vunpack.c.l.b16 %v508
      %v1309 = vunpack.c.l.b16 %v509
      %v1310 = vunpack.c.l.b16 %v510
      %v1311 = vunpack.c.l.b16 %v511
      %v1312 = vunpack.c.l.b16 %v512
      %v1313 = vunpack.c.l.b16 %v513
      %v1314 = vunpack.c.l.b16 %v514
      %v1315 = vunpack.c.l.b16 %v515
      %v1316 = vunpack.c.l.b16 %v516
      %v1317 = vunpack.c.l.b16 %v517
      %v1318 = vunpack.c.l.b16 %v518
      %v1319 = vunpack.c.l.b16 %v519
      %v1320 = vunpack.c.l.b16 %v520
      %v1321 = vunpack.c.l.b16 %v521
      %v1322 = vunpack.c.l.b16 %v522
      %v1323 = vunpack.c.l.b16 %v523
      %v1324 = vunpack.c.l.b16 %v524
      %v1325 = vunpack.c.l.b16 %v525
      %v1326 = vunpack.c.l.b16 %v526
      %v1327 = vunpack.c.l.b16 %v527
      %v1328 = vunpack.c.l.b16 %v528
      %v1329 = vunpack.c.l.b16 %v529
      %v1330 = vunpack.c.l.b16 %v530
      %v1331 = vunpack.c.l.b16 %v531
      %v1332 = vunpack.c.l.b16 %v532
      %v1333 = vunpack.c.l.b16 %v533
      %v1334 = vunpack.c.l.b16 %v534
      %v1335 = vunpack.c.l.b16 %v535
      %v1336 = vunpack.c.l.b16 %v536
      %v1337 = vunpack.c.l.b16 %v537
      %v1338 = vunpack.c.l.b16 %v538
      %v1339 = vunpack.c.l.b16 %v539
      %v1340 = vunpack.c.l.b16 %v540
      %v1341 = vunpack.c.l.b16 %v541
      %v1342 = vunpack.c.l.b16 %v542
      %v1343 = vunpack.c.l.b16 %v543
      %v1344 = vunpack.c.l.b16 %v544
      %v1345 = vunpack.c.l.b16 %v545
      %v1346 = vunpack.c.l.b16 %v546
      %v1347 = vunpack.c.l.b16 %v547
      %v1348 = vunpack.c.l.b16 %v548
      %v1349 = vunpack.c.l.b16 %v549
      %v1350 = vunpack.c.l.b16 %v550
      %v1351 = vunpack.c.l.b16 %v551
      %v1352 = vunpack.c.l.b16 %v552
      %v1353 = vunpack.c.l.b16 %v553
      %v1354 = vunpack.c.l.b16 %v554
      %v1355 = vunpack.c.l.b16 %v555
      %v1356 = vunpack.c.l.b16 %v556
      %v1357 = vunpack.c.l.b16 %v557
      %v1358 = vunpack.c.l.b16 %v558
      %v1359 = vunpack.c.l.b16 %v559
      %v1360 = vunpack.c.l.b16 %v560
      %v1361 = vunpack.c.l.b16 %v561
      %v1362 = vunpack.c.l.b16 %v562
      %v1363 = vunpack.c.l.b16 %v563
      %v1364 = vunpack.c.l.b16 %v564
      %v1365 = vunpack.c.l.b16 %v565
      %v1366 = vunpack.c.l.b16 %v566
      %v1367 = vunpack.c.l.b16 %v567
      %v1368 = vpack.c.b16 %v1257, %v1256
      %v1369 = vpack.c.b16 %v1259, %v1258
      %v1370 = vpack.c.b16 %v1261, %v1260
      %v1371 = vpack.c.b16 %v1263, %v1262
      %v1372 = vpack.c.b16 %v1265, %v1264
      %v1373 = vpack.c.b16 %v1267, %v1266
      %v1374 = vpack.c.b16 %v1269, %v1268
      %v1375 = vpack.c.b16 %v1271, %v1270
      %v1376 = vpack.c.b16 %v1273, %v1272
      %v1377 = vpack.c.b16 %v1275, %v1274
      %v1378 = vpack.c.b16 %v1277, %v1276
      %v1379 = vpack.c.b16 %v1279, %v1278
      %v1380 = vpack.c.b16 %v1281, %v1280
      %v1381 = vpack.c.b16 %v1283, %v1282
      %v1382 = vpack.c.b16 %v1285, %v1284
      %v1383 = vpack.c.b16 %v1287, %v1286
      %v1384 = vpack.c.b16 %v1289, %v1288
      %v1385 = vpack.c.b16 %v1291, %v1290
      %v1386 = vpack.c.b16 %v1293, %v1292
      %v1387 = vpack.c.b16 %v1295, %v1294
      %v1388 = vpack.c.b16 %v1297, %v1296
      %v1389 = vpack.c.b16 %v1299, %v1298
      %v1390 = vpack.c.b16 %v1301, %v1300
      %v1391 = vpack.c.b16 %v1303, %v1302
      %v1392 = vpack.c.b16 %v1305, %v1304
      %v1393 = vpack.c.b16 %v1307, %v1306
      %v1394 = vpack.c.b16 %v1309, %v1308
      %v1395 = vpack.c.b16 %v1311, %v1310
      %v1396 = vpack.c.b16 %v1313, %v1312
      %v1397 = vpack.c.b16 %v1315, %v1314
      %v1398 = vpack.c.b16 %v1317, %v1316
      %v1399 = vpack.c.b16 %v1319, %v1318
      %v1400 = vpack.c.b16 %v1321, %v1320
      %v1401 = vpack.c.b16 %v1323, %v1322
      %v1402 = vpack.c.b16 %v1325, %v1324
      %v1403 = vpack.c.b16 %v1327, %v1326
      %v1404 = vpack.c.b16 %v1329, %v1328
      %v1405 = vpack.c.b16 %v1331, %v1330
      %v1406 = vpack.c.b16 %v1333, %v1332
      %v1407 = vpack.c.b16 %v1335, %v1334
      %v1408 = vpack.c.b16 %v1337, %v1336
      %v1409 = vpack.c.b16 %v1339, %v1338
      %v1410 = vpack.c.b16 %v1341, %v1340
      %v1411 = vpack.c.b16 %v1343, %v1342
      %v1412 = vpack.c.b16 %v1345, %v1344
      %v1413 = vpack.c.b16 %v1347, %v1346
      %v1414 = vpack.c.b16 %v1349, %v1348
      %v1415 = vpack.c.b16 %v1351, %v1350
      %v1416 = vpack.c.b16 %v1353, %v1352
      %v1417 = vpack.c.b16 %v1355, %v1354
      %v1418 = vpack.c.b16 %v1357, %v1356
      %v1419 = vpack.c.b16 %v1359, %v1358
      %v1420 = vpack.c.b16 %v1361, %v1360
      %v1421 = vpack.c.b16 %v1363, %v1362
      %v1422 = vpack.c.b16 %v1365, %v1364
      %v1423 = vpack.c.b16 %v1367, %v1366
      %1480 = vmatprep.subr.bf16.mxu0 0
      %1481 = vmatpush1.bf16.msra.mxu0 %v1368
      %1482 = vmatprep.subr.bf16.mxu0 0
      %1483 = vmatpush1.bf16.msra.mxu0 %v1369
      %1484 = vmatprep.subr.bf16.mxu0 0
      %1485 = vmatpush1.bf16.msra.mxu0 %v1370
      %1486 = vmatprep.subr.bf16.mxu0 0
      %1487 = vmatpush1.bf16.msra.mxu0 %v1371
      %1488 = vmatprep.subr.bf16.mxu0 0
      %1489 = vmatpush1.bf16.msra.mxu0 %v1372
      %1490 = vmatprep.subr.bf16.mxu0 0
      %1491 = vmatpush1.bf16.msra.mxu0 %v1373
      %1492 = vmatprep.subr.bf16.mxu0 0
      %1493 = vmatpush1.bf16.msra.mxu0 %v1374
      %1494 = vmatprep.subr.bf16.mxu0 0
      %1495 = vmatpush1.bf16.msra.mxu0 %v1375
      %1496 = vmatprep.subr.bf16.mxu0 0
      %1497 = vmatpush1.bf16.msra.mxu0 %v1376
      %1498 = vmatprep.subr.bf16.mxu0 0
      %1499 = vmatpush1.bf16.msra.mxu0 %v1377
      %1500 = vmatprep.subr.bf16.mxu0 0
      %1501 = vmatpush1.bf16.msra.mxu0 %v1378
      %1502 = vmatprep.subr.bf16.mxu0 0
      %1503 = vmatpush1.bf16.msra.mxu0 %v1379
      %1504 = vmatprep.subr.bf16.mxu0 0
      %1505 = vmatpush1.bf16.msra.mxu0 %v1380
      %1506 = vmatprep.subr.bf16.mxu0 0
      %1507 = vmatpush1.bf16.msra.mxu0 %v1381
      %1508 = vmatprep.subr.bf16.mxu0 0
      %1509 = vmatpush1.bf16.msra.mxu0 %v1382
      %1510 = vmatprep.subr.bf16.mxu0 0
      %1511 = vmatpush1.bf16.msra.mxu0 %v1383
      %1512 = vmatprep.mubr.bf16.mxu0 %v921
      %1513 = vmatmul.mubr.bf16.gmra.mrb[0].mxu0 %v920
      %v1514 = vpop.f32.mrb[0].mxu0
      %v1515 = vadd.f32 0.0, %v1514
      %v1516 = vpop.f32.mrb[0].mxu0
      %v1517 = vpop.f32.mrb[0].mxu0
      %v1518 = vadd.f32 0.0, %v1517
      %v1519 = vpop.f32.mrb[0].mxu0
      %1520 = vmatprep.mubr.bf16.mxu0 %v928
      %1521 = vmatmul.mubr.bf16.gmra.mrb[0].mxu0 %v927
      %v1522 = vpop.f32.mrb[0].mxu0
      %v1523 = vadd.f32 0.0, %v1522
      %v1524 = vpop.f32.mrb[0].mxu0
      %v1525 = vpop.f32.mrb[0].mxu0
      %v1526 = vadd.f32 0.0, %v1525
      %v1527 = vpop.f32.mrb[0].mxu0
      %1528 = vmatprep.mubr.bf16.mxu0 %v935
      %1529 = vmatmul.mubr.bf16.gmra.mrb[0].mxu0 %v934
      %v1530 = vpop.f32.mrb[0].mxu0
      %v1531 = vadd.f32 0.0, %v1530
      %v1532 = vpop.f32.mrb[0].mxu0
      %v1533 = vpop.f32.mrb[0].mxu0
      %v1534 = vadd.f32 0.0, %v1533
      %v1535 = vpop.f32.mrb[0].mxu0
      %1536 = vmatprep.mubr.bf16.mxu0 %v942
      %1537 = vmatmul.mubr.bf16.gmra.mrb[0].mxu0 %v941
      %v1538 = vpop.f32.mrb[0].mxu0
      %v1539 = vadd.f32 0.0, %v1538
      %v1540 = vpop.f32.mrb[0].mxu0
      %v1541 = vpop.f32.mrb[0].mxu0
      %v1542 = vadd.f32 0.0, %v1541
      %v1543 = vpop.f32.mrb[0].mxu0
      %1544 = vmatprep.mubr.bf16.mxu0 %v949
      %1545 = vmatmul.mubr.bf16.gmra.mrb[0].mxu0 %v948
      %v1546 = vpop.f32.mrb[0].mxu0
      %v1547 = vadd.f32 0.0, %v1546
      %v1548 = vpop.f32.mrb[0].mxu0
      %v1549 = vpop.f32.mrb[0].mxu0
      %v1550 = vadd.f32 0.0, %v1549
      %v1551 = vpop.f32.mrb[0].mxu0
      %1552 = vmatprep.mubr.bf16.mxu0 %v956
      %1553 = vmatmul.mubr.bf16.gmra.mrb[0].mxu0 %v955
      %v1554 = vpop.f32.mrb[0].mxu0
      %v1555 = vadd.f32 0.0, %v1554
      %v1556 = vpop.f32.mrb[0].mxu0
      %v1557 = vpop.f32.mrb[0].mxu0
      %v1558 = vadd.f32 0.0, %v1557
      %v1559 = vpop.f32.mrb[0].mxu0
      %1560 = vmatprep.mubr.bf16.mxu0 %v963
      %1561 = vmatmul.mubr.bf16.gmra.mrb[0].mxu0 %v962
      %v1562 = vpop.f32.mrb[0].mxu0
      %v1563 = vadd.f32 0.0, %v1562
      %v1564 = vpop.f32.mrb[0].mxu0
      %v1565 = vpop.f32.mrb[0].mxu0
      %v1566 = vadd.f32 0.0, %v1565
      %v1567 = vpop.f32.mrb[0].mxu0
      %1568 = vmatprep.mubr.bf16.mxu0 %v970
      %1569 = vmatmul.mubr.bf16.gmra.mrb[0].mxu0 %v969
      %v1570 = vpop.f32.mrb[0].mxu0
      %v1571 = vadd.f32 0.0, %v1570
      %v1572 = vpop.f32.mrb[0].mxu0
      %v1573 = vpop.f32.mrb[0].mxu0
      %v1574 = vadd.f32 0.0, %v1573
      %v1575 = vpop.f32.mrb[0].mxu0
      %1576 = vmatprep.mubr.bf16.mxu0 %v977
      %1577 = vmatmul.mubr.bf16.gmra.mrb[0].mxu0 %v976
      %v1578 = vpop.f32.mrb[0].mxu0
      %v1579 = vadd.f32 0.0, %v1578
      %v1580 = vpop.f32.mrb[0].mxu0
      %v1581 = vpop.f32.mrb[0].mxu0
      %v1582 = vadd.f32 0.0, %v1581
      %v1583 = vpop.f32.mrb[0].mxu0
      %1584 = vmatprep.mubr.bf16.mxu0 %v984
      %1585 = vmatmul.mubr.bf16.gmra.mrb[0].mxu0 %v983
      %v1586 = vpop.f32.mrb[0].mxu0
      %v1587 = vadd.f32 0.0, %v1586
      %v1588 = vpop.f32.mrb[0].mxu0
      %v1589 = vpop.f32.mrb[0].mxu0
      %v1590 = vadd.f32 0.0, %v1589
      %v1591 = vpop.f32.mrb[0].mxu0
      %1592 = vmatprep.mubr.bf16.mxu0 %v991
      %1593 = vmatmul.mubr.bf16.gmra.mrb[0].mxu0 %v990
      %v1594 = vpop.f32.mrb[0].mxu0
      %v1595 = vadd.f32 0.0, %v1594
      %v1596 = vpop.f32.mrb[0].mxu0
      %v1597 = vpop.f32.mrb[0].mxu0
      %v1598 = vadd.f32 0.0, %v1597
      %v1599 = vpop.f32.mrb[0].mxu0
      %1600 = vmatprep.mubr.bf16.mxu0 %v998
      %1601 = vmatmul.mubr.bf16.gmra.mrb[0].mxu0 %v997
      %v1602 = vpop.f32.mrb[0].mxu0
      %v1603 = vadd.f32 0.0, %v1602
      %v1604 = vpop.f32.mrb[0].mxu0
      %v1605 = vpop.f32.mrb[0].mxu0
      %v1606 = vadd.f32 0.0, %v1605
      %v1607 = vpop.f32.mrb[0].mxu0
      %1608 = vmatprep.mubr.bf16.mxu0 %v1005
      %1609 = vmatmul.mubr.bf16.gmra.mrb[0].mxu0 %v1004
      %v1610 = vpop.f32.mrb[0].mxu0
      %v1611 = vadd.f32 0.0, %v1610
      %v1612 = vpop.f32.mrb[0].mxu0
      %v1613 = vpop.f32.mrb[0].mxu0
      %v1614 = vadd.f32 0.0, %v1613
      %v1615 = vpop.f32.mrb[0].mxu0
      %1616 = vmatprep.mubr.bf16.mxu0 %v1012
      %1617 = vmatmul.mubr.bf16.gmra.mrb[0].mxu0 %v1011
      %v1618 = vpop.f32.mrb[0].mxu0
      %v1619 = vadd.f32 0.0, %v1618
      %v1620 = vpop.f32.mrb[0].mxu0
      %v1621 = vpop.f32.mrb[0].mxu0
      %v1622 = vadd.f32 0.0, %v1621
      %v1623 = vpop.f32.mrb[0].mxu0
      %1624 = vmatprep.mubr.bf16.mxu0 %v1019
      %1625 = vmatmul.mubr.bf16.gmra.mrb[0].mxu0 %v1018
      %v1626 = vpop.f32.mrb[0].mxu0
      %v1627 = vadd.f32 0.0, %v1626
      %v1628 = vpop.f32.mrb[0].mxu0
      %v1629 = vpop.f32.mrb[0].mxu0
      %v1630 = vadd.f32 0.0, %v1629
      %v1631 = vpop.f32.mrb[0].mxu0
      %1632 = vmatprep.mubr.bf16.mxu0 %v1026
      %1633 = vmatmul.mubr.bf16.gmra.mrb[0].mxu0 %v1025
      %v1634 = vpop.f32.mrb[0].mxu0
      %v1635 = vadd.f32 0.0, %v1634
      %v1636 = vpop.f32.mrb[0].mxu0
      %v1637 = vpop.f32.mrb[0].mxu0
      %v1638 = vadd.f32 0.0, %v1637
      %v1639 = vpop.f32.mrb[0].mxu0
      %1640 = vdwg.mxu0
      %1641 = vmatprep.subr.bf16.mxu0 0
      %1642 = vmatpush1.bf16.msra.mxu0 %v1384
      %1643 = vmatprep.subr.bf16.mxu0 0
      %1644 = vmatpush1.bf16.msra.mxu0 %v1385
      %1645 = vmatprep.subr.bf16.mxu0 0
      %1646 = vmatpush1.bf16.msra.mxu0 %v1386
      %1647 = vmatprep.subr.bf16.mxu0 0
      %1648 = vmatpush1.bf16.msra.mxu0 %v1387
      %1649 = vmatprep.subr.bf16.mxu0 0
      %1650 = vmatpush1.bf16.msra.mxu0 %v1388
      %1651 = vmatprep.subr.bf16.mxu0 0
      %1652 = vmatpush1.bf16.msra.mxu0 %v1389
      %1653 = vmatprep.subr.bf16.mxu0 0
      %1654 = vmatpush1.bf16.msra.mxu0 %v1390
      %1655 = vmatprep.subr.bf16.mxu0 0
      %1656 = vmatpush1.bf16.msra.mxu0 %v1391
      %1657 = vmatprep.subr.bf16.mxu0 0
      %1658 = vmatpush1.bf16.msra.mxu0 %v1392
      %1659 = vmatprep.subr.bf16.mxu0 0
      %1660 = vmatpush1.bf16.msra.mxu0 %v1393
      %1661 = vmatprep.subr.bf16.mxu0 0
      %1662 = vmatpush1.bf16.msra.mxu0 %v1394
      %1663 = vmatprep.subr.bf16.mxu0 0
      %1664 = vmatpush1.bf16.msra.mxu0 %v1395
      %1665 = vmatprep.subr.bf16.mxu0 0
      %1666 = vmatpush1.bf16.msra.mxu0 %v1396
      %1667 = vmatprep.subr.bf16.mxu0 0
      %1668 = vmatpush1.bf16.msra.mxu0 %v1397
      %1669 = vmatprep.subr.bf16.mxu0 0
      %1670 = vmatpush1.bf16.msra.mxu0 %v1398
      %1671 = vmatprep.subr.bf16.mxu0 0
      %1672 = vmatpush1.bf16.msra.mxu0 %v1399
      %1673 = vmatprep.mubr.bf16.mxu0 %v923
      %1674 = vmatmul.mubr.bf16.gmra.mrb[0].mxu0 %v922
      %v1675 = vpop.f32.mrb[0].mxu0
      %v1676 = vadd.f32 %v1515, %v1675
      %v1677 = vpop.f32.mrb[0].mxu0
      %v1678 = vpop.f32.mrb[0].mxu0
      %v1679 = vadd.f32 %v1518, %v1678
      %v1680 = vpop.f32.mrb[0].mxu0
      %1681 = vmatprep.mubr.bf16.mxu0 %v930
      %1682 = vmatmul.mubr.bf16.gmra.mrb[0].mxu0 %v929
      %v1683 = vpop.f32.mrb[0].mxu0
      %v1684 = vadd.f32 %v1523, %v1683
      %v1685 = vpop.f32.mrb[0].mxu0
      %v1686 = vpop.f32.mrb[0].mxu0
      %v1687 = vadd.f32 %v1526, %v1686
      %v1688 = vpop.f32.mrb[0].mxu0
      %1689 = vmatprep.mubr.bf16.mxu0 %v937
      %1690 = vmatmul.mubr.bf16.gmra.mrb[0].mxu0 %v936
      %v1691 = vpop.f32.mrb[0].mxu0
      %v1692 = vadd.f32 %v1531, %v1691
      %v1693 = vpop.f32.mrb[0].mxu0
      %v1694 = vpop.f32.mrb[0].mxu0
      %v1695 = vadd.f32 %v1534, %v1694
      %v1696 = vpop.f32.mrb[0].mxu0
      %1697 = vmatprep.mubr.bf16.mxu0 %v944
      %1698 = vmatmul.mubr.bf16.gmra.mrb[0].mxu0 %v943
      %v1699 = vpop.f32.mrb[0].mxu0
      %v1700 = vadd.f32 %v1539, %v1699
      %v1701 = vpop.f32.mrb[0].mxu0
      %v1702 = vpop.f32.mrb[0].mxu0
      %v1703 = vadd.f32 %v1542, %v1702
      %v1704 = vpop.f32.mrb[0].mxu0
      %1705 = vmatprep.mubr.bf16.mxu0 %v951
      %1706 = vmatmul.mubr.bf16.gmra.mrb[0].mxu0 %v950
      %v1707 = vpop.f32.mrb[0].mxu0
      %v1708 = vadd.f32 %v1547, %v1707
      %v1709 = vpop.f32.mrb[0].mxu0
      %v1710 = vpop.f32.mrb[0].mxu0
      %v1711 = vadd.f32 %v1550, %v1710
      %v1712 = vpop.f32.mrb[0].mxu0
      %1713 = vmatprep.mubr.bf16.mxu0 %v958
      %1714 = vmatmul.mubr.bf16.gmra.mrb[0].mxu0 %v957
      %v1715 = vpop.f32.mrb[0].mxu0
      %v1716 = vadd.f32 %v1555, %v1715
      %v1717 = vpop.f32.mrb[0].mxu0
      %v1718 = vpop.f32.mrb[0].mxu0
      %v1719 = vadd.f32 %v1558, %v1718
      %v1720 = vpop.f32.mrb[0].mxu0
      %1721 = vmatprep.mubr.bf16.mxu0 %v965
      %1722 = vmatmul.mubr.bf16.gmra.mrb[0].mxu0 %v964
      %v1723 = vpop.f32.mrb[0].mxu0
      %v1724 = vadd.f32 %v1563, %v1723
      %v1725 = vpop.f32.mrb[0].mxu0
      %v1726 = vpop.f32.mrb[0].mxu0
      %v1727 = vadd.f32 %v1566, %v1726
      %v1728 = vpop.f32.mrb[0].mxu0
      %1729 = vmatprep.mubr.bf16.mxu0 %v972
      %1730 = vmatmul.mubr.bf16.gmra.mrb[0].mxu0 %v971
      %v1731 = vpop.f32.mrb[0].mxu0
      %v1732 = vadd.f32 %v1571, %v1731
      %v1733 = vpop.f32.mrb[0].mxu0
      %v1734 = vpop.f32.mrb[0].mxu0
      %v1735 = vadd.f32 %v1574, %v1734
      %v1736 = vpop.f32.mrb[0].mxu0
      %1737 = vmatprep.mubr.bf16.mxu0 %v979
      %1738 = vmatmul.mubr.bf16.gmra.mrb[0].mxu0 %v978
      %v1739 = vpop.f32.mrb[0].mxu0
      %v1740 = vadd.f32 %v1579, %v1739
      %v1741 = vpop.f32.mrb[0].mxu0
      %v1742 = vpop.f32.mrb[0].mxu0
      %v1743 = vadd.f32 %v1582, %v1742
      %v1744 = vpop.f32.mrb[0].mxu0
      %1745 = vmatprep.mubr.bf16.mxu0 %v986
      %1746 = vmatmul.mubr.bf16.gmra.mrb[0].mxu0 %v985
      %v1747 = vpop.f32.mrb[0].mxu0
      %v1748 = vadd.f32 %v1587, %v1747
      %v1749 = vpop.f32.mrb[0].mxu0
      %v1750 = vpop.f32.mrb[0].mxu0
      %v1751 = vadd.f32 %v1590, %v1750
      %v1752 = vpop.f32.mrb[0].mxu0
      %1753 = vmatprep.mubr.bf16.mxu0 %v993
      %1754 = vmatmul.mubr.bf16.gmra.mrb[0].mxu0 %v992
      %v1755 = vpop.f32.mrb[0].mxu0
      %v1756 = vadd.f32 %v1595, %v1755
      %v1757 = vpop.f32.mrb[0].mxu0
      %v1758 = vpop.f32.mrb[0].mxu0
      %v1759 = vadd.f32 %v1598, %v1758
      %v1760 = vpop.f32.mrb[0].mxu0
      %1761 = vmatprep.mubr.bf16.mxu0 %v1000
      %1762 = vmatmul.mubr.bf16.gmra.mrb[0].mxu0 %v999
      %v1763 = vpop.f32.mrb[0].mxu0
      %v1764 = vadd.f32 %v1603, %v1763
      %v1765 = vpop.f32.mrb[0].mxu0
      %v1766 = vpop.f32.mrb[0].mxu0
      %v1767 = vadd.f32 %v1606, %v1766
      %v1768 = vpop.f32.mrb[0].mxu0
      %1769 = vmatprep.mubr.bf16.mxu0 %v1007
      %1770 = vmatmul.mubr.bf16.gmra.mrb[0].mxu0 %v1006
      %v1771 = vpop.f32.mrb[0].mxu0
      %v1772 = vadd.f32 %v1611, %v1771
      %v1773 = vpop.f32.mrb[0].mxu0
      %v1774 = vpop.f32.mrb[0].mxu0
      %v1775 = vadd.f32 %v1614, %v1774
      %v1776 = vpop.f32.mrb[0].mxu0
      %1777 = vmatprep.mubr.bf16.mxu0 %v1014
      %1778 = vmatmul.mubr.bf16.gmra.mrb[0].mxu0 %v1013
      %v1779 = vpop.f32.mrb[0].mxu0
      %v1780 = vadd.f32 %v1619, %v1779
      %v1781 = vpop.f32.mrb[0].mxu0
      %v1782 = vpop.f32.mrb[0].mxu0
      %v1783 = vadd.f32 %v1622, %v1782
      %v1784 = vpop.f32.mrb[0].mxu0
      %1785 = vmatprep.mubr.bf16.mxu0 %v1021
      %1786 = vmatmul.mubr.bf16.gmra.mrb[0].mxu0 %v1020
      %v1787 = vpop.f32.mrb[0].mxu0
      %v1788 = vadd.f32 %v1627, %v1787
      %v1789 = vpop.f32.mrb[0].mxu0
      %v1790 = vpop.f32.mrb[0].mxu0
      %v1791 = vadd.f32 %v1630, %v1790
      %v1792 = vpop.f32.mrb[0].mxu0
      %1793 = vmatprep.mubr.bf16.mxu0 %v1028
      %1794 = vmatmul.mubr.bf16.gmra.mrb[0].mxu0 %v1027
      %v1795 = vpop.f32.mrb[0].mxu0
      %v1796 = vadd.f32 %v1635, %v1795
      %v1797 = vpop.f32.mrb[0].mxu0
      %v1798 = vpop.f32.mrb[0].mxu0
      %v1799 = vadd.f32 %v1638, %v1798
      %v1800 = vpop.f32.mrb[0].mxu0
      %1801 = vdwg.mxu0
      %1802 = vmatprep.subr.bf16.mxu0 0
      %1803 = vmatpush1.bf16.msra.mxu0 %v1400
      %1804 = vmatprep.subr.bf16.mxu0 0
      %1805 = vmatpush1.bf16.msra.mxu0 %v1401
      %1806 = vmatprep.subr.bf16.mxu0 0
      %1807 = vmatpush1.bf16.msra.mxu0 %v1402
      %1808 = vmatprep.subr.bf16.mxu0 0
      %1809 = vmatpush1.bf16.msra.mxu0 %v1403
      %1810 = vmatprep.subr.bf16.mxu0 0
      %1811 = vmatpush1.bf16.msra.mxu0 %v1404
      %1812 = vmatprep.subr.bf16.mxu0 0
      %1813 = vmatpush1.bf16.msra.mxu0 %v1405
      %1814 = vmatprep.subr.bf16.mxu0 0
      %1815 = vmatpush1.bf16.msra.mxu0 %v1406
      %1816 = vmatprep.subr.bf16.mxu0 0
      %1817 = vmatpush1.bf16.msra.mxu0 %v1407
      %1818 = vmatprep.subr.bf16.mxu0 0
      %1819 = vmatpush1.bf16.msra.mxu0 %v1408
      %1820 = vmatprep.subr.bf16.mxu0 0
      %1821 = vmatpush1.bf16.msra.mxu0 %v1409
      %1822 = vmatprep.subr.bf16.mxu0 0
      %1823 = vmatpush1.bf16.msra.mxu0 %v1410
      %1824 = vmatprep.subr.bf16.mxu0 0
      %1825 = vmatpush1.bf16.msra.mxu0 %v1411
      %1826 = vmatprep.subr.bf16.mxu0 0
      %1827 = vmatpush1.bf16.msra.mxu0 %v1412
      %1828 = vmatprep.subr.bf16.mxu0 0
      %1829 = vmatpush1.bf16.msra.mxu0 %v1413
      %1830 = vmatprep.subr.bf16.mxu0 0
      %1831 = vmatpush1.bf16.msra.mxu0 %v1414
      %1832 = vmatprep.subr.bf16.mxu0 0
      %1833 = vmatpush1.bf16.msra.mxu0 %v1415
      %1834 = vmatprep.mubr.bf16.mxu0 %v925
      %1835 = vmatmul.mubr.bf16.gmra.mrb[0].mxu0 %v924
      %v1836 = vpop.f32.mrb[0].mxu0
      %v1837 = vadd.f32 %v1676, %v1836
      %v1838 = vpop.f32.mrb[0].mxu0
      %v1839 = vpop.f32.mrb[0].mxu0
      %v1840 = vadd.f32 %v1679, %v1839
      %v1841 = vpop.f32.mrb[0].mxu0
      %1842 = vmatprep.mubr.bf16.mxu0 %v932
      %1843 = vmatmul.mubr.bf16.gmra.mrb[0].mxu0 %v931
      %v1844 = vpop.f32.mrb[0].mxu0
      %v1845 = vadd.f32 %v1684, %v1844
      %v1846 = vpop.f32.mrb[0].mxu0
      %v1847 = vpop.f32.mrb[0].mxu0
      %v1848 = vadd.f32 %v1687, %v1847
      %v1849 = vpop.f32.mrb[0].mxu0
      %1850 = vmatprep.mubr.bf16.mxu0 %v939
      %1851 = vmatmul.mubr.bf16.gmra.mrb[0].mxu0 %v938
      %v1852 = vpop.f32.mrb[0].mxu0
      %v1853 = vadd.f32 %v1692, %v1852
      %v1854 = vpop.f32.mrb[0].mxu0
      %v1855 = vpop.f32.mrb[0].mxu0
      %v1856 = vadd.f32 %v1695, %v1855
      %v1857 = vpop.f32.mrb[0].mxu0
      %1858 = vmatprep.mubr.bf16.mxu0 %v946
      %1859 = vmatmul.mubr.bf16.gmra.mrb[0].mxu0 %v945
      %v1860 = vpop.f32.mrb[0].mxu0
      %v1861 = vadd.f32 %v1700, %v1860
      %v1862 = vpop.f32.mrb[0].mxu0
      %v1863 = vpop.f32.mrb[0].mxu0
      %v1864 = vadd.f32 %v1703, %v1863
      %v1865 = vpop.f32.mrb[0].mxu0
      %1866 = vmatprep.mubr.bf16.mxu0 %v953
      %1867 = vmatmul.mubr.bf16.gmra.mrb[0].mxu0 %v952
      %v1868 = vpop.f32.mrb[0].mxu0
      %v1869 = vadd.f32 %v1708, %v1868
      %v1870 = vpop.f32.mrb[0].mxu0
      %v1871 = vpop.f32.mrb[0].mxu0
      %v1872 = vadd.f32 %v1711, %v1871
      %v1873 = vpop.f32.mrb[0].mxu0
      %1874 = vmatprep.mubr.bf16.mxu0 %v960
      %1875 = vmatmul.mubr.bf16.gmra.mrb[0].mxu0 %v959
      %v1876 = vpop.f32.mrb[0].mxu0
      %v1877 = vadd.f32 %v1716, %v1876
      %v1878 = vpop.f32.mrb[0].mxu0
      %v1879 = vpop.f32.mrb[0].mxu0
      %v1880 = vadd.f32 %v1719, %v1879
      %v1881 = vpop.f32.mrb[0].mxu0
      %1882 = vmatprep.mubr.bf16.mxu0 %v967
      %1883 = vmatmul.mubr.bf16.gmra.mrb[0].mxu0 %v966
      %v1884 = vpop.f32.mrb[0].mxu0
      %v1885 = vadd.f32 %v1724, %v1884
      %v1886 = vpop.f32.mrb[0].mxu0
      %v1887 = vpop.f32.mrb[0].mxu0
      %v1888 = vadd.f32 %v1727, %v1887
      %v1889 = vpop.f32.mrb[0].mxu0
      %1890 = vmatprep.mubr.bf16.mxu0 %v974
      %1891 = vmatmul.mubr.bf16.gmra.mrb[0].mxu0 %v973
      %v1892 = vpop.f32.mrb[0].mxu0
      %v1893 = vadd.f32 %v1732, %v1892
      %v1894 = vpop.f32.mrb[0].mxu0
      %v1895 = vpop.f32.mrb[0].mxu0
      %v1896 = vadd.f32 %v1735, %v1895
      %v1897 = vpop.f32.mrb[0].mxu0
      %1898 = vmatprep.mubr.bf16.mxu0 %v981
      %1899 = vmatmul.mubr.bf16.gmra.mrb[0].mxu0 %v980
      %v1900 = vpop.f32.mrb[0].mxu0
      %v1901 = vadd.f32 %v1740, %v1900
      %v1902 = vpop.f32.mrb[0].mxu0
      %v1903 = vpop.f32.mrb[0].mxu0
      %v1904 = vadd.f32 %v1743, %v1903
      %v1905 = vpop.f32.mrb[0].mxu0
      %1906 = vmatprep.mubr.bf16.mxu0 %v988
      %1907 = vmatmul.mubr.bf16.gmra.mrb[0].mxu0 %v987
      %v1908 = vpop.f32.mrb[0].mxu0
      %v1909 = vadd.f32 %v1748, %v1908
      %v1910 = vpop.f32.mrb[0].mxu0
      %v1911 = vpop.f32.mrb[0].mxu0
      %v1912 = vadd.f32 %v1751, %v1911
      %v1913 = vpop.f32.mrb[0].mxu0
      %1914 = vmatprep.mubr.bf16.mxu0 %v995
      %1915 = vmatmul.mubr.bf16.gmra.mrb[0].mxu0 %v994
      %v1916 = vpop.f32.mrb[0].mxu0
      %v1917 = vadd.f32 %v1756, %v1916
      %v1918 = vpop.f32.mrb[0].mxu0
      %v1919 = vpop.f32.mrb[0].mxu0
      %v1920 = vadd.f32 %v1759, %v1919
      %v1921 = vpop.f32.mrb[0].mxu0
      %1922 = vmatprep.mubr.bf16.mxu0 %v1002
      %1923 = vmatmul.mubr.bf16.gmra.mrb[0].mxu0 %v1001
      %v1924 = vpop.f32.mrb[0].mxu0
      %v1925 = vadd.f32 %v1764, %v1924
      %v1926 = vpop.f32.mrb[0].mxu0
      %v1927 = vpop.f32.mrb[0].mxu0
      %v1928 = vadd.f32 %v1767, %v1927
      %v1929 = vpop.f32.mrb[0].mxu0
      %1930 = vmatprep.mubr.bf16.mxu0 %v1009
      %1931 = vmatmul.mubr.bf16.gmra.mrb[0].mxu0 %v1008
      %v1932 = vpop.f32.mrb[0].mxu0
      %v1933 = vadd.f32 %v1772, %v1932
      %v1934 = vpop.f32.mrb[0].mxu0
      %v1935 = vpop.f32.mrb[0].mxu0
      %v1936 = vadd.f32 %v1775, %v1935
      %v1937 = vpop.f32.mrb[0].mxu0
      %1938 = vmatprep.mubr.bf16.mxu0 %v1016
      %1939 = vmatmul.mubr.bf16.gmra.mrb[0].mxu0 %v1015
      %v1940 = vpop.f32.mrb[0].mxu0
      %v1941 = vadd.f32 %v1780, %v1940
      %v1942 = vpop.f32.mrb[0].mxu0
      %v1943 = vpop.f32.mrb[0].mxu0
      %v1944 = vadd.f32 %v1783, %v1943
      %v1945 = vpop.f32.mrb[0].mxu0
      %1946 = vmatprep.mubr.bf16.mxu0 %v1023
      %1947 = vmatmul.mubr.bf16.gmra.mrb[0].mxu0 %v1022
      %v1948 = vpop.f32.mrb[0].mxu0
      %v1949 = vadd.f32 %v1788, %v1948
      %v1950 = vpop.f32.mrb[0].mxu0
      %v1951 = vpop.f32.mrb[0].mxu0
      %v1952 = vadd.f32 %v1791, %v1951
      %v1953 = vpop.f32.mrb[0].mxu0
      %1954 = vmatprep.mubr.bf16.mxu0 %v1030
      %1955 = vmatmul.mubr.bf16.gmra.mrb[0].mxu0 %v1029
      %v1956 = vpop.f32.mrb[0].mxu0
      %v1957 = vadd.f32 %v1796, %v1956
      %v1958 = vpop.f32.mrb[0].mxu0
      %v1959 = vpop.f32.mrb[0].mxu0
      %v1960 = vadd.f32 %v1799, %v1959
      %v1961 = vpop.f32.mrb[0].mxu0
      %1962 = vdwg.mxu0
      %1963 = vmatprep.subr.bf16.mxu0 0
      %1964 = vmatpush1.bf16.msra.mxu0 %v1416
      %1965 = vmatprep.subr.bf16.mxu0 0
      %1966 = vmatpush1.bf16.msra.mxu0 %v1417
      %1967 = vmatprep.subr.bf16.mxu0 0
      %1968 = vmatpush1.bf16.msra.mxu0 %v1418
      %1969 = vmatprep.subr.bf16.mxu0 0
      %1970 = vmatpush1.bf16.msra.mxu0 %v1419
      %1971 = vmatprep.subr.bf16.mxu0 0
      %1972 = vmatpush1.bf16.msra.mxu0 %v1420
      %1973 = vmatprep.subr.bf16.mxu0 0
      %1974 = vmatpush1.bf16.msra.mxu0 %v1421
      %1975 = vmatprep.subr.bf16.mxu0 0
      %1976 = vmatpush1.bf16.msra.mxu0 %v1422
      %1977 = vmatprep.subr.bf16.mxu0 0
      %1978 = vmatpush1.bf16.msra.mxu0 %v1423
      %1979 = vmatprep.subr.bf16.mxu0 0
      %1980 = vmatpush1.bf16.msra.mxu0 0
      %1981 = vmatprep.subr.bf16.mxu0 0
      %1982 = vmatpush1.bf16.msra.mxu0 0
      %1983 = vmatprep.subr.bf16.mxu0 0
      %1984 = vmatpush1.bf16.msra.mxu0 0
      %1985 = vmatprep.subr.bf16.mxu0 0
      %1986 = vmatpush1.bf16.msra.mxu0 0
      %1987 = vmatprep.subr.bf16.mxu0 0
      %1988 = vmatpush1.bf16.msra.mxu0 0
      %1989 = vmatprep.subr.bf16.mxu0 0
      %1990 = vmatpush1.bf16.msra.mxu0 0
      %1991 = vmatprep.subr.bf16.mxu0 0
      %1992 = vmatpush1.bf16.msra.mxu0 0
      %1993 = vmatprep.subr.bf16.mxu0 0
      %1994 = vmatpush1.bf16.msra.mxu0 0
      %1995 = vmatprep.mubr.bf16.mxu0 0
      %1996 = vmatmul.mubr.bf16.gmra.mrb[0].mxu0 %v926
      %v1997 = vpop.f32.mrb[0].mxu0
      %v1998 = vadd.f32 %v1837, %v1997
      %v1999 = vpop.f32.mrb[0].mxu0
      %v2000 = vpop.f32.mrb[0].mxu0
      %v2001 = vadd.f32 %v1840, %v2000
      %v2002 = vpop.f32.mrb[0].mxu0
      %2003 = vmatprep.mubr.bf16.mxu0 0
      %2004 = vmatmul.mubr.bf16.gmra.mrb[0].mxu0 %v933
      %v2005 = vpop.f32.mrb[0].mxu0
      %v2006 = vadd.f32 %v1845, %v2005
      %v2007 = vpop.f32.mrb[0].mxu0
      %v2008 = vpop.f32.mrb[0].mxu0
      %v2009 = vadd.f32 %v1848, %v2008
      %v2010 = vpop.f32.mrb[0].mxu0
      %2011 = vmatprep.mubr.bf16.mxu0 0
      %2012 = vmatmul.mubr.bf16.gmra.mrb[0].mxu0 %v940
      %v2013 = vpop.f32.mrb[0].mxu0
      %v2014 = vadd.f32 %v1853, %v2013
      %v2015 = vpop.f32.mrb[0].mxu0
      %v2016 = vpop.f32.mrb[0].mxu0
      %v2017 = vadd.f32 %v1856, %v2016
      %v2018 = vpop.f32.mrb[0].mxu0
      %2019 = vmatprep.mubr.bf16.mxu0 0
      %2020 = vmatmul.mubr.bf16.gmra.mrb[0].mxu0 %v947
      %v2021 = vpop.f32.mrb[0].mxu0
      %v2022 = vadd.f32 %v1861, %v2021
      %v2023 = vpop.f32.mrb[0].mxu0
      %v2024 = vpop.f32.mrb[0].mxu0
      %v2025 = vadd.f32 %v1864, %v2024
      %v2026 = vpop.f32.mrb[0].mxu0
      %2027 = vmatprep.mubr.bf16.mxu0 0
      %2028 = vmatmul.mubr.bf16.gmra.mrb[0].mxu0 %v954
      %v2029 = vpop.f32.mrb[0].mxu0
      %v2030 = vadd.f32 %v1869, %v2029
      %v2031 = vpop.f32.mrb[0].mxu0
      %v2032 = vpop.f32.mrb[0].mxu0
      %v2033 = vadd.f32 %v1872, %v2032
      %v2034 = vpop.f32.mrb[0].mxu0
      %2035 = vmatprep.mubr.bf16.mxu0 0
      %2036 = vmatmul.mubr.bf16.gmra.mrb[0].mxu0 %v961
      %v2037 = vpop.f32.mrb[0].mxu0
      %v2038 = vadd.f32 %v1877, %v2037
      %v2039 = vpop.f32.mrb[0].mxu0
      %v2040 = vpop.f32.mrb[0].mxu0
      %v2041 = vadd.f32 %v1880, %v2040
      %v2042 = vpop.f32.mrb[0].mxu0
      %2043 = vmatprep.mubr.bf16.mxu0 0
      %2044 = vmatmul.mubr.bf16.gmra.mrb[0].mxu0 %v968
      %v2045 = vpop.f32.mrb[0].mxu0
      %v2046 = vadd.f32 %v1885, %v2045
      %v2047 = vpop.f32.mrb[0].mxu0
      %v2048 = vpop.f32.mrb[0].mxu0
      %v2049 = vadd.f32 %v1888, %v2048
      %v2050 = vpop.f32.mrb[0].mxu0
      %2051 = vmatprep.mubr.bf16.mxu0 0
      %2052 = vmatmul.mubr.bf16.gmra.mrb[0].mxu0 %v975
      %v2053 = vpop.f32.mrb[0].mxu0
      %v2054 = vadd.f32 %v1893, %v2053
      %v2055 = vpop.f32.mrb[0].mxu0
      %v2056 = vpop.f32.mrb[0].mxu0
      %v2057 = vadd.f32 %v1896, %v2056
      %v2058 = vpop.f32.mrb[0].mxu0
      %2059 = vmatprep.mubr.bf16.mxu0 0
      %2060 = vmatmul.mubr.bf16.gmra.mrb[0].mxu0 %v982
      %v2061 = vpop.f32.mrb[0].mxu0
      %v2062 = vadd.f32 %v1901, %v2061
      %v2063 = vpop.f32.mrb[0].mxu0
      %v2064 = vpop.f32.mrb[0].mxu0
      %v2065 = vadd.f32 %v1904, %v2064
      %v2066 = vpop.f32.mrb[0].mxu0
      %2067 = vmatprep.mubr.bf16.mxu0 0
      %2068 = vmatmul.mubr.bf16.gmra.mrb[0].mxu0 %v989
      %v2069 = vpop.f32.mrb[0].mxu0
      %v2070 = vadd.f32 %v1909, %v2069
      %v2071 = vpop.f32.mrb[0].mxu0
      %v2072 = vpop.f32.mrb[0].mxu0
      %v2073 = vadd.f32 %v1912, %v2072
      %v2074 = vpop.f32.mrb[0].mxu0
      %2075 = vmatprep.mubr.bf16.mxu0 0
      %2076 = vmatmul.mubr.bf16.gmra.mrb[0].mxu0 %v996
      %v2077 = vpop.f32.mrb[0].mxu0
      %v2078 = vadd.f32 %v1917, %v2077
      %v2079 = vpop.f32.mrb[0].mxu0
      %v2080 = vpop.f32.mrb[0].mxu0
      %v2081 = vadd.f32 %v1920, %v2080
      %v2082 = vpop.f32.mrb[0].mxu0
      %2083 = vmatprep.mubr.bf16.mxu0 0
      %2084 = vmatmul.mubr.bf16.gmra.mrb[0].mxu0 %v1003
      %v2085 = vpop.f32.mrb[0].mxu0
      %v2086 = vadd.f32 %v1925, %v2085
      %v2087 = vpop.f32.mrb[0].mxu0
      %v2088 = vpop.f32.mrb[0].mxu0
      %v2089 = vadd.f32 %v1928, %v2088
      %v2090 = vpop.f32.mrb[0].mxu0
      %2091 = vmatprep.mubr.bf16.mxu0 0
      %2092 = vmatmul.mubr.bf16.gmra.mrb[0].mxu0 %v1010
      %v2093 = vpop.f32.mrb[0].mxu0
      %v2094 = vadd.f32 %v1933, %v2093
      %v2095 = vpop.f32.mrb[0].mxu0
      %v2096 = vpop.f32.mrb[0].mxu0
      %v2097 = vadd.f32 %v1936, %v2096
      %v2098 = vpop.f32.mrb[0].mxu0
      %2099 = vmatprep.mubr.bf16.mxu0 0
      %2100 = vmatmul.mubr.bf16.gmra.mrb[0].mxu0 %v1017
      %v2101 = vpop.f32.mrb[0].mxu0
      %v2102 = vadd.f32 %v1941, %v2101
      %v2103 = vpop.f32.mrb[0].mxu0
      %v2104 = vpop.f32.mrb[0].mxu0
      %v2105 = vadd.f32 %v1944, %v2104
      %v2106 = vpop.f32.mrb[0].mxu0
      %2107 = vmatprep.mubr.bf16.mxu0 0
      %2108 = vmatmul.mubr.bf16.gmra.mrb[0].mxu0 %v1024
      %v2109 = vpop.f32.mrb[0].mxu0
      %v2110 = vadd.f32 %v1949, %v2109
      %v2111 = vpop.f32.mrb[0].mxu0
      %v2112 = vpop.f32.mrb[0].mxu0
      %v2113 = vadd.f32 %v1952, %v2112
      %v2114 = vpop.f32.mrb[0].mxu0
      %2115 = vmatprep.mubr.bf16.mxu0 0
      %2116 = vmatmul.mubr.bf16.gmra.mrb[0].mxu0 %v1031
      %v2117 = vpop.f32.mrb[0].mxu0
      %v2118 = vadd.f32 %v1957, %v2117
      %v2119 = vpop.f32.mrb[0].mxu0
      %v2120 = vpop.f32.mrb[0].mxu0
      %v2121 = vadd.f32 %v1960, %v2120
      %v2122 = vpop.f32.mrb[0].mxu0
      %2123 = vdwg.mxu0
      %v2236 = vunpack.c.l.b16 %v344
      %v2237 = vunpack.c.l.b16 %v345
      %v2238 = vunpack.c.l.b16 %v346
      %v2239 = vunpack.c.l.b16 %v347
      %v2240 = vunpack.c.l.b16 %v348
      %v2241 = vunpack.c.l.b16 %v349
      %v2242 = vunpack.c.l.b16 %v350
      %v2243 = vunpack.c.l.b16 %v351
      %v2244 = vunpack.c.l.b16 %v352
      %v2245 = vunpack.c.l.b16 %v353
      %v2246 = vunpack.c.l.b16 %v354
      %v2247 = vunpack.c.l.b16 %v355
      %v2248 = vunpack.c.l.b16 %v356
      %v2249 = vunpack.c.l.b16 %v357
      %v2250 = vunpack.c.l.b16 %v358
      %v2251 = vunpack.c.l.b16 %v359
      %v2252 = vunpack.c.l.b16 %v360
      %v2253 = vunpack.c.l.b16 %v361
      %v2254 = vunpack.c.l.b16 %v362
      %v2255 = vunpack.c.l.b16 %v363
      %v2256 = vunpack.c.l.b16 %v364
      %v2257 = vunpack.c.l.b16 %v365
      %v2258 = vunpack.c.l.b16 %v366
      %v2259 = vunpack.c.l.b16 %v367
      %v2260 = vunpack.c.l.b16 %v368
      %v2261 = vunpack.c.l.b16 %v369
      %v2262 = vunpack.c.l.b16 %v370
      %v2263 = vunpack.c.l.b16 %v371
      %v2264 = vunpack.c.l.b16 %v372
      %v2265 = vunpack.c.l.b16 %v373
      %v2266 = vunpack.c.l.b16 %v374
      %v2267 = vunpack.c.l.b16 %v375
      %v2268 = vunpack.c.l.b16 %v376
      %v2269 = vunpack.c.l.b16 %v377
      %v2270 = vunpack.c.l.b16 %v378
      %v2271 = vunpack.c.l.b16 %v379
      %v2272 = vunpack.c.l.b16 %v380
      %v2273 = vunpack.c.l.b16 %v381
      %v2274 = vunpack.c.l.b16 %v382
      %v2275 = vunpack.c.l.b16 %v383
      %v2276 = vunpack.c.l.b16 %v384
      %v2277 = vunpack.c.l.b16 %v385
      %v2278 = vunpack.c.l.b16 %v386
      %v2279 = vunpack.c.l.b16 %v387
      %v2280 = vunpack.c.l.b16 %v388
      %v2281 = vunpack.c.l.b16 %v389
      %v2282 = vunpack.c.l.b16 %v390
      %v2283 = vunpack.c.l.b16 %v391
      %v2284 = vunpack.c.l.b16 %v392
      %v2285 = vunpack.c.l.b16 %v393
      %v2286 = vunpack.c.l.b16 %v394
      %v2287 = vunpack.c.l.b16 %v395
      %v2288 = vunpack.c.l.b16 %v396
      %v2289 = vunpack.c.l.b16 %v397
      %v2290 = vunpack.c.l.b16 %v398
      %v2291 = vunpack.c.l.b16 %v399
      %v2292 = vunpack.c.l.b16 %v400
      %v2293 = vunpack.c.l.b16 %v401
      %v2294 = vunpack.c.l.b16 %v402
      %v2295 = vunpack.c.l.b16 %v403
      %v2296 = vunpack.c.l.b16 %v404
      %v2297 = vunpack.c.l.b16 %v405
      %v2298 = vunpack.c.l.b16 %v406
      %v2299 = vunpack.c.l.b16 %v407
      %v2300 = vunpack.c.l.b16 %v408
      %v2301 = vunpack.c.l.b16 %v409
      %v2302 = vunpack.c.l.b16 %v410
      %v2303 = vunpack.c.l.b16 %v411
      %v2304 = vunpack.c.l.b16 %v412
      %v2305 = vunpack.c.l.b16 %v413
      %v2306 = vunpack.c.l.b16 %v414
      %v2307 = vunpack.c.l.b16 %v415
      %v2308 = vunpack.c.l.b16 %v416
      %v2309 = vunpack.c.l.b16 %v417
      %v2310 = vunpack.c.l.b16 %v418
      %v2311 = vunpack.c.l.b16 %v419
      %v2312 = vunpack.c.l.b16 %v420
      %v2313 = vunpack.c.l.b16 %v421
      %v2314 = vunpack.c.l.b16 %v422
      %v2315 = vunpack.c.l.b16 %v423
      %v2316 = vunpack.c.l.b16 %v424
      %v2317 = vunpack.c.l.b16 %v425
      %v2318 = vunpack.c.l.b16 %v426
      %v2319 = vunpack.c.l.b16 %v427
      %v2320 = vunpack.c.l.b16 %v428
      %v2321 = vunpack.c.l.b16 %v429
      %v2322 = vunpack.c.l.b16 %v430
      %v2323 = vunpack.c.l.b16 %v431
      %v2324 = vunpack.c.l.b16 %v432
      %v2325 = vunpack.c.l.b16 %v433
      %v2326 = vunpack.c.l.b16 %v434
      %v2327 = vunpack.c.l.b16 %v435
      %v2328 = vunpack.c.l.b16 %v436
      %v2329 = vunpack.c.l.b16 %v437
      %v2330 = vunpack.c.l.b16 %v438
      %v2331 = vunpack.c.l.b16 %v439
      %v2332 = vunpack.c.l.b16 %v440
      %v2333 = vunpack.c.l.b16 %v441
      %v2334 = vunpack.c.l.b16 %v442
      %v2335 = vunpack.c.l.b16 %v443
      %v2336 = vunpack.c.l.b16 %v444
      %v2337 = vunpack.c.l.b16 %v445
      %v2338 = vunpack.c.l.b16 %v446
      %v2339 = vunpack.c.l.b16 %v447
      %v2340 = vunpack.c.l.b16 %v448
      %v2341 = vunpack.c.l.b16 %v449
      %v2342 = vunpack.c.l.b16 %v450
      %v2343 = vunpack.c.l.b16 %v451
      %v2344 = vunpack.c.l.b16 %v452
      %v2345 = vunpack.c.l.b16 %v453
      %v2346 = vunpack.c.l.b16 %v454
      %v2347 = vunpack.c.l.b16 %v455
      %v2348 = vpack.c.b16 %v2237, %v2236
      %v2349 = vpack.c.b16 %v2239, %v2238
      %v2350 = vpack.c.b16 %v2241, %v2240
      %v2351 = vpack.c.b16 %v2243, %v2242
      %v2352 = vpack.c.b16 %v2245, %v2244
      %v2353 = vpack.c.b16 %v2247, %v2246
      %v2354 = vpack.c.b16 %v2249, %v2248
      %v2355 = vpack.c.b16 %v2251, %v2250
      %v2356 = vpack.c.b16 %v2253, %v2252
      %v2357 = vpack.c.b16 %v2255, %v2254
      %v2358 = vpack.c.b16 %v2257, %v2256
      %v2359 = vpack.c.b16 %v2259, %v2258
      %v2360 = vpack.c.b16 %v2261, %v2260
      %v2361 = vpack.c.b16 %v2263, %v2262
      %v2362 = vpack.c.b16 %v2265, %v2264
      %v2363 = vpack.c.b16 %v2267, %v2266
      %v2364 = vpack.c.b16 %v2269, %v2268
      %v2365 = vpack.c.b16 %v2271, %v2270
      %v2366 = vpack.c.b16 %v2273, %v2272
      %v2367 = vpack.c.b16 %v2275, %v2274
      %v2368 = vpack.c.b16 %v2277, %v2276
      %v2369 = vpack.c.b16 %v2279, %v2278
      %v2370 = vpack.c.b16 %v2281, %v2280
      %v2371 = vpack.c.b16 %v2283, %v2282
      %v2372 = vpack.c.b16 %v2285, %v2284
      %v2373 = vpack.c.b16 %v2287, %v2286
      %v2374 = vpack.c.b16 %v2289, %v2288
      %v2375 = vpack.c.b16 %v2291, %v2290
      %v2376 = vpack.c.b16 %v2293, %v2292
      %v2377 = vpack.c.b16 %v2295, %v2294
      %v2378 = vpack.c.b16 %v2297, %v2296
      %v2379 = vpack.c.b16 %v2299, %v2298
      %v2380 = vpack.c.b16 %v2301, %v2300
      %v2381 = vpack.c.b16 %v2303, %v2302
      %v2382 = vpack.c.b16 %v2305, %v2304
      %v2383 = vpack.c.b16 %v2307, %v2306
      %v2384 = vpack.c.b16 %v2309, %v2308
      %v2385 = vpack.c.b16 %v2311, %v2310
      %v2386 = vpack.c.b16 %v2313, %v2312
      %v2387 = vpack.c.b16 %v2315, %v2314
      %v2388 = vpack.c.b16 %v2317, %v2316
      %v2389 = vpack.c.b16 %v2319, %v2318
      %v2390 = vpack.c.b16 %v2321, %v2320
      %v2391 = vpack.c.b16 %v2323, %v2322
      %v2392 = vpack.c.b16 %v2325, %v2324
      %v2393 = vpack.c.b16 %v2327, %v2326
      %v2394 = vpack.c.b16 %v2329, %v2328
      %v2395 = vpack.c.b16 %v2331, %v2330
      %v2396 = vpack.c.b16 %v2333, %v2332
      %v2397 = vpack.c.b16 %v2335, %v2334
      %v2398 = vpack.c.b16 %v2337, %v2336
      %v2399 = vpack.c.b16 %v2339, %v2338
      %v2400 = vpack.c.b16 %v2341, %v2340
      %v2401 = vpack.c.b16 %v2343, %v2342
      %v2402 = vpack.c.b16 %v2345, %v2344
      %v2403 = vpack.c.b16 %v2347, %v2346
      %2460 = vmatprep.subr.bf16.mxu0 0
      %2461 = vmatpush1.bf16.msra.mxu0 %v2348
      %2462 = vmatprep.subr.bf16.mxu0 0
      %2463 = vmatpush1.bf16.msra.mxu0 %v2349
      %2464 = vmatprep.subr.bf16.mxu0 0
      %2465 = vmatpush1.bf16.msra.mxu0 %v2350
      %2466 = vmatprep.subr.bf16.mxu0 0
      %2467 = vmatpush1.bf16.msra.mxu0 %v2351
      %2468 = vmatprep.subr.bf16.mxu0 0
      %2469 = vmatpush1.bf16.msra.mxu0 %v2352
      %2470 = vmatprep.subr.bf16.mxu0 0
      %2471 = vmatpush1.bf16.msra.mxu0 %v2353
      %2472 = vmatprep.subr.bf16.mxu0 0
      %2473 = vmatpush1.bf16.msra.mxu0 %v2354
      %2474 = vmatprep.subr.bf16.mxu0 0
      %2475 = vmatpush1.bf16.msra.mxu0 %v2355
      %2476 = vmatprep.subr.bf16.mxu0 0
      %2477 = vmatpush1.bf16.msra.mxu0 %v2356
      %2478 = vmatprep.subr.bf16.mxu0 0
      %2479 = vmatpush1.bf16.msra.mxu0 %v2357
      %2480 = vmatprep.subr.bf16.mxu0 0
      %2481 = vmatpush1.bf16.msra.mxu0 %v2358
      %2482 = vmatprep.subr.bf16.mxu0 0
      %2483 = vmatpush1.bf16.msra.mxu0 %v2359
      %2484 = vmatprep.subr.bf16.mxu0 0
      %2485 = vmatpush1.bf16.msra.mxu0 %v2360
      %2486 = vmatprep.subr.bf16.mxu0 0
      %2487 = vmatpush1.bf16.msra.mxu0 %v2361
      %2488 = vmatprep.subr.bf16.mxu0 0
      %2489 = vmatpush1.bf16.msra.mxu0 %v2362
      %2490 = vmatprep.subr.bf16.mxu0 0
      %2491 = vmatpush1.bf16.msra.mxu0 %v2363
      %2492 = vmatprep.mubr.bf16.mxu0 %v921
      %2493 = vmatmul.mubr.bf16.gmra.mrb[0].mxu0 %v920
      %v2494 = vpop.f32.mrb[0].mxu0
      %v2495 = vadd.f32 %v1998, %v2494
      %v2496 = vpop.f32.mrb[0].mxu0
      %v2497 = vpop.f32.mrb[0].mxu0
      %v2498 = vadd.f32 %v2001, %v2497
      %v2499 = vpop.f32.mrb[0].mxu0
      %2500 = vmatprep.mubr.bf16.mxu0 %v928
      %2501 = vmatmul.mubr.bf16.gmra.mrb[0].mxu0 %v927
      %v2502 = vpop.f32.mrb[0].mxu0
      %v2503 = vadd.f32 %v2006, %v2502
      %v2504 = vpop.f32.mrb[0].mxu0
      %v2505 = vpop.f32.mrb[0].mxu0
      %v2506 = vadd.f32 %v2009, %v2505
      %v2507 = vpop.f32.mrb[0].mxu0
      %2508 = vmatprep.mubr.bf16.mxu0 %v935
      %2509 = vmatmul.mubr.bf16.gmra.mrb[0].mxu0 %v934
      %v2510 = vpop.f32.mrb[0].mxu0
      %v2511 = vadd.f32 %v2014, %v2510
      %v2512 = vpop.f32.mrb[0].mxu0
      %v2513 = vpop.f32.mrb[0].mxu0
      %v2514 = vadd.f32 %v2017, %v2513
      %v2515 = vpop.f32.mrb[0].mxu0
      %2516 = vmatprep.mubr.bf16.mxu0 %v942
      %2517 = vmatmul.mubr.bf16.gmra.mrb[0].mxu0 %v941
      %v2518 = vpop.f32.mrb[0].mxu0
      %v2519 = vadd.f32 %v2022, %v2518
      %v2520 = vpop.f32.mrb[0].mxu0
      %v2521 = vpop.f32.mrb[0].mxu0
      %v2522 = vadd.f32 %v2025, %v2521
      %v2523 = vpop.f32.mrb[0].mxu0
      %2524 = vmatprep.mubr.bf16.mxu0 %v949
      %2525 = vmatmul.mubr.bf16.gmra.mrb[0].mxu0 %v948
      %v2526 = vpop.f32.mrb[0].mxu0
      %v2527 = vadd.f32 %v2030, %v2526
      %v2528 = vpop.f32.mrb[0].mxu0
      %v2529 = vpop.f32.mrb[0].mxu0
      %v2530 = vadd.f32 %v2033, %v2529
      %v2531 = vpop.f32.mrb[0].mxu0
      %2532 = vmatprep.mubr.bf16.mxu0 %v956
      %2533 = vmatmul.mubr.bf16.gmra.mrb[0].mxu0 %v955
      %v2534 = vpop.f32.mrb[0].mxu0
      %v2535 = vadd.f32 %v2038, %v2534
      %v2536 = vpop.f32.mrb[0].mxu0
      %v2537 = vpop.f32.mrb[0].mxu0
      %v2538 = vadd.f32 %v2041, %v2537
      %v2539 = vpop.f32.mrb[0].mxu0
      %2540 = vmatprep.mubr.bf16.mxu0 %v963
      %2541 = vmatmul.mubr.bf16.gmra.mrb[0].mxu0 %v962
      %v2542 = vpop.f32.mrb[0].mxu0
      %v2543 = vadd.f32 %v2046, %v2542
      %v2544 = vpop.f32.mrb[0].mxu0
      %v2545 = vpop.f32.mrb[0].mxu0
      %v2546 = vadd.f32 %v2049, %v2545
      %v2547 = vpop.f32.mrb[0].mxu0
      %2548 = vmatprep.mubr.bf16.mxu0 %v970
      %2549 = vmatmul.mubr.bf16.gmra.mrb[0].mxu0 %v969
      %v2550 = vpop.f32.mrb[0].mxu0
      %v2551 = vadd.f32 %v2054, %v2550
      %v2552 = vpop.f32.mrb[0].mxu0
      %v2553 = vpop.f32.mrb[0].mxu0
      %v2554 = vadd.f32 %v2057, %v2553
      %v2555 = vpop.f32.mrb[0].mxu0
      %2556 = vmatprep.mubr.bf16.mxu0 %v977
      %2557 = vmatmul.mubr.bf16.gmra.mrb[0].mxu0 %v976
      %v2558 = vpop.f32.mrb[0].mxu0
      %v2559 = vadd.f32 %v2062, %v2558
      %v2560 = vpop.f32.mrb[0].mxu0
      %v2561 = vpop.f32.mrb[0].mxu0
      %v2562 = vadd.f32 %v2065, %v2561
      %v2563 = vpop.f32.mrb[0].mxu0
      %2564 = vmatprep.mubr.bf16.mxu0 %v984
      %2565 = vmatmul.mubr.bf16.gmra.mrb[0].mxu0 %v983
      %v2566 = vpop.f32.mrb[0].mxu0
      %v2567 = vadd.f32 %v2070, %v2566
      %v2568 = vpop.f32.mrb[0].mxu0
      %v2569 = vpop.f32.mrb[0].mxu0
      %v2570 = vadd.f32 %v2073, %v2569
      %v2571 = vpop.f32.mrb[0].mxu0
      %2572 = vmatprep.mubr.bf16.mxu0 %v991
      %2573 = vmatmul.mubr.bf16.gmra.mrb[0].mxu0 %v990
      %v2574 = vpop.f32.mrb[0].mxu0
      %v2575 = vadd.f32 %v2078, %v2574
      %v2576 = vpop.f32.mrb[0].mxu0
      %v2577 = vpop.f32.mrb[0].mxu0
      %v2578 = vadd.f32 %v2081, %v2577
      %v2579 = vpop.f32.mrb[0].mxu0
      %2580 = vmatprep.mubr.bf16.mxu0 %v998
      %2581 = vmatmul.mubr.bf16.gmra.mrb[0].mxu0 %v997
      %v2582 = vpop.f32.mrb[0].mxu0
      %v2583 = vadd.f32 %v2086, %v2582
      %v2584 = vpop.f32.mrb[0].mxu0
      %v2585 = vpop.f32.mrb[0].mxu0
      %v2586 = vadd.f32 %v2089, %v2585
      %v2587 = vpop.f32.mrb[0].mxu0
      %2588 = vmatprep.mubr.bf16.mxu0 %v1005
      %2589 = vmatmul.mubr.bf16.gmra.mrb[0].mxu0 %v1004
      %v2590 = vpop.f32.mrb[0].mxu0
      %v2591 = vadd.f32 %v2094, %v2590
      %v2592 = vpop.f32.mrb[0].mxu0
      %v2593 = vpop.f32.mrb[0].mxu0
      %v2594 = vadd.f32 %v2097, %v2593
      %v2595 = vpop.f32.mrb[0].mxu0
      %2596 = vmatprep.mubr.bf16.mxu0 %v1012
      %2597 = vmatmul.mubr.bf16.gmra.mrb[0].mxu0 %v1011
      %v2598 = vpop.f32.mrb[0].mxu0
      %v2599 = vadd.f32 %v2102, %v2598
      %v2600 = vpop.f32.mrb[0].mxu0
      %v2601 = vpop.f32.mrb[0].mxu0
      %v2602 = vadd.f32 %v2105, %v2601
      %v2603 = vpop.f32.mrb[0].mxu0
      %2604 = vmatprep.mubr.bf16.mxu0 %v1019
      %2605 = vmatmul.mubr.bf16.gmra.mrb[0].mxu0 %v1018
      %v2606 = vpop.f32.mrb[0].mxu0
      %v2607 = vadd.f32 %v2110, %v2606
      %v2608 = vpop.f32.mrb[0].mxu0
      %v2609 = vpop.f32.mrb[0].mxu0
      %v2610 = vadd.f32 %v2113, %v2609
      %v2611 = vpop.f32.mrb[0].mxu0
      %2612 = vmatprep.mubr.bf16.mxu0 %v1026
      %2613 = vmatmul.mubr.bf16.gmra.mrb[0].mxu0 %v1025
      %v2614 = vpop.f32.mrb[0].mxu0
      %v2615 = vadd.f32 %v2118, %v2614
      %v2616 = vpop.f32.mrb[0].mxu0
      %v2617 = vpop.f32.mrb[0].mxu0
      %v2618 = vadd.f32 %v2121, %v2617
      %v2619 = vpop.f32.mrb[0].mxu0
      %2620 = vdwg.mxu0
      %2621 = vmatprep.subr.bf16.mxu0 0
      %2622 = vmatpush1.bf16.msra.mxu0 %v2364
      %2623 = vmatprep.subr.bf16.mxu0 0
      %2624 = vmatpush1.bf16.msra.mxu0 %v2365
      %2625 = vmatprep.subr.bf16.mxu0 0
      %2626 = vmatpush1.bf16.msra.mxu0 %v2366
      %2627 = vmatprep.subr.bf16.mxu0 0
      %2628 = vmatpush1.bf16.msra.mxu0 %v2367
      %2629 = vmatprep.subr.bf16.mxu0 0
      %2630 = vmatpush1.bf16.msra.mxu0 %v2368
      %2631 = vmatprep.subr.bf16.mxu0 0
      %2632 = vmatpush1.bf16.msra.mxu0 %v2369
      %2633 = vmatprep.subr.bf16.mxu0 0
      %2634 = vmatpush1.bf16.msra.mxu0 %v2370
      %2635 = vmatprep.subr.bf16.mxu0 0
      %2636 = vmatpush1.bf16.msra.mxu0 %v2371
      %2637 = vmatprep.subr.bf16.mxu0 0
      %2638 = vmatpush1.bf16.msra.mxu0 %v2372
      %2639 = vmatprep.subr.bf16.mxu0 0
      %2640 = vmatpush1.bf16.msra.mxu0 %v2373
      %2641 = vmatprep.subr.bf16.mxu0 0
      %2642 = vmatpush1.bf16.msra.mxu0 %v2374
      %2643 = vmatprep.subr.bf16.mxu0 0
      %2644 = vmatpush1.bf16.msra.mxu0 %v2375
      %2645 = vmatprep.subr.bf16.mxu0 0
      %2646 = vmatpush1.bf16.msra.mxu0 %v2376
      %2647 = vmatprep.subr.bf16.mxu0 0
      %2648 = vmatpush1.bf16.msra.mxu0 %v2377
      %2649 = vmatprep.subr.bf16.mxu0 0
      %2650 = vmatpush1.bf16.msra.mxu0 %v2378
      %2651 = vmatprep.subr.bf16.mxu0 0
      %2652 = vmatpush1.bf16.msra.mxu0 %v2379
      %2653 = vmatprep.mubr.bf16.mxu0 %v923
      %2654 = vmatmul.mubr.bf16.gmra.mrb[0].mxu0 %v922
      %v2655 = vpop.f32.mrb[0].mxu0
      %v2656 = vadd.f32 %v2495, %v2655
      %v2657 = vpop.f32.mrb[0].mxu0
      %v2658 = vpop.f32.mrb[0].mxu0
      %v2659 = vadd.f32 %v2498, %v2658
      %v2660 = vpop.f32.mrb[0].mxu0
      %2661 = vmatprep.mubr.bf16.mxu0 %v930
      %2662 = vmatmul.mubr.bf16.gmra.mrb[0].mxu0 %v929
      %v2663 = vpop.f32.mrb[0].mxu0
      %v2664 = vadd.f32 %v2503, %v2663
      %v2665 = vpop.f32.mrb[0].mxu0
      %v2666 = vpop.f32.mrb[0].mxu0
      %v2667 = vadd.f32 %v2506, %v2666
      %v2668 = vpop.f32.mrb[0].mxu0
      %2669 = vmatprep.mubr.bf16.mxu0 %v937
      %2670 = vmatmul.mubr.bf16.gmra.mrb[0].mxu0 %v936
      %v2671 = vpop.f32.mrb[0].mxu0
      %v2672 = vadd.f32 %v2511, %v2671
      %v2673 = vpop.f32.mrb[0].mxu0
      %v2674 = vpop.f32.mrb[0].mxu0
      %v2675 = vadd.f32 %v2514, %v2674
      %v2676 = vpop.f32.mrb[0].mxu0
      %2677 = vmatprep.mubr.bf16.mxu0 %v944
      %2678 = vmatmul.mubr.bf16.gmra.mrb[0].mxu0 %v943
      %v2679 = vpop.f32.mrb[0].mxu0
      %v2680 = vadd.f32 %v2519, %v2679
      %v2681 = vpop.f32.mrb[0].mxu0
      %v2682 = vpop.f32.mrb[0].mxu0
      %v2683 = vadd.f32 %v2522, %v2682
      %v2684 = vpop.f32.mrb[0].mxu0
      %2685 = vmatprep.mubr.bf16.mxu0 %v951
      %2686 = vmatmul.mubr.bf16.gmra.mrb[0].mxu0 %v950
      %v2687 = vpop.f32.mrb[0].mxu0
      %v2688 = vadd.f32 %v2527, %v2687
      %v2689 = vpop.f32.mrb[0].mxu0
      %v2690 = vpop.f32.mrb[0].mxu0
      %v2691 = vadd.f32 %v2530, %v2690
      %v2692 = vpop.f32.mrb[0].mxu0
      %2693 = vmatprep.mubr.bf16.mxu0 %v958
      %2694 = vmatmul.mubr.bf16.gmra.mrb[0].mxu0 %v957
      %v2695 = vpop.f32.mrb[0].mxu0
      %v2696 = vadd.f32 %v2535, %v2695
      %v2697 = vpop.f32.mrb[0].mxu0
      %v2698 = vpop.f32.mrb[0].mxu0
      %v2699 = vadd.f32 %v2538, %v2698
      %v2700 = vpop.f32.mrb[0].mxu0
      %2701 = vmatprep.mubr.bf16.mxu0 %v965
      %2702 = vmatmul.mubr.bf16.gmra.mrb[0].mxu0 %v964
      %v2703 = vpop.f32.mrb[0].mxu0
      %v2704 = vadd.f32 %v2543, %v2703
      %v2705 = vpop.f32.mrb[0].mxu0
      %v2706 = vpop.f32.mrb[0].mxu0
      %v2707 = vadd.f32 %v2546, %v2706
      %v2708 = vpop.f32.mrb[0].mxu0
      %2709 = vmatprep.mubr.bf16.mxu0 %v972
      %2710 = vmatmul.mubr.bf16.gmra.mrb[0].mxu0 %v971
      %v2711 = vpop.f32.mrb[0].mxu0
      %v2712 = vadd.f32 %v2551, %v2711
      %v2713 = vpop.f32.mrb[0].mxu0
      %v2714 = vpop.f32.mrb[0].mxu0
      %v2715 = vadd.f32 %v2554, %v2714
      %v2716 = vpop.f32.mrb[0].mxu0
      %2717 = vmatprep.mubr.bf16.mxu0 %v979
      %2718 = vmatmul.mubr.bf16.gmra.mrb[0].mxu0 %v978
      %v2719 = vpop.f32.mrb[0].mxu0
      %v2720 = vadd.f32 %v2559, %v2719
      %v2721 = vpop.f32.mrb[0].mxu0
      %v2722 = vpop.f32.mrb[0].mxu0
      %v2723 = vadd.f32 %v2562, %v2722
      %v2724 = vpop.f32.mrb[0].mxu0
      %2725 = vmatprep.mubr.bf16.mxu0 %v986
      %2726 = vmatmul.mubr.bf16.gmra.mrb[0].mxu0 %v985
      %v2727 = vpop.f32.mrb[0].mxu0
      %v2728 = vadd.f32 %v2567, %v2727
      %v2729 = vpop.f32.mrb[0].mxu0
      %v2730 = vpop.f32.mrb[0].mxu0
      %v2731 = vadd.f32 %v2570, %v2730
      %v2732 = vpop.f32.mrb[0].mxu0
      %2733 = vmatprep.mubr.bf16.mxu0 %v993
      %2734 = vmatmul.mubr.bf16.gmra.mrb[0].mxu0 %v992
      %v2735 = vpop.f32.mrb[0].mxu0
      %v2736 = vadd.f32 %v2575, %v2735
      %v2737 = vpop.f32.mrb[0].mxu0
      %v2738 = vpop.f32.mrb[0].mxu0
      %v2739 = vadd.f32 %v2578, %v2738
      %v2740 = vpop.f32.mrb[0].mxu0
      %2741 = vmatprep.mubr.bf16.mxu0 %v1000
      %2742 = vmatmul.mubr.bf16.gmra.mrb[0].mxu0 %v999
      %v2743 = vpop.f32.mrb[0].mxu0
      %v2744 = vadd.f32 %v2583, %v2743
      %v2745 = vpop.f32.mrb[0].mxu0
      %v2746 = vpop.f32.mrb[0].mxu0
      %v2747 = vadd.f32 %v2586, %v2746
      %v2748 = vpop.f32.mrb[0].mxu0
      %2749 = vmatprep.mubr.bf16.mxu0 %v1007
      %2750 = vmatmul.mubr.bf16.gmra.mrb[0].mxu0 %v1006
      %v2751 = vpop.f32.mrb[0].mxu0
      %v2752 = vadd.f32 %v2591, %v2751
      %v2753 = vpop.f32.mrb[0].mxu0
      %v2754 = vpop.f32.mrb[0].mxu0
      %v2755 = vadd.f32 %v2594, %v2754
      %v2756 = vpop.f32.mrb[0].mxu0
      %2757 = vmatprep.mubr.bf16.mxu0 %v1014
      %2758 = vmatmul.mubr.bf16.gmra.mrb[0].mxu0 %v1013
      %v2759 = vpop.f32.mrb[0].mxu0
      %v2760 = vadd.f32 %v2599, %v2759
      %v2761 = vpop.f32.mrb[0].mxu0
      %v2762 = vpop.f32.mrb[0].mxu0
      %v2763 = vadd.f32 %v2602, %v2762
      %v2764 = vpop.f32.mrb[0].mxu0
      %2765 = vmatprep.mubr.bf16.mxu0 %v1021
      %2766 = vmatmul.mubr.bf16.gmra.mrb[0].mxu0 %v1020
      %v2767 = vpop.f32.mrb[0].mxu0
      %v2768 = vadd.f32 %v2607, %v2767
      %v2769 = vpop.f32.mrb[0].mxu0
      %v2770 = vpop.f32.mrb[0].mxu0
      %v2771 = vadd.f32 %v2610, %v2770
      %v2772 = vpop.f32.mrb[0].mxu0
      %2773 = vmatprep.mubr.bf16.mxu0 %v1028
      %2774 = vmatmul.mubr.bf16.gmra.mrb[0].mxu0 %v1027
      %v2775 = vpop.f32.mrb[0].mxu0
      %v2776 = vadd.f32 %v2615, %v2775
      %v2777 = vpop.f32.mrb[0].mxu0
      %v2778 = vpop.f32.mrb[0].mxu0
      %v2779 = vadd.f32 %v2618, %v2778
      %v2780 = vpop.f32.mrb[0].mxu0
      %2781 = vdwg.mxu0
      %2782 = vmatprep.subr.bf16.mxu0 0
      %2783 = vmatpush1.bf16.msra.mxu0 %v2380
      %2784 = vmatprep.subr.bf16.mxu0 0
      %2785 = vmatpush1.bf16.msra.mxu0 %v2381
      %2786 = vmatprep.subr.bf16.mxu0 0
      %2787 = vmatpush1.bf16.msra.mxu0 %v2382
      %2788 = vmatprep.subr.bf16.mxu0 0
      %2789 = vmatpush1.bf16.msra.mxu0 %v2383
      %2790 = vmatprep.subr.bf16.mxu0 0
      %2791 = vmatpush1.bf16.msra.mxu0 %v2384
      %2792 = vmatprep.subr.bf16.mxu0 0
      %2793 = vmatpush1.bf16.msra.mxu0 %v2385
      %2794 = vmatprep.subr.bf16.mxu0 0
      %2795 = vmatpush1.bf16.msra.mxu0 %v2386
      %2796 = vmatprep.subr.bf16.mxu0 0
      %2797 = vmatpush1.bf16.msra.mxu0 %v2387
      %2798 = vmatprep.subr.bf16.mxu0 0
      %2799 = vmatpush1.bf16.msra.mxu0 %v2388
      %2800 = vmatprep.subr.bf16.mxu0 0
      %2801 = vmatpush1.bf16.msra.mxu0 %v2389
      %2802 = vmatprep.subr.bf16.mxu0 0
      %2803 = vmatpush1.bf16.msra.mxu0 %v2390
      %2804 = vmatprep.subr.bf16.mxu0 0
      %2805 = vmatpush1.bf16.msra.mxu0 %v2391
      %2806 = vmatprep.subr.bf16.mxu0 0
      %2807 = vmatpush1.bf16.msra.mxu0 %v2392
      %2808 = vmatprep.subr.bf16.mxu0 0
      %2809 = vmatpush1.bf16.msra.mxu0 %v2393
      %2810 = vmatprep.subr.bf16.mxu0 0
      %2811 = vmatpush1.bf16.msra.mxu0 %v2394
      %2812 = vmatprep.subr.bf16.mxu0 0
      %2813 = vmatpush1.bf16.msra.mxu0 %v2395
      %2814 = vmatprep.mubr.bf16.mxu0 %v925
      %2815 = vmatmul.mubr.bf16.gmra.mrb[0].mxu0 %v924
      %v2816 = vpop.f32.mrb[0].mxu0
      %v2817 = vadd.f32 %v2656, %v2816
      %v2818 = vpop.f32.mrb[0].mxu0
      %v2819 = vpop.f32.mrb[0].mxu0
      %v2820 = vadd.f32 %v2659, %v2819
      %v2821 = vpop.f32.mrb[0].mxu0
      %2822 = vmatprep.mubr.bf16.mxu0 %v932
      %2823 = vmatmul.mubr.bf16.gmra.mrb[0].mxu0 %v931
      %v2824 = vpop.f32.mrb[0].mxu0
      %v2825 = vadd.f32 %v2664, %v2824
      %v2826 = vpop.f32.mrb[0].mxu0
      %v2827 = vpop.f32.mrb[0].mxu0
      %v2828 = vadd.f32 %v2667, %v2827
      %v2829 = vpop.f32.mrb[0].mxu0
      %2830 = vmatprep.mubr.bf16.mxu0 %v939
      %2831 = vmatmul.mubr.bf16.gmra.mrb[0].mxu0 %v938
      %v2832 = vpop.f32.mrb[0].mxu0
      %v2833 = vadd.f32 %v2672, %v2832
      %v2834 = vpop.f32.mrb[0].mxu0
      %v2835 = vpop.f32.mrb[0].mxu0
      %v2836 = vadd.f32 %v2675, %v2835
      %v2837 = vpop.f32.mrb[0].mxu0
      %2838 = vmatprep.mubr.bf16.mxu0 %v946
      %2839 = vmatmul.mubr.bf16.gmra.mrb[0].mxu0 %v945
      %v2840 = vpop.f32.mrb[0].mxu0
      %v2841 = vadd.f32 %v2680, %v2840
      %v2842 = vpop.f32.mrb[0].mxu0
      %v2843 = vpop.f32.mrb[0].mxu0
      %v2844 = vadd.f32 %v2683, %v2843
      %v2845 = vpop.f32.mrb[0].mxu0
      %2846 = vmatprep.mubr.bf16.mxu0 %v953
      %2847 = vmatmul.mubr.bf16.gmra.mrb[0].mxu0 %v952
      %v2848 = vpop.f32.mrb[0].mxu0
      %v2849 = vadd.f32 %v2688, %v2848
      %v2850 = vpop.f32.mrb[0].mxu0
      %v2851 = vpop.f32.mrb[0].mxu0
      %v2852 = vadd.f32 %v2691, %v2851
      %v2853 = vpop.f32.mrb[0].mxu0
      %2854 = vmatprep.mubr.bf16.mxu0 %v960
      %2855 = vmatmul.mubr.bf16.gmra.mrb[0].mxu0 %v959
      %v2856 = vpop.f32.mrb[0].mxu0
      %v2857 = vadd.f32 %v2696, %v2856
      %v2858 = vpop.f32.mrb[0].mxu0
      %v2859 = vpop.f32.mrb[0].mxu0
      %v2860 = vadd.f32 %v2699, %v2859
      %v2861 = vpop.f32.mrb[0].mxu0
      %2862 = vmatprep.mubr.bf16.mxu0 %v967
      %2863 = vmatmul.mubr.bf16.gmra.mrb[0].mxu0 %v966
      %v2864 = vpop.f32.mrb[0].mxu0
      %v2865 = vadd.f32 %v2704, %v2864
      %v2866 = vpop.f32.mrb[0].mxu0
      %v2867 = vpop.f32.mrb[0].mxu0
      %v2868 = vadd.f32 %v2707, %v2867
      %v2869 = vpop.f32.mrb[0].mxu0
      %2870 = vmatprep.mubr.bf16.mxu0 %v974
      %2871 = vmatmul.mubr.bf16.gmra.mrb[0].mxu0 %v973
      %v2872 = vpop.f32.mrb[0].mxu0
      %v2873 = vadd.f32 %v2712, %v2872
      %v2874 = vpop.f32.mrb[0].mxu0
      %v2875 = vpop.f32.mrb[0].mxu0
      %v2876 = vadd.f32 %v2715, %v2875
      %v2877 = vpop.f32.mrb[0].mxu0
      %2878 = vmatprep.mubr.bf16.mxu0 %v981
      %2879 = vmatmul.mubr.bf16.gmra.mrb[0].mxu0 %v980
      %v2880 = vpop.f32.mrb[0].mxu0
      %v2881 = vadd.f32 %v2720, %v2880
      %v2882 = vpop.f32.mrb[0].mxu0
      %v2883 = vpop.f32.mrb[0].mxu0
      %v2884 = vadd.f32 %v2723, %v2883
      %v2885 = vpop.f32.mrb[0].mxu0
      %2886 = vmatprep.mubr.bf16.mxu0 %v988
      %2887 = vmatmul.mubr.bf16.gmra.mrb[0].mxu0 %v987
      %v2888 = vpop.f32.mrb[0].mxu0
      %v2889 = vadd.f32 %v2728, %v2888
      %v2890 = vpop.f32.mrb[0].mxu0
      %v2891 = vpop.f32.mrb[0].mxu0
      %v2892 = vadd.f32 %v2731, %v2891
      %v2893 = vpop.f32.mrb[0].mxu0
      %2894 = vmatprep.mubr.bf16.mxu0 %v995
      %2895 = vmatmul.mubr.bf16.gmra.mrb[0].mxu0 %v994
      %v2896 = vpop.f32.mrb[0].mxu0
      %v2897 = vadd.f32 %v2736, %v2896
      %v2898 = vpop.f32.mrb[0].mxu0
      %v2899 = vpop.f32.mrb[0].mxu0
      %v2900 = vadd.f32 %v2739, %v2899
      %v2901 = vpop.f32.mrb[0].mxu0
      %2902 = vmatprep.mubr.bf16.mxu0 %v1002
      %2903 = vmatmul.mubr.bf16.gmra.mrb[0].mxu0 %v1001
      %v2904 = vpop.f32.mrb[0].mxu0
      %v2905 = vadd.f32 %v2744, %v2904
      %v2906 = vpop.f32.mrb[0].mxu0
      %v2907 = vpop.f32.mrb[0].mxu0
      %v2908 = vadd.f32 %v2747, %v2907
      %v2909 = vpop.f32.mrb[0].mxu0
      %2910 = vmatprep.mubr.bf16.mxu0 %v1009
      %2911 = vmatmul.mubr.bf16.gmra.mrb[0].mxu0 %v1008
      %v2912 = vpop.f32.mrb[0].mxu0
      %v2913 = vadd.f32 %v2752, %v2912
      %v2914 = vpop.f32.mrb[0].mxu0
      %v2915 = vpop.f32.mrb[0].mxu0
      %v2916 = vadd.f32 %v2755, %v2915
      %v2917 = vpop.f32.mrb[0].mxu0
      %2918 = vmatprep.mubr.bf16.mxu0 %v1016
      %2919 = vmatmul.mubr.bf16.gmra.mrb[0].mxu0 %v1015
      %v2920 = vpop.f32.mrb[0].mxu0
      %v2921 = vadd.f32 %v2760, %v2920
      %v2922 = vpop.f32.mrb[0].mxu0
      %v2923 = vpop.f32.mrb[0].mxu0
      %v2924 = vadd.f32 %v2763, %v2923
      %v2925 = vpop.f32.mrb[0].mxu0
      %2926 = vmatprep.mubr.bf16.mxu0 %v1023
      %2927 = vmatmul.mubr.bf16.gmra.mrb[0].mxu0 %v1022
      %v2928 = vpop.f32.mrb[0].mxu0
      %v2929 = vadd.f32 %v2768, %v2928
      %v2930 = vpop.f32.mrb[0].mxu0
      %v2931 = vpop.f32.mrb[0].mxu0
      %v2932 = vadd.f32 %v2771, %v2931
      %v2933 = vpop.f32.mrb[0].mxu0
      %2934 = vmatprep.mubr.bf16.mxu0 %v1030
      %2935 = vmatmul.mubr.bf16.gmra.mrb[0].mxu0 %v1029
      %v2936 = vpop.f32.mrb[0].mxu0
      %v2937 = vadd.f32 %v2776, %v2936
      %v2938 = vpop.f32.mrb[0].mxu0
      %v2939 = vpop.f32.mrb[0].mxu0
      %v2940 = vadd.f32 %v2779, %v2939
      %v2941 = vpop.f32.mrb[0].mxu0
      %2942 = vdwg.mxu0
      %2943 = vmatprep.subr.bf16.mxu0 0
      %2944 = vmatpush1.bf16.msra.mxu0 %v2396
      %2945 = vmatprep.subr.bf16.mxu0 0
      %2946 = vmatpush1.bf16.msra.mxu0 %v2397
      %2947 = vmatprep.subr.bf16.mxu0 0
      %2948 = vmatpush1.bf16.msra.mxu0 %v2398
      %2949 = vmatprep.subr.bf16.mxu0 0
      %2950 = vmatpush1.bf16.msra.mxu0 %v2399
      %2951 = vmatprep.subr.bf16.mxu0 0
      %2952 = vmatpush1.bf16.msra.mxu0 %v2400
      %2953 = vmatprep.subr.bf16.mxu0 0
      %2954 = vmatpush1.bf16.msra.mxu0 %v2401
      %2955 = vmatprep.subr.bf16.mxu0 0
      %2956 = vmatpush1.bf16.msra.mxu0 %v2402
      %2957 = vmatprep.subr.bf16.mxu0 0
      %2958 = vmatpush1.bf16.msra.mxu0 %v2403
      %2959 = vmatprep.subr.bf16.mxu0 0
      %2960 = vmatpush1.bf16.msra.mxu0 0
      %2961 = vmatprep.subr.bf16.mxu0 0
      %2962 = vmatpush1.bf16.msra.mxu0 0
      %2963 = vmatprep.subr.bf16.mxu0 0
      %2964 = vmatpush1.bf16.msra.mxu0 0
      %2965 = vmatprep.subr.bf16.mxu0 0
      %2966 = vmatpush1.bf16.msra.mxu0 0
      %2967 = vmatprep.subr.bf16.mxu0 0
      %2968 = vmatpush1.bf16.msra.mxu0 0
      %2969 = vmatprep.subr.bf16.mxu0 0
      %2970 = vmatpush1.bf16.msra.mxu0 0
      %2971 = vmatprep.subr.bf16.mxu0 0
      %2972 = vmatpush1.bf16.msra.mxu0 0
      %2973 = vmatprep.subr.bf16.mxu0 0
      %2974 = vmatpush1.bf16.msra.mxu0 0
      %2975 = vmatprep.mubr.bf16.mxu0 0
      %2976 = vmatmul.mubr.bf16.gmra.mrb[0].mxu0 %v926
      %v2977 = vpop.f32.mrb[0].mxu0
      %v2978 = vadd.f32 %v2817, %v2977
      %v2979 = vpop.f32.mrb[0].mxu0
      %v2980 = vpop.f32.mrb[0].mxu0
      %v2981 = vadd.f32 %v2820, %v2980
      %v2982 = vpop.f32.mrb[0].mxu0
      %2983 = vmatprep.mubr.bf16.mxu0 0
      %2984 = vmatmul.mubr.bf16.gmra.mrb[0].mxu0 %v933
      %v2985 = vpop.f32.mrb[0].mxu0
      %v2986 = vadd.f32 %v2825, %v2985
      %v2987 = vpop.f32.mrb[0].mxu0
      %v2988 = vpop.f32.mrb[0].mxu0
      %v2989 = vadd.f32 %v2828, %v2988
      %v2990 = vpop.f32.mrb[0].mxu0
      %2991 = vmatprep.mubr.bf16.mxu0 0
      %2992 = vmatmul.mubr.bf16.gmra.mrb[0].mxu0 %v940
      %v2993 = vpop.f32.mrb[0].mxu0
      %v2994 = vadd.f32 %v2833, %v2993
      %v2995 = vpop.f32.mrb[0].mxu0
      %v2996 = vpop.f32.mrb[0].mxu0
      %v2997 = vadd.f32 %v2836, %v2996
      %v2998 = vpop.f32.mrb[0].mxu0
      %2999 = vmatprep.mubr.bf16.mxu0 0
      %3000 = vmatmul.mubr.bf16.gmra.mrb[0].mxu0 %v947
      %v3001 = vpop.f32.mrb[0].mxu0
      %v3002 = vadd.f32 %v2841, %v3001
      %v3003 = vpop.f32.mrb[0].mxu0
      %v3004 = vpop.f32.mrb[0].mxu0
      %v3005 = vadd.f32 %v2844, %v3004
      %v3006 = vpop.f32.mrb[0].mxu0
      %3007 = vmatprep.mubr.bf16.mxu0 0
      %3008 = vmatmul.mubr.bf16.gmra.mrb[0].mxu0 %v954
      %v3009 = vpop.f32.mrb[0].mxu0
      %v3010 = vadd.f32 %v2849, %v3009
      %v3011 = vpop.f32.mrb[0].mxu0
      %v3012 = vpop.f32.mrb[0].mxu0
      %v3013 = vadd.f32 %v2852, %v3012
      %v3014 = vpop.f32.mrb[0].mxu0
      %3015 = vmatprep.mubr.bf16.mxu0 0
      %3016 = vmatmul.mubr.bf16.gmra.mrb[0].mxu0 %v961
      %v3017 = vpop.f32.mrb[0].mxu0
      %v3018 = vadd.f32 %v2857, %v3017
      %v3019 = vpop.f32.mrb[0].mxu0
      %v3020 = vpop.f32.mrb[0].mxu0
      %v3021 = vadd.f32 %v2860, %v3020
      %v3022 = vpop.f32.mrb[0].mxu0
      %3023 = vmatprep.mubr.bf16.mxu0 0
      %3024 = vmatmul.mubr.bf16.gmra.mrb[0].mxu0 %v968
      %v3025 = vpop.f32.mrb[0].mxu0
      %v3026 = vadd.f32 %v2865, %v3025
      %v3027 = vpop.f32.mrb[0].mxu0
      %v3028 = vpop.f32.mrb[0].mxu0
      %v3029 = vadd.f32 %v2868, %v3028
      %v3030 = vpop.f32.mrb[0].mxu0
      %3031 = vmatprep.mubr.bf16.mxu0 0
      %3032 = vmatmul.mubr.bf16.gmra.mrb[0].mxu0 %v975
      %v3033 = vpop.f32.mrb[0].mxu0
      %v3034 = vadd.f32 %v2873, %v3033
      %v3035 = vpop.f32.mrb[0].mxu0
      %v3036 = vpop.f32.mrb[0].mxu0
      %v3037 = vadd.f32 %v2876, %v3036
      %v3038 = vpop.f32.mrb[0].mxu0
      %3039 = vmatprep.mubr.bf16.mxu0 0
      %3040 = vmatmul.mubr.bf16.gmra.mrb[0].mxu0 %v982
      %v3041 = vpop.f32.mrb[0].mxu0
      %v3042 = vadd.f32 %v2881, %v3041
      %v3043 = vpop.f32.mrb[0].mxu0
      %v3044 = vpop.f32.mrb[0].mxu0
      %v3045 = vadd.f32 %v2884, %v3044
      %v3046 = vpop.f32.mrb[0].mxu0
      %3047 = vmatprep.mubr.bf16.mxu0 0
      %3048 = vmatmul.mubr.bf16.gmra.mrb[0].mxu0 %v989
      %v3049 = vpop.f32.mrb[0].mxu0
      %v3050 = vadd.f32 %v2889, %v3049
      %v3051 = vpop.f32.mrb[0].mxu0
      %v3052 = vpop.f32.mrb[0].mxu0
      %v3053 = vadd.f32 %v2892, %v3052
      %v3054 = vpop.f32.mrb[0].mxu0
      %3055 = vmatprep.mubr.bf16.mxu0 0
      %3056 = vmatmul.mubr.bf16.gmra.mrb[0].mxu0 %v996
      %v3057 = vpop.f32.mrb[0].mxu0
      %v3058 = vadd.f32 %v2897, %v3057
      %v3059 = vpop.f32.mrb[0].mxu0
      %v3060 = vpop.f32.mrb[0].mxu0
      %v3061 = vadd.f32 %v2900, %v3060
      %v3062 = vpop.f32.mrb[0].mxu0
      %3063 = vmatprep.mubr.bf16.mxu0 0
      %3064 = vmatmul.mubr.bf16.gmra.mrb[0].mxu0 %v1003
      %v3065 = vpop.f32.mrb[0].mxu0
      %v3066 = vadd.f32 %v2905, %v3065
      %v3067 = vpop.f32.mrb[0].mxu0
      %v3068 = vpop.f32.mrb[0].mxu0
      %v3069 = vadd.f32 %v2908, %v3068
      %v3070 = vpop.f32.mrb[0].mxu0
      %3071 = vmatprep.mubr.bf16.mxu0 0
      %3072 = vmatmul.mubr.bf16.gmra.mrb[0].mxu0 %v1010
      %v3073 = vpop.f32.mrb[0].mxu0
      %v3074 = vadd.f32 %v2913, %v3073
      %v3075 = vpop.f32.mrb[0].mxu0
      %v3076 = vpop.f32.mrb[0].mxu0
      %v3077 = vadd.f32 %v2916, %v3076
      %v3078 = vpop.f32.mrb[0].mxu0
      %3079 = vmatprep.mubr.bf16.mxu0 0
      %3080 = vmatmul.mubr.bf16.gmra.mrb[0].mxu0 %v1017
      %v3081 = vpop.f32.mrb[0].mxu0
      %v3082 = vadd.f32 %v2921, %v3081
      %v3083 = vpop.f32.mrb[0].mxu0
      %v3084 = vpop.f32.mrb[0].mxu0
      %v3085 = vadd.f32 %v2924, %v3084
      %v3086 = vpop.f32.mrb[0].mxu0
      %3087 = vmatprep.mubr.bf16.mxu0 0
      %3088 = vmatmul.mubr.bf16.gmra.mrb[0].mxu0 %v1024
      %v3089 = vpop.f32.mrb[0].mxu0
      %v3090 = vadd.f32 %v2929, %v3089
      %v3091 = vpop.f32.mrb[0].mxu0
      %v3092 = vpop.f32.mrb[0].mxu0
      %v3093 = vadd.f32 %v2932, %v3092
      %v3094 = vpop.f32.mrb[0].mxu0
      %3095 = vmatprep.mubr.bf16.mxu0 0
      %3096 = vmatmul.mubr.bf16.gmra.mrb[0].mxu0 %v1031
      %v3097 = vpop.f32.mrb[0].mxu0
      %v3098 = vadd.f32 %v2937, %v3097
      %v3099 = vpop.f32.mrb[0].mxu0
      %v3100 = vpop.f32.mrb[0].mxu0
      %v3101 = vadd.f32 %v2940, %v3100
      %v3102 = vpop.f32.mrb[0].mxu0
      %3103 = vdwg.mxu0
      %3104 = vst [vmem:[%s209] sm:$0xff] %v2978
      %3105 = vst [vmem:[%s209 + $0x8] sm:$0xff] %v2981
      %3106 = vst [vmem:[%s209 + $0x10] sm:$0xff] %v2986
      %3107 = vst [vmem:[%s209 + $0x18] sm:$0xff] %v2989
      %3108 = vst [vmem:[%s209 + $0x20] sm:$0xff] %v2994
      %3109 = vst [vmem:[%s209 + $0x28] sm:$0xff] %v2997
      %3110 = vst [vmem:[%s209 + $0x30] sm:$0xff] %v3002
      %3111 = vst [vmem:[%s209 + $0x38] sm:$0xff] %v3005
      %3112 = vst [vmem:[%s209 + $0x40] sm:$0xff] %v3010
      %3113 = vst [vmem:[%s209 + $0x48] sm:$0xff] %v3013
      %3114 = vst [vmem:[%s209 + $0x50] sm:$0xff] %v3018
      %3115 = vst [vmem:[%s209 + $0x58] sm:$0xff] %v3021
      %3116 = vst [vmem:[%s209 + $0x60] sm:$0xff] %v3026
      %3117 = vst [vmem:[%s209 + $0x68] sm:$0xff] %v3029
      %3118 = vst [vmem:[%s209 + $0x70] sm:$0xff] %v3034
      %3119 = vst [vmem:[%s209 + $0x78] sm:$0xff] %v3037
      %3120 = vst [vmem:[%s209 + $0x80] sm:$0xff] %v3042
      %3121 = vst [vmem:[%s209 + $0x88] sm:$0xff] %v3045
      %3122 = vst [vmem:[%s209 + $0x90] sm:$0xff] %v3050
      %3123 = vst [vmem:[%s209 + $0x98] sm:$0xff] %v3053
      %3124 = vst [vmem:[%s209 + $0xa0] sm:$0xff] %v3058
      %3125 = vst [vmem:[%s209 + $0xa8] sm:$0xff] %v3061
      %3126 = vst [vmem:[%s209 + $0xb0] sm:$0xff] %v3066
      %3127 = vst [vmem:[%s209 + $0xb8] sm:$0xff] %v3069
      %3128 = vst [vmem:[%s209 + $0xc0] sm:$0xff] %v3074
      %3129 = vst [vmem:[%s209 + $0xc8] sm:$0xff] %v3077
      %3130 = vst [vmem:[%s209 + $0xd0] sm:$0xff] %v3082
      %3131 = vst [vmem:[%s209 + $0xd8] sm:$0xff] %v3085
      %3132 = vst [vmem:[%s209 + $0xe0] sm:$0xff] %v3090
      %3133 = vst [vmem:[%s209 + $0xe8] sm:$0xff] %v3093
      %3134 = vst [vmem:[%s209 + $0xf0] sm:$0xff] %v3098
      %3135 = vst [vmem:[%s209 + $0xf8] sm:$0xff] %v3101
      %v3136 = vadd.f32 %v2978, %v2981
      %v3137 = vadd.f32 %v3136, %v2986
      %v3138 = vadd.f32 %v3137, %v2989
      %v3139 = vadd.f32 %v3138, %v2994
      %v3140 = vadd.f32 %v3139, %v2997
      %v3141 = vadd.f32 %v3140, %v3002
      %v3142 = vadd.f32 %v3141, %v3005
      %v3143 = vadd.f32 %v3142, %v3010
      %v3144 = vadd.f32 %v3143, %v3013
      %v3145 = vadd.f32 %v3144, %v3018
      %v3146 = vadd.f32 %v3145, %v3021
      %v3147 = vadd.f32 %v3146, %v3026
      %v3148 = vadd.f32 %v3147, %v3029
      %v3149 = vadd.f32 %v3148, %v3034
      %v3150 = vadd.f32 %v3149, %v3037
      %v3151 = vadd.f32 %v3150, %v3042
      %v3152 = vadd.f32 %v3151, %v3045
      %v3153 = vadd.f32 %v3152, %v3050
      %v3154 = vadd.f32 %v3153, %v3053
      %v3155 = vadd.f32 %v3154, %v3058
      %v3156 = vadd.f32 %v3155, %v3061
      %v3157 = vadd.f32 %v3156, %v3066
      %v3158 = vadd.f32 %v3157, %v3069
      %v3159 = vadd.f32 %v3158, %v3074
      %v3160 = vadd.f32 %v3159, %v3077
      %v3161 = vadd.f32 %v3160, %v3082
      %v3162 = vadd.f32 %v3161, %v3085
      %v3163 = vadd.f32 %v3162, %v3090
      %v3164 = vadd.f32 %v3163, %v3093
      %v3165 = vadd.f32 %v3164, %v3098
      %v3166 = vadd.f32 %v3165, %v3101
      %v3167 = vrot.slane %v3166, 4
      %v3168 = vadd.f32 %v3166, %v3167
      %v3169 = vrot.slane %v3168, 2
      %v3170 = vadd.f32 %v3168, %v3169
      %v3171 = vrot.slane %v3170, 1
      %v3172 = vadd.f32 %v3170, %v3171
      %v3173 = vmul.f32 %v2978, %v2978
      %v3174 = vmul.f32 %v2981, %v2981
      %v3175 = vmul.f32 %v2986, %v2986
      %v3176 = vmul.f32 %v2989, %v2989
      %v3177 = vmul.f32 %v2994, %v2994
      %v3178 = vmul.f32 %v2997, %v2997
      %v3179 = vmul.f32 %v3002, %v3002
      %v3180 = vmul.f32 %v3005, %v3005
      %v3181 = vmul.f32 %v3010, %v3010
      %v3182 = vmul.f32 %v3013, %v3013
      %v3183 = vmul.f32 %v3018, %v3018
      %v3184 = vmul.f32 %v3021, %v3021
      %v3185 = vmul.f32 %v3026, %v3026
      %v3186 = vmul.f32 %v3029, %v3029
      %v3187 = vmul.f32 %v3034, %v3034
      %v3188 = vmul.f32 %v3037, %v3037
      %v3189 = vmul.f32 %v3042, %v3042
      %v3190 = vmul.f32 %v3045, %v3045
      %v3191 = vmul.f32 %v3050, %v3050
      %v3192 = vmul.f32 %v3053, %v3053
      %v3193 = vmul.f32 %v3058, %v3058
      %v3194 = vmul.f32 %v3061, %v3061
      %v3195 = vmul.f32 %v3066, %v3066
      %v3196 = vmul.f32 %v3069, %v3069
      %v3197 = vmul.f32 %v3074, %v3074
      %v3198 = vmul.f32 %v3077, %v3077
      %v3199 = vmul.f32 %v3082, %v3082
      %v3200 = vmul.f32 %v3085, %v3085
      %v3201 = vmul.f32 %v3090, %v3090
      %v3202 = vmul.f32 %v3093, %v3093
      %v3203 = vmul.f32 %v3098, %v3098
      %v3204 = vmul.f32 %v3101, %v3101
      %v3205 = vadd.f32 %v3173, %v3174
      %v3206 = vadd.f32 %v3205, %v3175
      %v3207 = vadd.f32 %v3206, %v3176
      %v3208 = vadd.f32 %v3207, %v3177
      %v3209 = vadd.f32 %v3208, %v3178
      %v3210 = vadd.f32 %v3209, %v3179
      %v3211 = vadd.f32 %v3210, %v3180
      %v3212 = vadd.f32 %v3211, %v3181
      %v3213 = vadd.f32 %v3212, %v3182
      %v3214 = vadd.f32 %v3213, %v3183
      %v3215 = vadd.f32 %v3214, %v3184
      %v3216 = vadd.f32 %v3215, %v3185
      %v3217 = vadd.f32 %v3216, %v3186
      %v3218 = vadd.f32 %v3217, %v3187
      %v3219 = vadd.f32 %v3218, %v3188
      %v3220 = vadd.f32 %v3219, %v3189
      %v3221 = vadd.f32 %v3220, %v3190
      %v3222 = vadd.f32 %v3221, %v3191
      %v3223 = vadd.f32 %v3222, %v3192
      %v3224 = vadd.f32 %v3223, %v3193
      %v3225 = vadd.f32 %v3224, %v3194
      %v3226 = vadd.f32 %v3225, %v3195
      %v3227 = vadd.f32 %v3226, %v3196
      %v3228 = vadd.f32 %v3227, %v3197
      %v3229 = vadd.f32 %v3228, %v3198
      %v3230 = vadd.f32 %v3229, %v3199
      %v3231 = vadd.f32 %v3230, %v3200
      %v3232 = vadd.f32 %v3231, %v3201
      %v3233 = vadd.f32 %v3232, %v3202
      %v3234 = vadd.f32 %v3233, %v3203
      %v3235 = vadd.f32 %v3234, %v3204
      %v3236 = vrot.slane %v3235, 4
      %v3237 = vadd.f32 %v3235, %v3236
      %v3238 = vrot.slane %v3237, 2
      %v3239 = vadd.f32 %v3237, %v3238
      %v3240 = vrot.slane %v3239, 1
      %v3241 = vadd.f32 %v3239, %v3240
      %v3242 = vlaneseq
      %v3243 = vshrl.u32 %v3242, 7
      %vm3244 = vcmp.eq.s32.totalorder %v3243, 0
      %vm3245 = vcmp.eq.s32.totalorder %v3243, 1
      %v3246 = vsel %vm3245, %v3241, 0.0
      %v3247 = vsel %vm3244, %v3172, %v3246
      %3248 = vst [vmem:[%s214] sm:$0xff] %v3247
      %s3249 = smul.u32 32, %s16
      %p3250 = scmp.lt.s32.totalorder %s3249, 63
      %s3251 = scalar_select %p3250, %s3249, 63
      %s3252 = smul.addr %s3251, 8
      %s3253 = scalar_lea.vmem %s3, %s3252
      %p3254 = scmp.lt.s32.totalorder %s16, 1
      %s3255 = scalar_select %p3254, %s16, 1
      %s3256 = smul.addr %s3255, 8
      %s3257 = scalar_lea.vmem %s4, %s3256
      // Predicated region
      $region33: #{basic_block_forward.6} parent=31 // pred_check
        %p3258 = pneg %p102
      $region34: #{basic_block_forward.6} parent=31 // pred_check_branch
        %3260 = sbr.rel (%p3258) target = $region36
      $region35: #{basic_block_forward.6} parent=31 // pred_region
        %s3261 = smul.u32 32, %s16
      $region36: #{basic_block_forward.6} parent=31 // pred_fallthru
        _
      // Predicated region
      $region37: #{basic_block_forward.6} parent=31 // pred_check
        %p3262 = pneg %p128
      $region38: #{basic_block_forward.6} parent=31 // pred_check_branch
        %3264 = sbr.rel (%p3262) target = $region40
      $region39: #{basic_block_forward.6} parent=31 // pred_region
        _
      $region40: #{basic_block_forward.6} parent=31 // pred_fallthru
        _
    $region32: #{basic_block_forward.6} parent=5 // pred_fallthru
      _
    %p3265 = scmp.le.s32.totalorder 2, %s11
    // Predicated region
    $region41: #{basic_block_forward.6} parent=5 // pred_check
      %p3266 = pneg %p3265
    $region42: #{basic_block_forward.6} parent=5 // pred_check_branch
      %3268 = sbr.rel (%p3266) target = $region44
    $region43: #{basic_block_forward.6} parent=5 // pred_region
      %s3269 = ssub.s32 %s11, 2
      // Predicated region
      $region45: #{basic_block_forward.6} parent=43 // pred_check
        %p3270 = pneg %p108
      $region46: #{basic_block_forward.6} parent=43 // pred_check_branch
        %3272 = sbr.rel (%p3270) target = $region48
      $region47: #{basic_block_forward.6} parent=43 // pred_region
        %s3273 = smul.u32 32, %s17
        %p3274 = scmp.lt.s32.totalorder %s3273, 63
        %s3275 = scalar_select %p3274, %s3273, 63
        %s3276 = smul.addr %s3275, 8
        %s3277 = scalar_lea.vmem %s3, %s3276
      $region48: #{basic_block_forward.6} parent=43 // pred_fallthru
        _
      // Predicated region
      $region49: #{basic_block_forward.6} parent=43 // pred_check
        %p3278 = pneg %p134
      $region50: #{basic_block_forward.6} parent=43 // pred_check_branch
        %3280 = sbr.rel (%p3278) target = $region52
      $region51: #{basic_block_forward.6} parent=43 // pred_region
        %p3281 = scmp.lt.s32.totalorder %s17, 1
        %s3282 = scalar_select %p3281, %s17, 1
        %s3283 = smul.addr %s3282, 8
        %s3284 = scalar_lea.vmem %s4, %s3283
      $region52: #{basic_block_forward.6} parent=43 // pred_fallthru
        _
    $region44: #{basic_block_forward.6} parent=5 // pred_fallthru
      _
  $region6: #{basic_block_forward.6} parent=0 // loop_footer
    %s15 = sadd.s32 1, %s11
  $region7: #{basic_block_forward.6} parent=0 // loop_footer_branch
    %10 = sbr.rel target = $region3
  $region8: #{basic_block_forward.6} parent=0 // loop_exit
    _

// kernel: basic_block_forward.11
$region0: #{basic_block_forward.11}
  #allocation0 [shape = 'u32[]', space=smem, size = 0x4, offset = 0x4, fixed_abs, tag = 'smem constant byte address 0x4 - core index']
  #allocation1 [shape = 'u32[144,128]{1,0:T(1,128)}', space=vmem, size = 0x12000, scoped, tag = 'internal scratch']
  %s0 = inlined_call_operand.vmem [shape: f32[512,128], index: 0, kind: input, shape index: {}]
  %s1 = inlined_call_operand.vmem [shape: f32[1,128], index: 1, kind: input, shape index: {}]
  %s2 = inlined_call_operand.vmem [shape: f32[1,128], index: 2, kind: input, shape index: {}]
  %s3 = inlined_call_operand.vmem [shape: f32[512,128], index: 3, kind: input, shape index: {}]
  %s4 = inlined_call_operand.vmem [shape: f32[512,128], index: 4, kind: output, shape index: {0}]
  %s5 = inlined_call_operand.hbm [shape: bf16[512,128], index: 5, kind: output, shape index: {1}]
  %6 = xla_tuple %s4, %s5
  %s7 = sld [smem:[#allocation0]]
  $region34: #{basic_block_forward.11} parent=0
    _
  %s9 = ssub.s32 1, %s7
  %s10 = scalar_select 0, %s9, %s7
  $region1: #{basic_block_forward.11} parent=0
    #allocation2 [shape = 'u8[131072]{0}', space=vmem, size = 0x20000, scoped, tag = 'output window, operand 1, single buffered']
    #allocation3 [shape = 's32[1]{0}', space=sflag, size = 0x4, scoped, tag = 'scoped memory for basic_block_forward.11']
    %11 = vsyncpa [#allocation3], 0
    // Predicated region
    $region2: #{basic_block_forward.11} parent=1 // pred_check
      _
    $region3: #{basic_block_forward.11} parent=1 // pred_check_branch
      %13 = sbr.rel (0) target = $region5
    $region4: #{basic_block_forward.11} parent=1 // pred_region
      _
    $region5: #{basic_block_forward.11} parent=1 // pred_fallthru
      _
    // Predicated region
    $region6: #{basic_block_forward.11} parent=1 // pred_check
      _
    $region7: #{basic_block_forward.11} parent=1 // pred_check_branch
      %15 = sbr.rel (0) target = $region9
    $region8: #{basic_block_forward.11} parent=1 // pred_region
      _
    $region9: #{basic_block_forward.11} parent=1 // pred_fallthru
      _
    // Predicated region
    $region10: #{basic_block_forward.11} parent=1 // pred_check
      _
    $region11: #{basic_block_forward.11} parent=1 // pred_check_branch
      %17 = sbr.rel (0) target = $region13
    $region12: #{basic_block_forward.11} parent=1 // pred_region
      _
    $region13: #{basic_block_forward.11} parent=1 // pred_fallthru
      _
    // Predicated region
    $region14: #{basic_block_forward.11} parent=1 // pred_check
      _
    $region15: #{basic_block_forward.11} parent=1 // pred_check_branch
      %19 = sbr.rel (0) target = $region17
    $region16: #{basic_block_forward.11} parent=1 // pred_region
      _
    $region17: #{basic_block_forward.11} parent=1 // pred_fallthru
      _
    %v20 = vld [vmem:[%s0] sm:$0xff]
    %v21 = vld [vmem:[%s0 + $0x8] sm:$0xff]
    %v22 = vld [vmem:[%s0 + $0x10] sm:$0xff]
    %v23 = vld [vmem:[%s0 + $0x18] sm:$0xff]
    %v24 = vld [vmem:[%s0 + $0x20] sm:$0xff]
    %v25 = vld [vmem:[%s0 + $0x28] sm:$0xff]
    %v26 = vld [vmem:[%s0 + $0x30] sm:$0xff]
    %v27 = vld [vmem:[%s0 + $0x38] sm:$0xff]
    %v28 = vld [vmem:[%s0 + $0x40] sm:$0xff]
    %v29 = vld [vmem:[%s0 + $0x48] sm:$0xff]
    %v30 = vld [vmem:[%s0 + $0x50] sm:$0xff]
    %v31 = vld [vmem:[%s0 + $0x58] sm:$0xff]
    %v32 = vld [vmem:[%s0 + $0x60] sm:$0xff]
    %v33 = vld [vmem:[%s0 + $0x68] sm:$0xff]
    %v34 = vld [vmem:[%s0 + $0x70] sm:$0xff]
    %v35 = vld [vmem:[%s0 + $0x78] sm:$0xff]
    %v36 = vld [vmem:[%s0 + $0x80] sm:$0xff]
    %v37 = vld [vmem:[%s0 + $0x88] sm:$0xff]
    %v38 = vld [vmem:[%s0 + $0x90] sm:$0xff]
    %v39 = vld [vmem:[%s0 + $0x98] sm:$0xff]
    %v40 = vld [vmem:[%s0 + $0xa0] sm:$0xff]
    %v41 = vld [vmem:[%s0 + $0xa8] sm:$0xff]
    %v42 = vld [vmem:[%s0 + $0xb0] sm:$0xff]
    %v43 = vld [vmem:[%s0 + $0xb8] sm:$0xff]
    %v44 = vld [vmem:[%s0 + $0xc0] sm:$0xff]
    %v45 = vld [vmem:[%s0 + $0xc8] sm:$0xff]
    %v46 = vld [vmem:[%s0 + $0xd0] sm:$0xff]
    %v47 = vld [vmem:[%s0 + $0xd8] sm:$0xff]
    %v48 = vld [vmem:[%s0 + $0xe0] sm:$0xff]
    %v49 = vld [vmem:[%s0 + $0xe8] sm:$0xff]
    %v50 = vld [vmem:[%s0 + $0xf0] sm:$0xff]
    %v51 = vld [vmem:[%s0 + $0xf8] sm:$0xff]
    %v52 = vld [vmem:[%s0 + $0x100] sm:$0xff]
    %v53 = vld [vmem:[%s0 + $0x108] sm:$0xff]
    %v54 = vld [vmem:[%s0 + $0x110] sm:$0xff]
    %v55 = vld [vmem:[%s0 + $0x118] sm:$0xff]
    %v56 = vld [vmem:[%s0 + $0x120] sm:$0xff]
    %v57 = vld [vmem:[%s0 + $0x128] sm:$0xff]
    %v58 = vld [vmem:[%s0 + $0x130] sm:$0xff]
    %v59 = vld [vmem:[%s0 + $0x138] sm:$0xff]
    %v60 = vld [vmem:[%s0 + $0x140] sm:$0xff]
    %v61 = vld [vmem:[%s0 + $0x148] sm:$0xff]
    %v62 = vld [vmem:[%s0 + $0x150] sm:$0xff]
    %v63 = vld [vmem:[%s0 + $0x158] sm:$0xff]
    %v64 = vld [vmem:[%s0 + $0x160] sm:$0xff]
    %v65 = vld [vmem:[%s0 + $0x168] sm:$0xff]
    %v66 = vld [vmem:[%s0 + $0x170] sm:$0xff]
    %v67 = vld [vmem:[%s0 + $0x178] sm:$0xff]
    %v68 = vld [vmem:[%s0 + $0x180] sm:$0xff]
    %v69 = vld [vmem:[%s0 + $0x188] sm:$0xff]
    %v70 = vld [vmem:[%s0 + $0x190] sm:$0xff]
    %v71 = vld [vmem:[%s0 + $0x198] sm:$0xff]
    %v72 = vld [vmem:[%s0 + $0x1a0] sm:$0xff]
    %v73 = vld [vmem:[%s0 + $0x1a8] sm:$0xff]
    %v74 = vld [vmem:[%s0 + $0x1b0] sm:$0xff]
    %v75 = vld [vmem:[%s0 + $0x1b8] sm:$0xff]
    %v76 = vld [vmem:[%s0 + $0x1c0] sm:$0xff]
    %v77 = vld [vmem:[%s0 + $0x1c8] sm:$0xff]
    %v78 = vld [vmem:[%s0 + $0x1d0] sm:$0xff]
    %v79 = vld [vmem:[%s0 + $0x1d8] sm:$0xff]
    %v80 = vld [vmem:[%s0 + $0x1e0] sm:$0xff]
    %v81 = vld [vmem:[%s0 + $0x1e8] sm:$0xff]
    %v82 = vld [vmem:[%s0 + $0x1f0] sm:$0xff]
    %v83 = vld [vmem:[%s0 + $0x1f8] sm:$0xff]
    %v84 = vld [vmem:[%s1] sm:$0x1]
    %v86 = vlaneseq
    %v87 = vshrl.u32 %v86, 7
    %v88 = vsub.s32 0, %v87
    %v89 = vrot.slane %v84, %v88
    %v91 = vmul.f32 %v20, %v89
    %v92 = vmul.f32 %v21, %v89
    %v93 = vmul.f32 %v22, %v89
    %v94 = vmul.f32 %v23, %v89
    %v95 = vmul.f32 %v24, %v89
    %v96 = vmul.f32 %v25, %v89
    %v97 = vmul.f32 %v26, %v89
    %v98 = vmul.f32 %v27, %v89
    %v99 = vmul.f32 %v28, %v89
    %v100 = vmul.f32 %v29, %v89
    %v101 = vmul.f32 %v30, %v89
    %v102 = vmul.f32 %v31, %v89
    %v103 = vmul.f32 %v32, %v89
    %v104 = vmul.f32 %v33, %v89
    %v105 = vmul.f32 %v34, %v89
    %v106 = vmul.f32 %v35, %v89
    %v107 = vmul.f32 %v36, %v89
    %v108 = vmul.f32 %v37, %v89
    %v109 = vmul.f32 %v38, %v89
    %v110 = vmul.f32 %v39, %v89
    %v111 = vmul.f32 %v40, %v89
    %v112 = vmul.f32 %v41, %v89
    %v113 = vmul.f32 %v42, %v89
    %v114 = vmul.f32 %v43, %v89
    %v115 = vmul.f32 %v44, %v89
    %v116 = vmul.f32 %v45, %v89
    %v117 = vmul.f32 %v46, %v89
    %v118 = vmul.f32 %v47, %v89
    %v119 = vmul.f32 %v48, %v89
    %v120 = vmul.f32 %v49, %v89
    %v121 = vmul.f32 %v50, %v89
    %v122 = vmul.f32 %v51, %v89
    %v123 = vmul.f32 %v52, %v89
    %v124 = vmul.f32 %v53, %v89
    %v125 = vmul.f32 %v54, %v89
    %v126 = vmul.f32 %v55, %v89
    %v127 = vmul.f32 %v56, %v89
    %v128 = vmul.f32 %v57, %v89
    %v129 = vmul.f32 %v58, %v89
    %v130 = vmul.f32 %v59, %v89
    %v131 = vmul.f32 %v60, %v89
    %v132 = vmul.f32 %v61, %v89
    %v133 = vmul.f32 %v62, %v89
    %v134 = vmul.f32 %v63, %v89
    %v135 = vmul.f32 %v64, %v89
    %v136 = vmul.f32 %v65, %v89
    %v137 = vmul.f32 %v66, %v89
    %v138 = vmul.f32 %v67, %v89
    %v139 = vmul.f32 %v68, %v89
    %v140 = vmul.f32 %v69, %v89
    %v141 = vmul.f32 %v70, %v89
    %v142 = vmul.f32 %v71, %v89
    %v143 = vmul.f32 %v72, %v89
    %v144 = vmul.f32 %v73, %v89
    %v145 = vmul.f32 %v74, %v89
    %v146 = vmul.f32 %v75, %v89
    %v147 = vmul.f32 %v76, %v89
    %v148 = vmul.f32 %v77, %v89
    %v149 = vmul.f32 %v78, %v89
    %v150 = vmul.f32 %v79, %v89
    %v151 = vmul.f32 %v80, %v89
    %v152 = vmul.f32 %v81, %v89
    %v153 = vmul.f32 %v82, %v89
    %v154 = vmul.f32 %v83, %v89
    %v155 = vld [vmem:[%s2] sm:$0x1]
    %v157 = vlaneseq
    %v158 = vshrl.u32 %v157, 7
    %v159 = vsub.s32 0, %v158
    %v160 = vrot.slane %v155, %v159
    %v162 = vadd.f32 %v91, %v160
    %v163 = vadd.f32 %v92, %v160
    %v164 = vadd.f32 %v93, %v160
    %v165 = vadd.f32 %v94, %v160
    %v166 = vadd.f32 %v95, %v160
    %v167 = vadd.f32 %v96, %v160
    %v168 = vadd.f32 %v97, %v160
    %v169 = vadd.f32 %v98, %v160
    %v170 = vadd.f32 %v99, %v160
    %v171 = vadd.f32 %v100, %v160
    %v172 = vadd.f32 %v101, %v160
    %v173 = vadd.f32 %v102, %v160
    %v174 = vadd.f32 %v103, %v160
    %v175 = vadd.f32 %v104, %v160
    %v176 = vadd.f32 %v105, %v160
    %v177 = vadd.f32 %v106, %v160
    %v178 = vadd.f32 %v107, %v160
    %v179 = vadd.f32 %v108, %v160
    %v180 = vadd.f32 %v109, %v160
    %v181 = vadd.f32 %v110, %v160
    %v182 = vadd.f32 %v111, %v160
    %v183 = vadd.f32 %v112, %v160
    %v184 = vadd.f32 %v113, %v160
    %v185 = vadd.f32 %v114, %v160
    %v186 = vadd.f32 %v115, %v160
    %v187 = vadd.f32 %v116, %v160
    %v188 = vadd.f32 %v117, %v160
    %v189 = vadd.f32 %v118, %v160
    %v190 = vadd.f32 %v119, %v160
    %v191 = vadd.f32 %v120, %v160
    %v192 = vadd.f32 %v121, %v160
    %v193 = vadd.f32 %v122, %v160
    %v194 = vadd.f32 %v123, %v160
    %v195 = vadd.f32 %v124, %v160
    %v196 = vadd.f32 %v125, %v160
    %v197 = vadd.f32 %v126, %v160
    %v198 = vadd.f32 %v127, %v160
    %v199 = vadd.f32 %v128, %v160
    %v200 = vadd.f32 %v129, %v160
    %v201 = vadd.f32 %v130, %v160
    %v202 = vadd.f32 %v131, %v160
    %v203 = vadd.f32 %v132, %v160
    %v204 = vadd.f32 %v133, %v160
    %v205 = vadd.f32 %v134, %v160
    %v206 = vadd.f32 %v135, %v160
    %v207 = vadd.f32 %v136, %v160
    %v208 = vadd.f32 %v137, %v160
    %v209 = vadd.f32 %v138, %v160
    %v210 = vadd.f32 %v139, %v160
    %v211 = vadd.f32 %v140, %v160
    %v212 = vadd.f32 %v141, %v160
    %v213 = vadd.f32 %v142, %v160
    %v214 = vadd.f32 %v143, %v160
    %v215 = vadd.f32 %v144, %v160
    %v216 = vadd.f32 %v145, %v160
    %v217 = vadd.f32 %v146, %v160
    %v218 = vadd.f32 %v147, %v160
    %v219 = vadd.f32 %v148, %v160
    %v220 = vadd.f32 %v149, %v160
    %v221 = vadd.f32 %v150, %v160
    %v222 = vadd.f32 %v151, %v160
    %v223 = vadd.f32 %v152, %v160
    %v224 = vadd.f32 %v153, %v160
    %v225 = vadd.f32 %v154, %v160
    %v226 = vld [vmem:[%s3] sm:$0xff]
    %v227 = vld [vmem:[%s3 + $0x8] sm:$0xff]
    %v228 = vld [vmem:[%s3 + $0x10] sm:$0xff]
    %v229 = vld [vmem:[%s3 + $0x18] sm:$0xff]
    %v230 = vld [vmem:[%s3 + $0x20] sm:$0xff]
    %v231 = vld [vmem:[%s3 + $0x28] sm:$0xff]
    %v232 = vld [vmem:[%s3 + $0x30] sm:$0xff]
    %v233 = vld [vmem:[%s3 + $0x38] sm:$0xff]
    %v234 = vld [vmem:[%s3 + $0x40] sm:$0xff]
    %v235 = vld [vmem:[%s3 + $0x48] sm:$0xff]
    %v236 = vld [vmem:[%s3 + $0x50] sm:$0xff]
    %v237 = vld [vmem:[%s3 + $0x58] sm:$0xff]
    %v238 = vld [vmem:[%s3 + $0x60] sm:$0xff]
    %v239 = vld [vmem:[%s3 + $0x68] sm:$0xff]
    %v240 = vld [vmem:[%s3 + $0x70] sm:$0xff]
    %v241 = vld [vmem:[%s3 + $0x78] sm:$0xff]
    %v242 = vld [vmem:[%s3 + $0x80] sm:$0xff]
    %v243 = vld [vmem:[%s3 + $0x88] sm:$0xff]
    %v244 = vld [vmem:[%s3 + $0x90] sm:$0xff]
    %v245 = vld [vmem:[%s3 + $0x98] sm:$0xff]
    %v246 = vld [vmem:[%s3 + $0xa0] sm:$0xff]
    %v247 = vld [vmem:[%s3 + $0xa8] sm:$0xff]
    %v248 = vld [vmem:[%s3 + $0xb0] sm:$0xff]
    %v249 = vld [vmem:[%s3 + $0xb8] sm:$0xff]
    %v250 = vld [vmem:[%s3 + $0xc0] sm:$0xff]
    %v251 = vld [vmem:[%s3 + $0xc8] sm:$0xff]
    %v252 = vld [vmem:[%s3 + $0xd0] sm:$0xff]
    %v253 = vld [vmem:[%s3 + $0xd8] sm:$0xff]
    %v254 = vld [vmem:[%s3 + $0xe0] sm:$0xff]
    %v255 = vld [vmem:[%s3 + $0xe8] sm:$0xff]
    %v256 = vld [vmem:[%s3 + $0xf0] sm:$0xff]
    %v257 = vld [vmem:[%s3 + $0xf8] sm:$0xff]
    %v258 = vld [vmem:[%s3 + $0x100] sm:$0xff]
    %v259 = vld [vmem:[%s3 + $0x108] sm:$0xff]
    %v260 = vld [vmem:[%s3 + $0x110] sm:$0xff]
    %v261 = vld [vmem:[%s3 + $0x118] sm:$0xff]
    %v262 = vld [vmem:[%s3 + $0x120] sm:$0xff]
    %v263 = vld [vmem:[%s3 + $0x128] sm:$0xff]
    %v264 = vld [vmem:[%s3 + $0x130] sm:$0xff]
    %v265 = vld [vmem:[%s3 + $0x138] sm:$0xff]
    %v266 = vld [vmem:[%s3 + $0x140] sm:$0xff]
    %v267 = vld [vmem:[%s3 + $0x148] sm:$0xff]
    %v268 = vld [vmem:[%s3 + $0x150] sm:$0xff]
    %v269 = vld [vmem:[%s3 + $0x158] sm:$0xff]
    %v270 = vld [vmem:[%s3 + $0x160] sm:$0xff]
    %v271 = vld [vmem:[%s3 + $0x168] sm:$0xff]
    %v272 = vld [vmem:[%s3 + $0x170] sm:$0xff]
    %v273 = vld [vmem:[%s3 + $0x178] sm:$0xff]
    %v274 = vld [vmem:[%s3 + $0x180] sm:$0xff]
    %v275 = vld [vmem:[%s3 + $0x188] sm:$0xff]
    %v276 = vld [vmem:[%s3 + $0x190] sm:$0xff]
    %v277 = vld [vmem:[%s3 + $0x198] sm:$0xff]
    %v278 = vld [vmem:[%s3 + $0x1a0] sm:$0xff]
    %v279 = vld [vmem:[%s3 + $0x1a8] sm:$0xff]
    %v280 = vld [vmem:[%s3 + $0x1b0] sm:$0xff]
    %v281 = vld [vmem:[%s3 + $0x1b8] sm:$0xff]
    %v282 = vld [vmem:[%s3 + $0x1c0] sm:$0xff]
    %v283 = vld [vmem:[%s3 + $0x1c8] sm:$0xff]
    %v284 = vld [vmem:[%s3 + $0x1d0] sm:$0xff]
    %v285 = vld [vmem:[%s3 + $0x1d8] sm:$0xff]
    %v286 = vld [vmem:[%s3 + $0x1e0] sm:$0xff]
    %v287 = vld [vmem:[%s3 + $0x1e8] sm:$0xff]
    %v288 = vld [vmem:[%s3 + $0x1f0] sm:$0xff]
    %v289 = vld [vmem:[%s3 + $0x1f8] sm:$0xff]
    %v290 = vadd.f32 %v162, %v226
    %v291 = vadd.f32 %v163, %v227
    %v292 = vadd.f32 %v164, %v228
    %v293 = vadd.f32 %v165, %v229
    %v294 = vadd.f32 %v166, %v230
    %v295 = vadd.f32 %v167, %v231
    %v296 = vadd.f32 %v168, %v232
    %v297 = vadd.f32 %v169, %v233
    %v298 = vadd.f32 %v170, %v234
    %v299 = vadd.f32 %v171, %v235
    %v300 = vadd.f32 %v172, %v236
    %v301 = vadd.f32 %v173, %v237
    %v302 = vadd.f32 %v174, %v238
    %v303 = vadd.f32 %v175, %v239
    %v304 = vadd.f32 %v176, %v240
    %v305 = vadd.f32 %v177, %v241
    %v306 = vadd.f32 %v178, %v242
    %v307 = vadd.f32 %v179, %v243
    %v308 = vadd.f32 %v180, %v244
    %v309 = vadd.f32 %v181, %v245
    %v310 = vadd.f32 %v182, %v246
    %v311 = vadd.f32 %v183, %v247
    %v312 = vadd.f32 %v184, %v248
    %v313 = vadd.f32 %v185, %v249
    %v314 = vadd.f32 %v186, %v250
    %v315 = vadd.f32 %v187, %v251
    %v316 = vadd.f32 %v188, %v252
    %v317 = vadd.f32 %v189, %v253
    %v318 = vadd.f32 %v190, %v254
    %v319 = vadd.f32 %v191, %v255
    %v320 = vadd.f32 %v192, %v256
    %v321 = vadd.f32 %v193, %v257
    %v322 = vadd.f32 %v194, %v258
    %v323 = vadd.f32 %v195, %v259
    %v324 = vadd.f32 %v196, %v260
    %v325 = vadd.f32 %v197, %v261
    %v326 = vadd.f32 %v198, %v262
    %v327 = vadd.f32 %v199, %v263
    %v328 = vadd.f32 %v200, %v264
    %v329 = vadd.f32 %v201, %v265
    %v330 = vadd.f32 %v202, %v266
    %v331 = vadd.f32 %v203, %v267
    %v332 = vadd.f32 %v204, %v268
    %v333 = vadd.f32 %v205, %v269
    %v334 = vadd.f32 %v206, %v270
    %v335 = vadd.f32 %v207, %v271
    %v336 = vadd.f32 %v208, %v272
    %v337 = vadd.f32 %v209, %v273
    %v338 = vadd.f32 %v210, %v274
    %v339 = vadd.f32 %v211, %v275
    %v340 = vadd.f32 %v212, %v276
    %v341 = vadd.f32 %v213, %v277
    %v342 = vadd.f32 %v214, %v278
    %v343 = vadd.f32 %v215, %v279
    %v344 = vadd.f32 %v216, %v280
    %v345 = vadd.f32 %v217, %v281
    %v346 = vadd.f32 %v218, %v282
    %v347 = vadd.f32 %v219, %v283
    %v348 = vadd.f32 %v220, %v284
    %v349 = vadd.f32 %v221, %v285
    %v350 = vadd.f32 %v222, %v286
    %v351 = vadd.f32 %v223, %v287
    %v352 = vadd.f32 %v224, %v288
    %v353 = vadd.f32 %v225, %v289
    %354 = vst [vmem:[%s4] sm:$0xff] %v290
    %355 = vst [vmem:[%s4 + $0x8] sm:$0xff] %v291
    %356 = vst [vmem:[%s4 + $0x10] sm:$0xff] %v292
    %357 = vst [vmem:[%s4 + $0x18] sm:$0xff] %v293
    %358 = vst [vmem:[%s4 + $0x20] sm:$0xff] %v294
    %359 = vst [vmem:[%s4 + $0x28] sm:$0xff] %v295
    %360 = vst [vmem:[%s4 + $0x30] sm:$0xff] %v296
    %361 = vst [vmem:[%s4 + $0x38] sm:$0xff] %v297
    %362 = vst [vmem:[%s4 + $0x40] sm:$0xff] %v298
    %363 = vst [vmem:[%s4 + $0x48] sm:$0xff] %v299
    %364 = vst [vmem:[%s4 + $0x50] sm:$0xff] %v300
    %365 = vst [vmem:[%s4 + $0x58] sm:$0xff] %v301
    %366 = vst [vmem:[%s4 + $0x60] sm:$0xff] %v302
    %367 = vst [vmem:[%s4 + $0x68] sm:$0xff] %v303
    %368 = vst [vmem:[%s4 + $0x70] sm:$0xff] %v304
    %369 = vst [vmem:[%s4 + $0x78] sm:$0xff] %v305
    %370 = vst [vmem:[%s4 + $0x80] sm:$0xff] %v306
    %371 = vst [vmem:[%s4 + $0x88] sm:$0xff] %v307
    %372 = vst [vmem:[%s4 + $0x90] sm:$0xff] %v308
    %373 = vst [vmem:[%s4 + $0x98] sm:$0xff] %v309
    %374 = vst [vmem:[%s4 + $0xa0] sm:$0xff] %v310
    %375 = vst [vmem:[%s4 + $0xa8] sm:$0xff] %v311
    %376 = vst [vmem:[%s4 + $0xb0] sm:$0xff] %v312
    %377 = vst [vmem:[%s4 + $0xb8] sm:$0xff] %v313
    %378 = vst [vmem:[%s4 + $0xc0] sm:$0xff] %v314
    %379 = vst [vmem:[%s4 + $0xc8] sm:$0xff] %v315
    %380 = vst [vmem:[%s4 + $0xd0] sm:$0xff] %v316
    %381 = vst [vmem:[%s4 + $0xd8] sm:$0xff] %v317
    %382 = vst [vmem:[%s4 + $0xe0] sm:$0xff] %v318
    %383 = vst [vmem:[%s4 + $0xe8] sm:$0xff] %v319
    %384 = vst [vmem:[%s4 + $0xf0] sm:$0xff] %v320
    %385 = vst [vmem:[%s4 + $0xf8] sm:$0xff] %v321
    %386 = vst [vmem:[%s4 + $0x100] sm:$0xff] %v322
    %387 = vst [vmem:[%s4 + $0x108] sm:$0xff] %v323
    %388 = vst [vmem:[%s4 + $0x110] sm:$0xff] %v324
    %389 = vst [vmem:[%s4 + $0x118] sm:$0xff] %v325
    %390 = vst [vmem:[%s4 + $0x120] sm:$0xff] %v326
    %391 = vst [vmem:[%s4 + $0x128] sm:$0xff] %v327
    %392 = vst [vmem:[%s4 + $0x130] sm:$0xff] %v328
    %393 = vst [vmem:[%s4 + $0x138] sm:$0xff] %v329
    %394 = vst [vmem:[%s4 + $0x140] sm:$0xff] %v330
    %395 = vst [vmem:[%s4 + $0x148] sm:$0xff] %v331
    %396 = vst [vmem:[%s4 + $0x150] sm:$0xff] %v332
    %397 = vst [vmem:[%s4 + $0x158] sm:$0xff] %v333
    %398 = vst [vmem:[%s4 + $0x160] sm:$0xff] %v334
    %399 = vst [vmem:[%s4 + $0x168] sm:$0xff] %v335
    %400 = vst [vmem:[%s4 + $0x170] sm:$0xff] %v336
    %401 = vst [vmem:[%s4 + $0x178] sm:$0xff] %v337
    %402 = vst [vmem:[%s4 + $0x180] sm:$0xff] %v338
    %403 = vst [vmem:[%s4 + $0x188] sm:$0xff] %v339
    %404 = vst [vmem:[%s4 + $0x190] sm:$0xff] %v340
    %405 = vst [vmem:[%s4 + $0x198] sm:$0xff] %v341
    %406 = vst [vmem:[%s4 + $0x1a0] sm:$0xff] %v342
    %407 = vst [vmem:[%s4 + $0x1a8] sm:$0xff] %v343
    %408 = vst [vmem:[%s4 + $0x1b0] sm:$0xff] %v344
    %409 = vst [vmem:[%s4 + $0x1b8] sm:$0xff] %v345
    %410 = vst [vmem:[%s4 + $0x1c0] sm:$0xff] %v346
    %411 = vst [vmem:[%s4 + $0x1c8] sm:$0xff] %v347
    %412 = vst [vmem:[%s4 + $0x1d0] sm:$0xff] %v348
    %413 = vst [vmem:[%s4 + $0x1d8] sm:$0xff] %v349
    %414 = vst [vmem:[%s4 + $0x1e0] sm:$0xff] %v350
    %415 = vst [vmem:[%s4 + $0x1e8] sm:$0xff] %v351
    %416 = vst [vmem:[%s4 + $0x1f0] sm:$0xff] %v352
    %417 = vst [vmem:[%s4 + $0x1f8] sm:$0xff] %v353
    %v418 = vmax.f32 %v290, 0.0
    %v419 = vmax.f32 %v291, 0.0
    %v420 = vmax.f32 %v292, 0.0
    %v421 = vmax.f32 %v293, 0.0
    %v422 = vmax.f32 %v294, 0.0
    %v423 = vmax.f32 %v295, 0.0
    %v424 = vmax.f32 %v296, 0.0
    %v425 = vmax.f32 %v297, 0.0
    %v426 = vmax.f32 %v298, 0.0
    %v427 = vmax.f32 %v299, 0.0
    %v428 = vmax.f32 %v300, 0.0
    %v429 = vmax.f32 %v301, 0.0
    %v430 = vmax.f32 %v302, 0.0
    %v431 = vmax.f32 %v303, 0.0
    %v432 = vmax.f32 %v304, 0.0
    %v433 = vmax.f32 %v305, 0.0
    %v434 = vmax.f32 %v306, 0.0
    %v435 = vmax.f32 %v307, 0.0
    %v436 = vmax.f32 %v308, 0.0
    %v437 = vmax.f32 %v309, 0.0
    %v438 = vmax.f32 %v310, 0.0
    %v439 = vmax.f32 %v311, 0.0
    %v440 = vmax.f32 %v312, 0.0
    %v441 = vmax.f32 %v313, 0.0
    %v442 = vmax.f32 %v314, 0.0
    %v443 = vmax.f32 %v315, 0.0
    %v444 = vmax.f32 %v316, 0.0
    %v445 = vmax.f32 %v317, 0.0
    %v446 = vmax.f32 %v318, 0.0
    %v447 = vmax.f32 %v319, 0.0
    %v448 = vmax.f32 %v320, 0.0
    %v449 = vmax.f32 %v321, 0.0
    %v450 = vmax.f32 %v322, 0.0
    %v451 = vmax.f32 %v323, 0.0
    %v452 = vmax.f32 %v324, 0.0
    %v453 = vmax.f32 %v325, 0.0
    %v454 = vmax.f32 %v326, 0.0
    %v455 = vmax.f32 %v327, 0.0
    %v456 = vmax.f32 %v328, 0.0
    %v457 = vmax.f32 %v329, 0.0
    %v458 = vmax.f32 %v330, 0.0
    %v459 = vmax.f32 %v331, 0.0
    %v460 = vmax.f32 %v332, 0.0
    %v461 = vmax.f32 %v333, 0.0
    %v462 = vmax.f32 %v334, 0.0
    %v463 = vmax.f32 %v335, 0.0
    %v464 = vmax.f32 %v336, 0.0
    %v465 = vmax.f32 %v337, 0.0
    %v466 = vmax.f32 %v338, 0.0
    %v467 = vmax.f32 %v339, 0.0
    %v468 = vmax.f32 %v340, 0.0
    %v469 = vmax.f32 %v341, 0.0
    %v470 = vmax.f32 %v342, 0.0
    %v471 = vmax.f32 %v343, 0.0
    %v472 = vmax.f32 %v344, 0.0
    %v473 = vmax.f32 %v345, 0.0
    %v474 = vmax.f32 %v346, 0.0
    %v475 = vmax.f32 %v347, 0.0
    %v476 = vmax.f32 %v348, 0.0
    %v477 = vmax.f32 %v349, 0.0
    %v478 = vmax.f32 %v350, 0.0
    %v479 = vmax.f32 %v351, 0.0
    %v480 = vmax.f32 %v352, 0.0
    %v481 = vmax.f32 %v353, 0.0
    %v482 = vmin.f32 %v418, 4.0
    %v483 = vmin.f32 %v419, 4.0
    %v484 = vmin.f32 %v420, 4.0
    %v485 = vmin.f32 %v421, 4.0
    %v486 = vmin.f32 %v422, 4.0
    %v487 = vmin.f32 %v423, 4.0
    %v488 = vmin.f32 %v424, 4.0
    %v489 = vmin.f32 %v425, 4.0
    %v490 = vmin.f32 %v426, 4.0
    %v491 = vmin.f32 %v427, 4.0
    %v492 = vmin.f32 %v428, 4.0
    %v493 = vmin.f32 %v429, 4.0
    %v494 = vmin.f32 %v430, 4.0
    %v495 = vmin.f32 %v431, 4.0
    %v496 = vmin.f32 %v432, 4.0
    %v497 = vmin.f32 %v433, 4.0
    %v498 = vmin.f32 %v434, 4.0
    %v499 = vmin.f32 %v435, 4.0
    %v500 = vmin.f32 %v436, 4.0
    %v501 = vmin.f32 %v437, 4.0
    %v502 = vmin.f32 %v438, 4.0
    %v503 = vmin.f32 %v439, 4.0
    %v504 = vmin.f32 %v440, 4.0
    %v505 = vmin.f32 %v441, 4.0
    %v506 = vmin.f32 %v442, 4.0
    %v507 = vmin.f32 %v443, 4.0
    %v508 = vmin.f32 %v444, 4.0
    %v509 = vmin.f32 %v445, 4.0
    %v510 = vmin.f32 %v446, 4.0
    %v511 = vmin.f32 %v447, 4.0
    %v512 = vmin.f32 %v448, 4.0
    %v513 = vmin.f32 %v449, 4.0
    %v514 = vmin.f32 %v450, 4.0
    %v515 = vmin.f32 %v451, 4.0
    %v516 = vmin.f32 %v452, 4.0
    %v517 = vmin.f32 %v453, 4.0
    %v518 = vmin.f32 %v454, 4.0
    %v519 = vmin.f32 %v455, 4.0
    %v520 = vmin.f32 %v456, 4.0
    %v521 = vmin.f32 %v457, 4.0
    %v522 = vmin.f32 %v458, 4.0
    %v523 = vmin.f32 %v459, 4.0
    %v524 = vmin.f32 %v460, 4.0
    %v525 = vmin.f32 %v461, 4.0
    %v526 = vmin.f32 %v462, 4.0
    %v527 = vmin.f32 %v463, 4.0
    %v528 = vmin.f32 %v464, 4.0
    %v529 = vmin.f32 %v465, 4.0
    %v530 = vmin.f32 %v466, 4.0
    %v531 = vmin.f32 %v467, 4.0
    %v532 = vmin.f32 %v468, 4.0
    %v533 = vmin.f32 %v469, 4.0
    %v534 = vmin.f32 %v470, 4.0
    %v535 = vmin.f32 %v471, 4.0
    %v536 = vmin.f32 %v472, 4.0
    %v537 = vmin.f32 %v473, 4.0
    %v538 = vmin.f32 %v474, 4.0
    %v539 = vmin.f32 %v475, 4.0
    %v540 = vmin.f32 %v476, 4.0
    %v541 = vmin.f32 %v477, 4.0
    %v542 = vmin.f32 %v478, 4.0
    %v543 = vmin.f32 %v479, 4.0
    %v544 = vmin.f32 %v480, 4.0
    %v545 = vmin.f32 %v481, 4.0
    %v546 = vadd.f32 %v482, 0.5
    %v547 = vadd.f32 %v483, 0.5
    %v548 = vadd.f32 %v484, 0.5
    %v549 = vadd.f32 %v485, 0.5
    %v550 = vadd.f32 %v486, 0.5
    %v551 = vadd.f32 %v487, 0.5
    %v552 = vadd.f32 %v488, 0.5
    %v553 = vadd.f32 %v489, 0.5
    %v554 = vadd.f32 %v490, 0.5
    %v555 = vadd.f32 %v491, 0.5
    %v556 = vadd.f32 %v492, 0.5
    %v557 = vadd.f32 %v493, 0.5
    %v558 = vadd.f32 %v494, 0.5
    %v559 = vadd.f32 %v495, 0.5
    %v560 = vadd.f32 %v496, 0.5
    %v561 = vadd.f32 %v497, 0.5
    %v562 = vadd.f32 %v498, 0.5
    %v563 = vadd.f32 %v499, 0.5
    %v564 = vadd.f32 %v500, 0.5
    %v565 = vadd.f32 %v501, 0.5
    %v566 = vadd.f32 %v502, 0.5
    %v567 = vadd.f32 %v503, 0.5
    %v568 = vadd.f32 %v504, 0.5
    %v569 = vadd.f32 %v505, 0.5
    %v570 = vadd.f32 %v506, 0.5
    %v571 = vadd.f32 %v507, 0.5
    %v572 = vadd.f32 %v508, 0.5
    %v573 = vadd.f32 %v509, 0.5
    %v574 = vadd.f32 %v510, 0.5
    %v575 = vadd.f32 %v511, 0.5
    %v576 = vadd.f32 %v512, 0.5
    %v577 = vadd.f32 %v513, 0.5
    %v578 = vadd.f32 %v514, 0.5
    %v579 = vadd.f32 %v515, 0.5
    %v580 = vadd.f32 %v516, 0.5
    %v581 = vadd.f32 %v517, 0.5
    %v582 = vadd.f32 %v518, 0.5
    %v583 = vadd.f32 %v519, 0.5
    %v584 = vadd.f32 %v520, 0.5
    %v585 = vadd.f32 %v521, 0.5
    %v586 = vadd.f32 %v522, 0.5
    %v587 = vadd.f32 %v523, 0.5
    %v588 = vadd.f32 %v524, 0.5
    %v589 = vadd.f32 %v525, 0.5
    %v590 = vadd.f32 %v526, 0.5
    %v591 = vadd.f32 %v527, 0.5
    %v592 = vadd.f32 %v528, 0.5
    %v593 = vadd.f32 %v529, 0.5
    %v594 = vadd.f32 %v530, 0.5
    %v595 = vadd.f32 %v531, 0.5
    %v596 = vadd.f32 %v532, 0.5
    %v597 = vadd.f32 %v533, 0.5
    %v598 = vadd.f32 %v534, 0.5
    %v599 = vadd.f32 %v535, 0.5
    %v600 = vadd.f32 %v536, 0.5
    %v601 = vadd.f32 %v537, 0.5
    %v602 = vadd.f32 %v538, 0.5
    %v603 = vadd.f32 %v539, 0.5
    %v604 = vadd.f32 %v540, 0.5
    %v605 = vadd.f32 %v541, 0.5
    %v606 = vadd.f32 %v542, 0.5
    %v607 = vadd.f32 %v543, 0.5
    %v608 = vadd.f32 %v544, 0.5
    %v609 = vadd.f32 %v545, 0.5
    %v610 = vfloor.f32 %v546
    %v611 = vfloor.f32 %v547
    %v612 = vfloor.f32 %v548
    %v613 = vfloor.f32 %v549
    %v614 = vfloor.f32 %v550
    %v615 = vfloor.f32 %v551
    %v616 = vfloor.f32 %v552
    %v617 = vfloor.f32 %v553
    %v618 = vfloor.f32 %v554
    %v619 = vfloor.f32 %v555
    %v620 = vfloor.f32 %v556
    %v621 = vfloor.f32 %v557
    %v622 = vfloor.f32 %v558
    %v623 = vfloor.f32 %v559
    %v624 = vfloor.f32 %v560
    %v625 = vfloor.f32 %v561
    %v626 = vfloor.f32 %v562
    %v627 = vfloor.f32 %v563
    %v628 = vfloor.f32 %v564
    %v629 = vfloor.f32 %v565
    %v630 = vfloor.f32 %v566
    %v631 = vfloor.f32 %v567
    %v632 = vfloor.f32 %v568
    %v633 = vfloor.f32 %v569
    %v634 = vfloor.f32 %v570
    %v635 = vfloor.f32 %v571
    %v636 = vfloor.f32 %v572
    %v637 = vfloor.f32 %v573
    %v638 = vfloor.f32 %v574
    %v639 = vfloor.f32 %v575
    %v640 = vfloor.f32 %v576
    %v641 = vfloor.f32 %v577
    %v642 = vfloor.f32 %v578
    %v643 = vfloor.f32 %v579
    %v644 = vfloor.f32 %v580
    %v645 = vfloor.f32 %v581
    %v646 = vfloor.f32 %v582
    %v647 = vfloor.f32 %v583
    %v648 = vfloor.f32 %v584
    %v649 = vfloor.f32 %v585
    %v650 = vfloor.f32 %v586
    %v651 = vfloor.f32 %v587
    %v652 = vfloor.f32 %v588
    %v653 = vfloor.f32 %v589
    %v654 = vfloor.f32 %v590
    %v655 = vfloor.f32 %v591
    %v656 = vfloor.f32 %v592
    %v657 = vfloor.f32 %v593
    %v658 = vfloor.f32 %v594
    %v659 = vfloor.f32 %v595
    %v660 = vfloor.f32 %v596
    %v661 = vfloor.f32 %v597
    %v662 = vfloor.f32 %v598
    %v663 = vfloor.f32 %v599
    %v664 = vfloor.f32 %v600
    %v665 = vfloor.f32 %v601
    %v666 = vfloor.f32 %v602
    %v667 = vfloor.f32 %v603
    %v668 = vfloor.f32 %v604
    %v669 = vfloor.f32 %v605
    %v670 = vfloor.f32 %v606
    %v671 = vfloor.f32 %v607
    %v672 = vfloor.f32 %v608
    %v673 = vfloor.f32 %v609
    %v674 = vpack.c.bf16 %v611, %v610
    %v675 = vpack.c.bf16 %v613, %v612
    %v676 = vpack.c.bf16 %v615, %v614
    %v677 = vpack.c.bf16 %v617, %v616
    %v678 = vpack.c.bf16 %v619, %v618
    %v679 = vpack.c.bf16 %v621, %v620
    %v680 = vpack.c.bf16 %v623, %v622
    %v681 = vpack.c.bf16 %v625, %v624
    %v682 = vpack.c.bf16 %v627, %v626
    %v683 = vpack.c.bf16 %v629, %v628
    %v684 = vpack.c.bf16 %v631, %v630
    %v685 = vpack.c.bf16 %v633, %v632
    %v686 = vpack.c.bf16 %v635, %v634
    %v687 = vpack.c.bf16 %v637, %v636
    %v688 = vpack.c.bf16 %v639, %v638
    %v689 = vpack.c.bf16 %v641, %v640
    %v690 = vpack.c.bf16 %v643, %v642
    %v691 = vpack.c.bf16 %v645, %v644
    %v692 = vpack.c.bf16 %v647, %v646
    %v693 = vpack.c.bf16 %v649, %v648
    %v694 = vpack.c.bf16 %v651, %v650
    %v695 = vpack.c.bf16 %v653, %v652
    %v696 = vpack.c.bf16 %v655, %v654
    %v697 = vpack.c.bf16 %v657, %v656
    %v698 = vpack.c.bf16 %v659, %v658
    %v699 = vpack.c.bf16 %v661, %v660
    %v700 = vpack.c.bf16 %v663, %v662
    %v701 = vpack.c.bf16 %v665, %v664
    %v702 = vpack.c.bf16 %v667, %v666
    %v703 = vpack.c.bf16 %v669, %v668
    %v704 = vpack.c.bf16 %v671, %v670
    %v705 = vpack.c.bf16 %v673, %v672
    %v738 = vunpack.c.l.b16 %v674
    %v739 = vunpack.c.h.b16 %v674
    %v740 = vunpack.c.l.b16 %v675
    %v741 = vunpack.c.h.b16 %v675
    %v742 = vunpack.c.l.b16 %v676
    %v743 = vunpack.c.h.b16 %v676
    %v744 = vunpack.c.l.b16 %v677
    %v745 = vunpack.c.h.b16 %v677
    %v746 = vunpack.c.l.b16 %v678
    %v747 = vunpack.c.h.b16 %v678
    %v748 = vunpack.c.l.b16 %v679
    %v749 = vunpack.c.h.b16 %v679
    %v750 = vunpack.c.l.b16 %v680
    %v751 = vunpack.c.h.b16 %v680
    %v752 = vunpack.c.l.b16 %v681
    %v753 = vunpack.c.h.b16 %v681
    %v754 = vunpack.c.l.b16 %v682
    %v755 = vunpack.c.h.b16 %v682
    %v756 = vunpack.c.l.b16 %v683
    %v757 = vunpack.c.h.b16 %v683
    %v758 = vunpack.c.l.b16 %v684
    %v759 = vunpack.c.h.b16 %v684
    %v760 = vunpack.c.l.b16 %v685
    %v761 = vunpack.c.h.b16 %v685
    %v762 = vunpack.c.l.b16 %v686
    %v763 = vunpack.c.h.b16 %v686
    %v764 = vunpack.c.l.b16 %v687
    %v765 = vunpack.c.h.b16 %v687
    %v766 = vunpack.c.l.b16 %v688
    %v767 = vunpack.c.h.b16 %v688
    %v768 = vunpack.c.l.b16 %v689
    %v769 = vunpack.c.h.b16 %v689
    %v770 = vunpack.c.l.b16 %v690
    %v771 = vunpack.c.h.b16 %v690
    %v772 = vunpack.c.l.b16 %v691
    %v773 = vunpack.c.h.b16 %v691
    %v774 = vunpack.c.l.b16 %v692
    %v775 = vunpack.c.h.b16 %v692
    %v776 = vunpack.c.l.b16 %v693
    %v777 = vunpack.c.h.b16 %v693
    %v778 = vunpack.c.l.b16 %v694
    %v779 = vunpack.c.h.b16 %v694
    %v780 = vunpack.c.l.b16 %v695
    %v781 = vunpack.c.h.b16 %v695
    %v782 = vunpack.c.l.b16 %v696
    %v783 = vunpack.c.h.b16 %v696
    %v784 = vunpack.c.l.b16 %v697
    %v785 = vunpack.c.h.b16 %v697
    %v786 = vunpack.c.l.b16 %v698
    %v787 = vunpack.c.h.b16 %v698
    %v788 = vunpack.c.l.b16 %v699
    %v789 = vunpack.c.h.b16 %v699
    %v790 = vunpack.c.l.b16 %v700
    %v791 = vunpack.c.h.b16 %v700
    %v792 = vunpack.c.l.b16 %v701
    %v793 = vunpack.c.h.b16 %v701
    %v794 = vunpack.c.l.b16 %v702
    %v795 = vunpack.c.h.b16 %v702
    %v796 = vunpack.c.l.b16 %v703
    %v797 = vunpack.c.h.b16 %v703
    %v798 = vunpack.c.l.b16 %v704
    %v799 = vunpack.c.h.b16 %v704
    %v800 = vunpack.c.l.b16 %v705
    %v801 = vunpack.c.h.b16 %v705
    %v802 = vpack.c.b16 %v738, %v738
    %v803 = vpack.c.b16 %v739, %v739
    %v804 = vpack.c.b16 %v740, %v740
    %v805 = vpack.c.b16 %v741, %v741
    %v806 = vpack.c.b16 %v742, %v742
    %v807 = vpack.c.b16 %v743, %v743
    %v808 = vpack.c.b16 %v744, %v744
    %v809 = vpack.c.b16 %v745, %v745
    %v810 = vpack.c.b16 %v746, %v746
    %v811 = vpack.c.b16 %v747, %v747
    %v812 = vpack.c.b16 %v748, %v748
    %v813 = vpack.c.b16 %v749, %v749
    %v814 = vpack.c.b16 %v750, %v750
    %v815 = vpack.c.b16 %v751, %v751
    %v816 = vpack.c.b16 %v752, %v752
    %v817 = vpack.c.b16 %v753, %v753
    %v818 = vpack.c.b16 %v754, %v754
    %v819 = vpack.c.b16 %v755, %v755
    %v820 = vpack.c.b16 %v756, %v756
    %v821 = vpack.c.b16 %v757, %v757
    %v822 = vpack.c.b16 %v758, %v758
    %v823 = vpack.c.b16 %v759, %v759
    %v824 = vpack.c.b16 %v760, %v760
    %v825 = vpack.c.b16 %v761, %v761
    %v826 = vpack.c.b16 %v762, %v762
    %v827 = vpack.c.b16 %v763, %v763
    %v828 = vpack.c.b16 %v764, %v764
    %v829 = vpack.c.b16 %v765, %v765
    %v830 = vpack.c.b16 %v766, %v766
    %v831 = vpack.c.b16 %v767, %v767
    %v832 = vpack.c.b16 %v768, %v768
    %v833 = vpack.c.b16 %v769, %v769
    %v834 = vpack.c.b16 %v770, %v770
    %v835 = vpack.c.b16 %v771, %v771
    %v836 = vpack.c.b16 %v772, %v772
    %v837 = vpack.c.b16 %v773, %v773
    %v838 = vpack.c.b16 %v774, %v774
    %v839 = vpack.c.b16 %v775, %v775
    %v840 = vpack.c.b16 %v776, %v776
    %v841 = vpack.c.b16 %v777, %v777
    %v842 = vpack.c.b16 %v778, %v778
    %v843 = vpack.c.b16 %v779, %v779
    %v844 = vpack.c.b16 %v780, %v780
    %v845 = vpack.c.b16 %v781, %v781
    %v846 = vpack.c.b16 %v782, %v782
    %v847 = vpack.c.b16 %v783, %v783
    %v848 = vpack.c.b16 %v784, %v784
    %v849 = vpack.c.b16 %v785, %v785
    %v850 = vpack.c.b16 %v786, %v786
    %v851 = vpack.c.b16 %v787, %v787
    %v852 = vpack.c.b16 %v788, %v788
    %v853 = vpack.c.b16 %v789, %v789
    %v854 = vpack.c.b16 %v790, %v790
    %v855 = vpack.c.b16 %v791, %v791
    %v856 = vpack.c.b16 %v792, %v792
    %v857 = vpack.c.b16 %v793, %v793
    %v858 = vpack.c.b16 %v794, %v794
    %v859 = vpack.c.b16 %v795, %v795
    %v860 = vpack.c.b16 %v796, %v796
    %v861 = vpack.c.b16 %v797, %v797
    %v862 = vpack.c.b16 %v798, %v798
    %v863 = vpack.c.b16 %v799, %v799
    %v864 = vpack.c.b16 %v800, %v800
    %v865 = vpack.c.b16 %v801, %v801
    %930 = vst [vmem:[#allocation2] sm:$0xf] %v802
    %931 = vst [vmem:[#allocation2 + $0x4] sm:$0xf] %v803
    %932 = vst [vmem:[#allocation2 + $0x8] sm:$0xf] %v804
    %933 = vst [vmem:[#allocation2 + $0xc] sm:$0xf] %v805
    %934 = vst [vmem:[#allocation2 + $0x10] sm:$0xf] %v806
    %935 = vst [vmem:[#allocation2 + $0x14] sm:$0xf] %v807
    %936 = vst [vmem:[#allocation2 + $0x18] sm:$0xf] %v808
    %937 = vst [vmem:[#allocation2 + $0x1c] sm:$0xf] %v809
    %938 = vst [vmem:[#allocation2 + $0x20] sm:$0xf] %v810
    %939 = vst [vmem:[#allocation2 + $0x24] sm:$0xf] %v811
    %940 = vst [vmem:[#allocation2 + $0x28] sm:$0xf] %v812
    %941 = vst [vmem:[#allocation2 + $0x2c] sm:$0xf] %v813
    %942 = vst [vmem:[#allocation2 + $0x30] sm:$0xf] %v814
    %943 = vst [vmem:[#allocation2 + $0x34] sm:$0xf] %v815
    %944 = vst [vmem:[#allocation2 + $0x38] sm:$0xf] %v816
    %945 = vst [vmem:[#allocation2 + $0x3c] sm:$0xf] %v817
    %946 = vst [vmem:[#allocation2 + $0x40] sm:$0xf] %v818
    %947 = vst [vmem:[#allocation2 + $0x44] sm:$0xf] %v819
    %948 = vst [vmem:[#allocation2 + $0x48] sm:$0xf] %v820
    %949 = vst [vmem:[#allocation2 + $0x4c] sm:$0xf] %v821
    %950 = vst [vmem:[#allocation2 + $0x50] sm:$0xf] %v822
    %951 = vst [vmem:[#allocation2 + $0x54] sm:$0xf] %v823
    %952 = vst [vmem:[#allocation2 + $0x58] sm:$0xf] %v824
    %953 = vst [vmem:[#allocation2 + $0x5c] sm:$0xf] %v825
    %954 = vst [vmem:[#allocation2 + $0x60] sm:$0xf] %v826
    %955 = vst [vmem:[#allocation2 + $0x64] sm:$0xf] %v827
    %956 = vst [vmem:[#allocation2 + $0x68] sm:$0xf] %v828
    %957 = vst [vmem:[#allocation2 + $0x6c] sm:$0xf] %v829
    %958 = vst [vmem:[#allocation2 + $0x70] sm:$0xf] %v830
    %959 = vst [vmem:[#allocation2 + $0x74] sm:$0xf] %v831
    %960 = vst [vmem:[#allocation2 + $0x78] sm:$0xf] %v832
    %961 = vst [vmem:[#allocation2 + $0x7c] sm:$0xf] %v833
    %962 = vst [vmem:[#allocation2 + $0x80] sm:$0xf] %v834
    %963 = vst [vmem:[#allocation2 + $0x84] sm:$0xf] %v835
    %964 = vst [vmem:[#allocation2 + $0x88] sm:$0xf] %v836
    %965 = vst [vmem:[#allocation2 + $0x8c] sm:$0xf] %v837
    %966 = vst [vmem:[#allocation2 + $0x90] sm:$0xf] %v838
    %967 = vst [vmem:[#allocation2 + $0x94] sm:$0xf] %v839
    %968 = vst [vmem:[#allocation2 + $0x98] sm:$0xf] %v840
    %969 = vst [vmem:[#allocation2 + $0x9c] sm:$0xf] %v841
    %970 = vst [vmem:[#allocation2 + $0xa0] sm:$0xf] %v842
    %971 = vst [vmem:[#allocation2 + $0xa4] sm:$0xf] %v843
    %972 = vst [vmem:[#allocation2 + $0xa8] sm:$0xf] %v844
    %973 = vst [vmem:[#allocation2 + $0xac] sm:$0xf] %v845
    %974 = vst [vmem:[#allocation2 + $0xb0] sm:$0xf] %v846
    %975 = vst [vmem:[#allocation2 + $0xb4] sm:$0xf] %v847
    %976 = vst [vmem:[#allocation2 + $0xb8] sm:$0xf] %v848
    %977 = vst [vmem:[#allocation2 + $0xbc] sm:$0xf] %v849
    %978 = vst [vmem:[#allocation2 + $0xc0] sm:$0xf] %v850
    %979 = vst [vmem:[#allocation2 + $0xc4] sm:$0xf] %v851
    %980 = vst [vmem:[#allocation2 + $0xc8] sm:$0xf] %v852
    %981 = vst [vmem:[#allocation2 + $0xcc] sm:$0xf] %v853
    %982 = vst [vmem:[#allocation2 + $0xd0] sm:$0xf] %v854
    %983 = vst [vmem:[#allocation2 + $0xd4] sm:$0xf] %v855
    %984 = vst [vmem:[#allocation2 + $0xd8] sm:$0xf] %v856
    %985 = vst [vmem:[#allocation2 + $0xdc] sm:$0xf] %v857
    %986 = vst [vmem:[#allocation2 + $0xe0] sm:$0xf] %v858
    %987 = vst [vmem:[#allocation2 + $0xe4] sm:$0xf] %v859
    %988 = vst [vmem:[#allocation2 + $0xe8] sm:$0xf] %v860
    %989 = vst [vmem:[#allocation2 + $0xec] sm:$0xf] %v861
    %990 = vst [vmem:[#allocation2 + $0xf0] sm:$0xf] %v862
    %991 = vst [vmem:[#allocation2 + $0xf4] sm:$0xf] %v863
    %992 = vst [vmem:[#allocation2 + $0xf8] sm:$0xf] %v864
    %993 = vst [vmem:[#allocation2 + $0xfc] sm:$0xf] %v865
    // Predicated region
    $region18: #{basic_block_forward.11} parent=1 // pred_check
      _
    $region19: #{basic_block_forward.11} parent=1 // pred_check_branch
      %995 = sbr.rel (0) target = $region21
    $region20: #{basic_block_forward.11} parent=1 // pred_region
      _
    $region21: #{basic_block_forward.11} parent=1 // pred_fallthru
      _
    // Predicated region
    $region22: #{basic_block_forward.11} parent=1 // pred_check
      _
    $region23: #{basic_block_forward.11} parent=1 // pred_check_branch
      %997 = sbr.rel (0) target = $region25
    $region24: #{basic_block_forward.11} parent=1 // pred_region
      %s999 = ssub.s32 4096, 4096
      %1000 = vsyncadd [#allocation3], %s999
      %s1001 = sshll.u32 [#allocation2], 4
      %s1002 = int_to_ptr.vmem [resolvable:$true] %s1001
      %1007 = dma.vmem_to_hbm [thread:$0]  %s1002, 4096, %s5, [#allocation3], 64, 64, 4
    $region25: #{basic_block_forward.11} parent=1 // pred_fallthru
      _
    // Predicated region
    $region26: #{basic_block_forward.11} parent=1 // pred_check
      _
    $region27: #{basic_block_forward.11} parent=1 // pred_check_branch
      %1009 = sbr.rel (0) target = $region29
    $region28: #{basic_block_forward.11} parent=1 // pred_region
      _
    $region29: #{basic_block_forward.11} parent=1 // pred_fallthru
      _
    // Predicated region
    $region30: #{basic_block_forward.11} parent=1 // pred_check
      _
    $region31: #{basic_block_forward.11} parent=1 // pred_check_branch
      %1011 = sbr.rel (0) target = $region33
    $region32: #{basic_block_forward.11} parent=1 // pred_region
      %1012 = dma.done [#allocation3], 4096
    $region33: #{basic_block_forward.11} parent=1 // pred_fallthru
      _
    %1013 = vsyncpa [#allocation3], 1

</llo_original>
